<compile_context>
chip_gen: v7x
topology: tpu7x:2x2x1
jax: 0.10.0
libtpu: 0.0.40
codegen_flags: <defaults>
</compile_context>

<pallas_src>
import functools

import jax
import jax.numpy as jnp
from jax.experimental import pallas as pl
from jax.experimental.pallas import tpu as pltpu


def _ssloss_kernel(yp_ref, yt_ref, out_ref,
                   acc_ce_ref, acc_ef_ref, acc_f_ref,
                   *, beta, c_const, spatial, use_mxu_sums):
    j = pl.program_id(1)   # reduction axis over plane-tiles within this slice

    @pl.when(j == 0)
    def _():
        acc_ce_ref[...] = jnp.zeros_like(acc_ce_ref)
        acc_ef_ref[...] = jnp.zeros_like(acc_ef_ref)
        acc_f_ref[...] = jnp.zeros_like(acc_f_ref)

    yp = yp_ref[...].astype(jnp.float32)   # (TILE_P, S)
    yt = yt_ref[...].astype(jnp.float32)   # (TILE_P, S)

    if use_mxu_sums:
        # Lane-axis sums on the otherwise-idle MXU (vector-extended slot),
        # exact f32 accumulation.  Frees ~25-30% of the VALU work on v6e/v7x.
        ones_col = jnp.ones((yp.shape[-1], 1), jnp.float32)

        def rsum(x):
            return jnp.dot(x, ones_col, preferred_element_type=jnp.float32,
                           precision=jax.lax.Precision.HIGHEST)
    else:
        def rsum(x):
            return jnp.sum(x, axis=-1, keepdims=True)

    inv_s = jnp.float32(1.0 / spatial)
    inv_sm1 = jnp.float32(1.0 / (spatial - 1.0) if spatial > 1.0 else float("nan"))

    # ---- first pass over yt/yp: means + CE term (EUP log overlaps the sums).
    mean_t = rsum(yt) * inv_s              # (TILE_P, 1)
    mean_p = rsum(yp) * inv_s
    # 0 * log(0) -> NaN exactly like the PyTorch original (y_pred assumed > 0).
    acc_ce_ref[...] += rsum(yt * jnp.log(yp))

    # ---- unbiased std; centered values recomputed on the fly (no dt/dp kept).
    std_t = jnp.sqrt(rsum((yt - mean_t) * (yt - mean_t)) * inv_sm1)
    std_p = jnp.sqrt(rsum((yp - mean_p) * (yp - mean_p)) * inv_sm1)

    # ---- fused normalization:
    #   e1 - e2 = yt*inv_t - yp*inv_p + [(c - mean_t)*inv_t - (c - mean_p)*inv_p]
    inv_t = 1.0 / (std_t + c_const)        # per-plane, (TILE_P, 1) — cheap exact divide
    inv_p = 1.0 / (std_p + c_const)
    k_row = (c_const - mean_t) * inv_t - (c_const - mean_p) * inv_p
    e = jnp.abs(yt * inv_t - yp * inv_p + k_row)   # only (TILE_P, S) f32 kept resident

    e_max = jnp.max(e, axis=-1, keepdims=True)     # per-plane max (VPU/XLU)
    mask = e > (beta * e_max)                      # no explicit f materialization
    acc_ef_ref[...] += rsum(jnp.where(mask, e, 0.0))
    acc_f_ref[...] += rsum(mask.astype(jnp.float32))

    # ---- finalize this slice: single cross-sublane reduce, emit partial sums.
    @pl.when(j == pl.num_programs(1) - 1)
    def _():
        ce_sum = jnp.sum(acc_ce_ref[...])
        ef_sum = jnp.sum(acc_ef_ref[...])
        f_sum = jnp.sum(acc_f_ref[...])
        lane = jax.lax.broadcasted_iota(jnp.int32, out_ref.shape, 2)
        out_ref[...] = jnp.where(lane == 0, ce_sum,
                       jnp.where(lane == 1, ef_sum,
                       jnp.where(lane == 2, f_sum, 0.0)))


def _vmem_capacity_bytes():
    """Per-TensorCore VMEM capacity; conservative fallback = v7x (64 MiB)."""
    try:
        cap = int(pltpu.get_tpu_info().vmem_capacity_bytes)
        if cap > 0:
            return cap
    except Exception:
        pass
    return 64 * 1024 * 1024


def _pick_tile_p(P, S, in_itemsize, budget_bytes, use_mxu_sums):
    """Largest plane-tile (sublane count) such that the double-buffered inputs
    PLUS the f32 compute intermediates fit the per-generation VMEM budget."""
    # Per plane-row of the block:
    #   inputs:        2 arrays x 2 pipeline buffers x native itemsize
    #   intermediates: ~K live/transient f32 (e, mask, summand, f32 casts of
    #                  narrow inputs)
    k_interm = 4 if in_itemsize >= 4 else 6
    per_row = (2 * 2 * in_itemsize + k_interm * 4) * S
    # (TILE_P, 1)-shaped stats + accumulators are lane-padded to 128 in VMEM.
    per_row += 16 * 128 * 4
    if use_mxu_sums:
        budget_bytes -= S * 128 * 4      # lane-padded (S, 1) ones operand
    sub = max(8, 32 // max(1, in_itemsize))   # dtype-aware sublane granularity
    max_tp = (max(budget_bytes, per_row) // per_row) // sub * sub
    max_tp = max(max_tp, sub)
    p_rounded = pl.cdiv(P, sub) * sub
    return min(p_rounded, max_tp)


def ss_loss(y_pred, y_true, beta=0.1, c=0.01, tile_p=None, num_slices=None):
    """SSLoss forward. y_pred, y_true: (N, C, H, W). Returns scalar f32."""
    assert y_pred.shape == y_true.shape
    N, C, H, W = y_pred.shape
    P = N * C
    S = H * W

    # Free, contiguous reshapes (no HBM transpose pass): planes on sublanes,
    # pixels on lanes -> every per-(n,c) reduction is a local lane reduction.
    yp = y_pred.reshape(P, S)
    yt = y_true.reshape(P, S)

    cap = _vmem_capacity_bytes()
    vmem_limit = int(cap * 0.80)     # scoped VMEM limit, generation-aware
    tile_budget = int(cap * 0.55)    # inputs + intermediates budget for tiling

    # MXU lane-sum offload only while the lane-padded (S,1) ones operand is cheap.
    use_mxu_sums = (S * 128 * 4) <= 4 * 1024 * 1024

    itemsize = jnp.dtype(y_pred.dtype).itemsize
    if tile_p is None:
        tile_p = _pick_tile_p(P, S, itemsize, tile_budget, use_mxu_sums)
    # TODO(synk): if a single H*W plane is too large to fit in one VMEM block,
    # a two-pass spatially-tiled variant (stats/e_max pass + threshold pass) is
    # required; this single-pass kernel keeps whole planes per block.

    # Leading 'parallel' axis of plane-slices -> both TensorCores on v7x
    # (harmless 2-iteration serial loop on v5e/v6e single-core chips).
    if num_slices is None:
        num_slices = 2 if pl.cdiv(P, tile_p) >= 2 else 1

    chunk = num_slices * tile_p
    P_pad = pl.cdiv(P, chunk) * chunk
    if P_pad != P:
        # Neutral padding planes: y_true = 0, y_pred = 1 contribute exactly 0
        # to every accumulated sum (ce, sum(e*f), sum(f)).
        pad = P_pad - P
        yp = jnp.pad(yp, ((0, pad), (0, 0)), constant_values=1.0)
        yt = jnp.pad(yt, ((0, pad), (0, 0)), constant_values=0.0)

    tiles_per_slice = P_pad // chunk
    grid = (num_slices, tiles_per_slice)

    kernel = functools.partial(
        _ssloss_kernel,
        beta=float(beta),
        c_const=float(c),
        spatial=float(S),
        use_mxu_sums=use_mxu_sums,
    )

    parts = pl.pallas_call(
        kernel,
        out_shape=jax.ShapeDtypeStruct((num_slices, 8, 128), jnp.float32),
        grid_spec=pltpu.PrefetchScalarGridSpec(
            num_scalar_prefetch=0,
            grid=grid,
            in_specs=[
                pl.BlockSpec((tile_p, S), lambda i, j: (i * tiles_per_slice + j, 0)),
                pl.BlockSpec((tile_p, S), lambda i, j: (i * tiles_per_slice + j, 0)),
            ],
            out_specs=pl.BlockSpec((1, 8, 128), lambda i, j: (i, 0, 0)),
            scratch_shapes=[
                pltpu.VMEM((tile_p, 1), jnp.float32),   # sum(y_true * log(y_pred))
                pltpu.VMEM((tile_p, 1), jnp.float32),   # sum(e * f)
                pltpu.VMEM((tile_p, 1), jnp.float32),   # sum(f)
            ],
        ),
        compiler_params=pltpu.CompilerParams(
            dimension_semantics=("parallel", "arbitrary"),
            vmem_limit_bytes=vmem_limit,
        ),
    )(yp, yt)

    # Tiny cross-slice combine (3 scalars per slice) in plain JAX.
    ce_sum = jnp.sum(parts[:, 0, 0])
    ef_sum = jnp.sum(parts[:, 0, 1])
    f_sum = jnp.sum(parts[:, 0, 2])
    lce = -ce_sum / jnp.float32(N * H * W)
    return lce * ef_sum / f_sum


def _reference(y_pred, y_true, beta=0.1, c=0.01):
    """Pure-JAX reference mirroring the PyTorch SSLoss forward."""
    mean_t = jnp.mean(y_true, axis=(2, 3), keepdims=True)
    std_t = jnp.std(y_true, axis=(2, 3), keepdims=True, ddof=1)   # torch.std is unbiased
    mean_p = jnp.mean(y_pred, axis=(2, 3), keepdims=True)
    std_p = jnp.std(y_pred, axis=(2, 3), keepdims=True, ddof=1)
    e1 = (y_true - mean_t + c) / (std_t + c)
    e2 = (y_pred - mean_p + c) / (std_p + c)
    e = jnp.abs(e1 - e2)
    N, C, H, W = y_true.shape
    e_max = jnp.max(e.reshape(N, C, H * W), axis=2)[:, :, None, None]
    f = (e > beta * e_max).astype(jnp.float32)
    lce = -jnp.sum(y_true * jnp.log(y_pred)) / (N * H * W)
    return jnp.sum(e * f * lce) / jnp.sum(f)


def _make_inputs(key, N, C, H, W):
    k1, k2 = jax.random.split(key)
    # y_pred: per-pixel probabilities over channels (softmax along C), in (0,1)
    logits = jax.random.normal(k1, (N, C, H, W), dtype=jnp.float32)
    y_pred = jax.nn.softmax(logits, axis=1)
    # y_true: one-hot labels along the channel dim, float 0/1, NCHW
    labels = jax.random.randint(k2, (N, H, W), 0, C)
    y_true = jnp.transpose(jax.nn.one_hot(labels, C, dtype=jnp.float32), (0, 3, 1, 2))
    return y_pred, y_true


if __name__ == "__main__":
    key = jax.random.PRNGKey(0)
    k_a, k_b = jax.random.split(key)

    # Main check: standard aligned case.
    y_pred, y_true = _make_inputs(k_a, 2, 4, 16, 16)
    loss = jax.block_until_ready(ss_loss(y_pred, y_true, beta=0.1, c=0.01))
    ref = _reference(y_pred, y_true, beta=0.1, c=0.01)
    assert jnp.isfinite(loss), loss
    assert jnp.allclose(loss, ref, rtol=1e-3, atol=1e-5), (loss, ref)

    # Non-tile-aligned P (exercises neutral-plane padding).
    y_pred2, y_true2 = _make_inputs(k_b, 1, 3, 8, 8)
    loss2 = jax.block_until_ready(ss_loss(y_pred2, y_true2, beta=0.1, c=0.01))
    ref2 = _reference(y_pred2, y_true2, beta=0.1, c=0.01)
    assert jnp.isfinite(loss2), loss2
    assert jnp.allclose(loss2, ref2, rtol=1e-3, atol=1e-5), (loss2, ref2)

    # Forced two-slice path (exercises the parallel leading axis / partial-sum combine).
    loss3 = jax.block_until_ready(
        ss_loss(y_pred, y_true, beta=0.1, c=0.01, tile_p=8, num_slices=2))
    assert jnp.isfinite(loss3), loss3
    assert jnp.allclose(loss3, ref, rtol=1e-3, atol=1e-5), (loss3, ref)

    print("KERNEL_OK")
</pallas_src>

<mosaic_0001>
module attributes {stable_mosaic.version = 11 : i64} {
  func.func @_ssloss_kernel(%arg0: i32, %arg1: i32, %arg2: memref<8x256xf32, #tpu.memory_space<vmem>>, %arg3: memref<8x256xf32, #tpu.memory_space<vmem>>, %arg4: memref<1x8x128xf32, #tpu.memory_space<vmem>>, %arg5: memref<8x1xf32, #tpu.memory_space<vmem>>, %arg6: memref<8x1xf32, #tpu.memory_space<vmem>>, %arg7: memref<8x1xf32, #tpu.memory_space<vmem>>) attributes {dimension_semantics = [#tpu.dimension_semantics<parallel>, #tpu.dimension_semantics<arbitrary>], iteration_bounds = array<i64: 1, 1>, scalar_prefetch = 0 : i64, scratch_operands = 3 : i64, tpu.core_type = #tpu.core_type<tc>, window_params = [{transform_indices = @transform_0, window_bounds = array<i64: 8, 256>}, {transform_indices = @transform_1, window_bounds = array<i64: 8, 256>}, {transform_indices = @transform_2, window_bounds = array<i64: 1, 8, 128>}]} {
    %c0_i32 = arith.constant 0 : i32
    %0 = arith.cmpi eq, %arg1, %c0_i32 : i32
    %1 = arith.extui %0 : i1 to i32
    %c0_i32_0 = arith.constant 0 : i32
    %2 = arith.cmpi ne, %1, %c0_i32_0 : i32
    scf.if %2 {
      %cst_38 = arith.constant 0.000000e+00 : f32
      %80 = vector.broadcast %cst_38 : f32 to vector<8x1xf32>
      %c0_39 = arith.constant 0 : index
      %c0_40 = arith.constant 0 : index
      %81 = vector.load %arg5[%c0_39, %c0_40] : memref<8x1xf32, #tpu.memory_space<vmem>>, vector<8x1xf32>
      tpu.vector_store %arg5[%c0_39, %c0_40], %80 {strides = array<i32>} : memref<8x1xf32, #tpu.memory_space<vmem>>, vector<8x1xf32>,
      %cst_41 = arith.constant 0.000000e+00 : f32
      %82 = vector.broadcast %cst_41 : f32 to vector<8x1xf32>
      %c0_42 = arith.constant 0 : index
      %c0_43 = arith.constant 0 : index
      %83 = vector.load %arg6[%c0_42, %c0_43] : memref<8x1xf32, #tpu.memory_space<vmem>>, vector<8x1xf32>
      tpu.vector_store %arg6[%c0_42, %c0_43], %82 {strides = array<i32>} : memref<8x1xf32, #tpu.memory_space<vmem>>, vector<8x1xf32>,
      %cst_44 = arith.constant 0.000000e+00 : f32
      %84 = vector.broadcast %cst_44 : f32 to vector<8x1xf32>
      %c0_45 = arith.constant 0 : index
      %c0_46 = arith.constant 0 : index
      %85 = vector.load %arg7[%c0_45, %c0_46] : memref<8x1xf32, #tpu.memory_space<vmem>>, vector<8x1xf32>
      tpu.vector_store %arg7[%c0_45, %c0_46], %84 {strides = array<i32>} : memref<8x1xf32, #tpu.memory_space<vmem>>, vector<8x1xf32>,
    } else {
    }
    %c0 = arith.constant 0 : index
    %c0_1 = arith.constant 0 : index
    %3 = vector.load %arg2[%c0, %c0_1] : memref<8x256xf32, #tpu.memory_space<vmem>>, vector<8x256xf32>
    %c0_2 = arith.constant 0 : index
    %c0_3 = arith.constant 0 : index
    %4 = vector.load %arg3[%c0_2, %c0_3] : memref<8x256xf32, #tpu.memory_space<vmem>>, vector<8x256xf32>
    %cst = arith.constant 1.000000e+00 : f32
    %5 = vector.broadcast %cst : f32 to vector<256x1xf32>
    %cst_4 = arith.constant dense<0.000000e+00> : vector<8x1xf32>
    %6 = tpu.matmul %4, %5, %cst_4 {dimension_numbers = #tpu.dot_dimension_numbers<[1], [0], [0], [1], [0, 0, 1, 1], [], []>, precision = #tpu.contract_precision<fp32>} : vector<8x256xf32>, vector<256x1xf32>, vector<8x1xf32> -> vector<8x1xf32>
    %cst_5 = arith.constant 3.906250e-03 : f32
    %7 = vector.broadcast %cst_5 : f32 to vector<8x1xf32>
    %8 = arith.mulf %6, %7 : vector<8x1xf32>
    %cst_6 = arith.constant dense<0.000000e+00> : vector<8x1xf32>
    %9 = tpu.matmul %3, %5, %cst_6 {dimension_numbers = #tpu.dot_dimension_numbers<[1], [0], [0], [1], [0, 0, 1, 1], [], []>, precision = #tpu.contract_precision<fp32>} : vector<8x256xf32>, vector<256x1xf32>, vector<8x1xf32> -> vector<8x1xf32>
    %cst_7 = arith.constant 3.906250e-03 : f32
    %10 = vector.broadcast %cst_7 : f32 to vector<8x1xf32>
    %11 = arith.mulf %9, %10 : vector<8x1xf32>
    %c0_8 = arith.constant 0 : index
    %c0_9 = arith.constant 0 : index
    %12 = vector.load %arg5[%c0_8, %c0_9] : memref<8x1xf32, #tpu.memory_space<vmem>>, vector<8x1xf32>
    %13 = math.log %3 : vector<8x256xf32>
    %14 = arith.mulf %4, %13 : vector<8x256xf32>
    %cst_10 = arith.constant dense<0.000000e+00> : vector<8x1xf32>
    %15 = tpu.matmul %14, %5, %cst_10 {dimension_numbers = #tpu.dot_dimension_numbers<[1], [0], [0], [1], [0, 0, 1, 1], [], []>, precision = #tpu.contract_precision<fp32>} : vector<8x256xf32>, vector<256x1xf32>, vector<8x1xf32> -> vector<8x1xf32>
    %16 = arith.addf %12, %15 : vector<8x1xf32>
    %c0_11 = arith.constant 0 : index
    %c0_12 = arith.constant 0 : index
    %17 = vector.load %arg5[%c0_11, %c0_12] : memref<8x1xf32, #tpu.memory_space<vmem>>, vector<8x1xf32>
    tpu.vector_store %arg5[%c0_11, %c0_12], %16 {strides = array<i32>} : memref<8x1xf32, #tpu.memory_space<vmem>>, vector<8x1xf32>,
    %18 = vector.broadcast %8 : vector<8x1xf32> to vector<8x256xf32>
    %19 = arith.subf %4, %18 : vector<8x256xf32>
    %20 = vector.broadcast %8 : vector<8x1xf32> to vector<8x256xf32>
    %21 = arith.subf %4, %20 : vector<8x256xf32>
    %22 = arith.mulf %19, %21 : vector<8x256xf32>
    %cst_13 = arith.constant dense<0.000000e+00> : vector<8x1xf32>
    %23 = tpu.matmul %22, %5, %cst_13 {dimension_numbers = #tpu.dot_dimension_numbers<[1], [0], [0], [1], [0, 0, 1, 1], [], []>, precision = #tpu.contract_precision<fp32>} : vector<8x256xf32>, vector<256x1xf32>, vector<8x1xf32> -> vector<8x1xf32>
    %cst_14 = arith.constant 0.00392156886 : f32
    %24 = vector.broadcast %cst_14 : f32 to vector<8x1xf32>
    %25 = arith.mulf %23, %24 : vector<8x1xf32>
    %26 = math.sqrt %25 : vector<8x1xf32>
    %27 = vector.broadcast %11 : vector<8x1xf32> to vector<8x256xf32>
    %28 = arith.subf %3, %27 : vector<8x256xf32>
    %29 = vector.broadcast %11 : vector<8x1xf32> to vector<8x256xf32>
    %30 = arith.subf %3, %29 : vector<8x256xf32>
    %31 = arith.mulf %28, %30 : vector<8x256xf32>
    %cst_15 = arith.constant dense<0.000000e+00> : vector<8x1xf32>
    %32 = tpu.matmul %31, %5, %cst_15 {dimension_numbers = #tpu.dot_dimension_numbers<[1], [0], [0], [1], [0, 0, 1, 1], [], []>, precision = #tpu.contract_precision<fp32>} : vector<8x256xf32>, vector<256x1xf32>, vector<8x1xf32> -> vector<8x1xf32>
    %cst_16 = arith.constant 0.00392156886 : f32
    %33 = vector.broadcast %cst_16 : f32 to vector<8x1xf32>
    %34 = arith.mulf %32, %33 : vector<8x1xf32>
    %35 = math.sqrt %34 : vector<8x1xf32>
    %cst_17 = arith.constant 0.00999999977 : f32
    %36 = vector.broadcast %cst_17 : f32 to vector<8x1xf32>
    %37 = arith.addf %26, %36 : vector<8x1xf32>
    %cst_18 = arith.constant 1.000000e+00 : f32
    %38 = vector.broadcast %cst_18 : f32 to vector<8x1xf32>
    %39 = arith.divf %38, %37 : vector<8x1xf32>
    %cst_19 = arith.constant 0.00999999977 : f32
    %40 = vector.broadcast %cst_19 : f32 to vector<8x1xf32>
    %41 = arith.addf %35, %40 : vector<8x1xf32>
    %cst_20 = arith.constant 1.000000e+00 : f32
    %42 = vector.broadcast %cst_20 : f32 to vector<8x1xf32>
    %43 = arith.divf %42, %41 : vector<8x1xf32>
    %cst_21 = arith.constant 0.00999999977 : f32
    %44 = vector.broadcast %cst_21 : f32 to vector<8x1xf32>
    %45 = arith.subf %44, %8 : vector<8x1xf32>
    %46 = arith.mulf %45, %39 : vector<8x1xf32>
    %cst_22 = arith.constant 0.00999999977 : f32
    %47 = vector.broadcast %cst_22 : f32 to vector<8x1xf32>
    %48 = arith.subf %47, %11 : vector<8x1xf32>
    %49 = arith.mulf %48, %43 : vector<8x1xf32>
    %50 = arith.subf %46, %49 : vector<8x1xf32>
    %51 = vector.broadcast %39 : vector<8x1xf32> to vector<8x256xf32>
    %52 = arith.mulf %4, %51 : vector<8x256xf32>
    %53 = vector.broadcast %43 : vector<8x1xf32> to vector<8x256xf32>
    %54 = arith.mulf %3, %53 : vector<8x256xf32>
    %55 = arith.subf %52, %54 : vector<8x256xf32>
    %56 = vector.broadcast %50 : vector<8x1xf32> to vector<8x256xf32>
    %57 = arith.addf %55, %56 : vector<8x256xf32>
    %58 = math.absf %57 : vector<8x256xf32>
    %cst_23 = arith.constant dense<0xFF800000> : vector<8xf32>
    %59 = vector.multi_reduction <maximumf>, %58, %cst_23 [1] : vector<8x256xf32> to vector<8xf32>
    %60 = vector.shape_cast %59 : vector<8xf32> to vector<8x1xf32>
    %cst_24 = arith.constant 1.000000e-01 : f32
    %61 = vector.broadcast %cst_24 : f32 to vector<8x1xf32>
    %62 = arith.mulf %61, %60 : vector<8x1xf32>
    %63 = vector.broadcast %62 : vector<8x1xf32> to vector<8x256xf32>
    %64 = arith.cmpf ogt, %58, %63 : vector<8x256xf32>
    %c0_25 = arith.constant 0 : index
    %c0_26 = arith.constant 0 : index
    %65 = vector.load %arg6[%c0_25, %c0_26] : memref<8x1xf32, #tpu.memory_space<vmem>>, vector<8x1xf32>
    %cst_27 = arith.constant 0.000000e+00 : f32
    %66 = vector.broadcast %cst_27 : f32 to vector<8x256xf32>
    %67 = arith.select %64, %58, %66 : vector<8x256xi1>, vector<8x256xf32>
    %cst_28 = arith.constant dense<0.000000e+00> : vector<8x1xf32>
    %68 = tpu.matmul %67, %5, %cst_28 {dimension_numbers = #tpu.dot_dimension_numbers<[1], [0], [0], [1], [0, 0, 1, 1], [], []>, precision = #tpu.contract_precision<fp32>} : vector<8x256xf32>, vector<256x1xf32>, vector<8x1xf32> -> vector<8x1xf32>
    %69 = arith.addf %65, %68 : vector<8x1xf32>
    %c0_29 = arith.constant 0 : index
    %c0_30 = arith.constant 0 : index
    %70 = vector.load %arg6[%c0_29, %c0_30] : memref<8x1xf32, #tpu.memory_space<vmem>>, vector<8x1xf32>
    tpu.vector_store %arg6[%c0_29, %c0_30], %69 {strides = array<i32>} : memref<8x1xf32, #tpu.memory_space<vmem>>, vector<8x1xf32>,
    %c0_31 = arith.constant 0 : index
    %c0_32 = arith.constant 0 : index
    %71 = vector.load %arg7[%c0_31, %c0_32] : memref<8x1xf32, #tpu.memory_space<vmem>>, vector<8x1xf32>
    %72 = arith.extui %64 : vector<8x256xi1> to vector<8x256xi32>
    %73 = arith.sitofp %72 : vector<8x256xi32> to vector<8x256xf32>
    %cst_33 = arith.constant dense<0.000000e+00> : vector<8x1xf32>
    %74 = tpu.matmul %73, %5, %cst_33 {dimension_numbers = #tpu.dot_dimension_numbers<[1], [0], [0], [1], [0, 0, 1, 1], [], []>, precision = #tpu.contract_precision<fp32>} : vector<8x256xf32>, vector<256x1xf32>, vector<8x1xf32> -> vector<8x1xf32>
    %75 = arith.addf %71, %74 : vector<8x1xf32>
    %c0_34 = arith.constant 0 : index
    %c0_35 = arith.constant 0 : index
    %76 = vector.load %arg7[%c0_34, %c0_35] : memref<8x1xf32, #tpu.memory_space<vmem>>, vector<8x1xf32>
    tpu.vector_store %arg7[%c0_34, %c0_35], %75 {strides = array<i32>} : memref<8x1xf32, #tpu.memory_space<vmem>>, vector<8x1xf32>,
    %c0_i32_36 = arith.constant 0 : i32
    %77 = arith.cmpi eq, %arg1, %c0_i32_36 : i32
    %78 = arith.extui %77 : i1 to i32
    %c0_i32_37 = arith.constant 0 : i32
    %79 = arith.cmpi ne, %78, %c0_i32_37 : i32
    scf.if %79 {
      %c0_38 = arith.constant 0 : index
      %c0_39 = arith.constant 0 : index
      %80 = vector.load %arg5[%c0_38, %c0_39] : memref<8x1xf32, #tpu.memory_space<vmem>>, vector<8x1xf32>
      %81 = vector.shape_cast %80 : vector<8x1xf32> to vector<1x8x1xf32>
      %cst_40 = arith.constant dense<0.000000e+00> : vector<1xf32>
      %82 = vector.multi_reduction <add>, %81, %cst_40 [1, 2] : vector<1x8x1xf32> to vector<1xf32>
      %83 = vector.shape_cast %82 : vector<1xf32> to vector<1x1x1xf32>
      %84 = vector.extract %83[0, 0, 0] : f32 from vector<1x1x1xf32>
      %c0_41 = arith.constant 0 : index
      %c0_42 = arith.constant 0 : index
      %85 = vector.load %arg6[%c0_41, %c0_42] : memref<8x1xf32, #tpu.memory_space<vmem>>, vector<8x1xf32>
      %86 = vector.shape_cast %85 : vector<8x1xf32> to vector<1x8x1xf32>
      %cst_43 = arith.constant dense<0.000000e+00> : vector<1xf32>
      %87 = vector.multi_reduction <add>, %86, %cst_43 [1, 2] : vector<1x8x1xf32> to vector<1xf32>
      %88 = vector.shape_cast %87 : vector<1xf32> to vector<1x1x1xf32>
      %89 = vector.extract %88[0, 0, 0] : f32 from vector<1x1x1xf32>
      %c0_44 = arith.constant 0 : index
      %c0_45 = arith.constant 0 : index
      %90 = vector.load %arg7[%c0_44, %c0_45] : memref<8x1xf32, #tpu.memory_space<vmem>>, vector<8x1xf32>
      %91 = vector.shape_cast %90 : vector<8x1xf32> to vector<1x8x1xf32>
      %cst_46 = arith.constant dense<0.000000e+00> : vector<1xf32>
      %92 = vector.multi_reduction <add>, %91, %cst_46 [1, 2] : vector<1x8x1xf32> to vector<1xf32>
      %93 = vector.shape_cast %92 : vector<1xf32> to vector<1x1x1xf32>
      %94 = vector.extract %93[0, 0, 0] : f32 from vector<1x1x1xf32>
      %95 = tpu.iota {dimensions = array<i32: 2>} : vector<1x8x128xi32>
      %c0_i32_47 = arith.constant 0 : i32
      %96 = vector.broadcast %c0_i32_47 : i32 to vector<1x8x128xi32>
      %97 = arith.cmpi eq, %95, %96 : vector<1x8x128xi32>
      %c1_i32 = arith.constant 1 : i32
      %98 = vector.broadcast %c1_i32 : i32 to vector<1x8x128xi32>
      %99 = arith.cmpi eq, %95, %98 : vector<1x8x128xi32>
      %c2_i32 = arith.constant 2 : i32
      %100 = vector.broadcast %c2_i32 : i32 to vector<1x8x128xi32>
      %101 = arith.cmpi eq, %95, %100 : vector<1x8x128xi32>
      %cst_48 = arith.constant 0.000000e+00 : f32
      %102 = vector.broadcast %94 : f32 to vector<1x8x128xf32>
      %103 = vector.broadcast %cst_48 : f32 to vector<1x8x128xf32>
      %104 = arith.select %101, %102, %103 : vector<1x8x128xi1>, vector<1x8x128xf32>
      %105 = vector.broadcast %89 : f32 to vector<1x8x128xf32>
      %106 = arith.select %99, %105, %104 : vector<1x8x128xi1>, vector<1x8x128xf32>
      %107 = vector.broadcast %84 : f32 to vector<1x8x128xf32>
      %108 = arith.select %97, %107, %106 : vector<1x8x128xi1>, vector<1x8x128xf32>
      %c0_49 = arith.constant 0 : index
      %c0_50 = arith.constant 0 : index
      %c0_51 = arith.constant 0 : index
      %109 = vector.load %arg4[%c0_49, %c0_50, %c0_51] : memref<1x8x128xf32, #tpu.memory_space<vmem>>, vector<1x8x128xf32>
      tpu.vector_store %arg4[%c0_49, %c0_50, %c0_51], %108 {strides = array<i32>} : memref<1x8x128xf32, #tpu.memory_space<vmem>>, vector<1x8x128xf32>,
    } else {
    }
    return
  }
  func.func @transform_0(%arg0: i32, %arg1: i32) -> (i32, i32) {
    %c1_i32 = arith.constant 1 : i32
    %0 = arith.muli %arg0, %c1_i32 : i32
    %1 = arith.addi %0, %arg1 : i32
    %c0_i32 = arith.constant 0 : i32
    %c0_i32_0 = arith.constant 0 : i32
    return %1, %c0_i32 : i32, i32
  }
  func.func @transform_1(%arg0: i32, %arg1: i32) -> (i32, i32) {
    %c1_i32 = arith.constant 1 : i32
    %0 = arith.muli %arg0, %c1_i32 : i32
    %1 = arith.addi %0, %arg1 : i32
    %c0_i32 = arith.constant 0 : i32
    %c0_i32_0 = arith.constant 0 : i32
    return %1, %c0_i32 : i32, i32
  }
  func.func @transform_2(%arg0: i32, %arg1: i32) -> (i32, i32, i32) {
    %c0_i32 = arith.constant 0 : i32
    %c0_i32_0 = arith.constant 0 : i32
    %c0_i32_1 = arith.constant 0 : i32
    return %arg0, %c0_i32, %c0_i32_0 : i32, i32, i32
  }
}

</mosaic_0001>

<llo_original>
// kernel: tpu_custom_call.1
$region0: #{tpu_custom_call.1}
  #allocation0 [shape = 'u32[]', space=smem, size = 0x4, offset = 0x4, fixed_abs, tag = 'smem constant byte address 0x4 - core index']
  #allocation1 [shape = 'u32[144,128]{1,0:T(1,128)}', space=vmem, size = 0x12000, scoped, tag = 'internal scratch']
  #allocation2 [shape = 'f32[8,1]{1,0:T(8,128)}', space=vmem, size = 0x1000, scoped, tag = 'scratch operand']
  #allocation3 [shape = 'f32[8,1]{1,0:T(8,128)}', space=vmem, size = 0x1000, scoped, tag = 'scratch operand']
  #allocation4 [shape = 'f32[8,1]{1,0:T(8,128)}', space=vmem, size = 0x1000, scoped, tag = 'scratch operand']
  %s0 = inlined_call_operand.hbm [shape: f32[8,256], index: 0, kind: input, shape index: {}]
  %s1 = inlined_call_operand.hbm [shape: f32[8,256], index: 1, kind: input, shape index: {}]
  %s2 = inlined_call_operand.hbm [shape: f32[1,8,128], index: 2, kind: output, shape index: {}]
  %s3 = sld [smem:[#allocation0]]
  $region34: #{tpu_custom_call.1} parent=0
    _
  %s5 = ssub.s32 1, %s3
  %s6 = scalar_select 0, %s5, %s3
  $region1: #{tpu_custom_call.1} parent=0
    #allocation5 [shape = 'u8[8192]{0}', space=vmem, size = 0x2000, scoped, tag = 'input window, operand 0, single buffered']
    #allocation6 [shape = 's32[1]{0}', space=sflag, size = 0x4, scoped, tag = 'scoped memory for tpu_custom_call.1']
    #allocation7 [shape = 's32[1]{0}', space=sflag, size = 0x4, scoped, tag = 'scoped memory for tpu_custom_call.1']
    #allocation8 [shape = 'u8[8192]{0}', space=vmem, size = 0x2000, scoped, tag = 'input window, operand 1, single buffered']
    #allocation9 [shape = 's32[1]{0}', space=sflag, size = 0x4, scoped, tag = 'scoped memory for tpu_custom_call.1']
    #allocation10 [shape = 'u8[4096]{0}', space=vmem, size = 0x1000, scoped, tag = 'output window, operand 0, single buffered']
    %7 = vsyncpa [#allocation6], 0
    %8 = vsyncpa [#allocation9], 0
    %9 = vsyncpa [#allocation7], 0
    // Predicated region
    $region2: #{tpu_custom_call.1} parent=1 // pred_check
      _
    $region3: #{tpu_custom_call.1} parent=1 // pred_check_branch
      %11 = sbr.rel (0) target = $region5
    $region4: #{tpu_custom_call.1} parent=1 // pred_region
      %s12 = sadd.s32 0, 0
      %s14 = ssub.s32 256, 256
      %15 = vsyncadd [#allocation6], %s14
      %s16 = smul.addr %s12, 2
      %s17 = smul.addr %s16, 128
      %s18 = scalar_lea.hbm %s0, %s17
      %s20 = sshll.u32 [#allocation5], 4
      %s21 = int_to_ptr.vmem [resolvable:$true] %s20
      %23 = dma.hbm_to_vmem [thread:$0]  %s18, 256, %s21, [#allocation6]
    $region5: #{tpu_custom_call.1} parent=1 // pred_fallthru
      _
    // Predicated region
    $region6: #{tpu_custom_call.1} parent=1 // pred_check
      _
    $region7: #{tpu_custom_call.1} parent=1 // pred_check_branch
      %25 = sbr.rel (0) target = $region9
    $region8: #{tpu_custom_call.1} parent=1 // pred_region
      %s26 = sadd.s32 0, 0
      %s28 = ssub.s32 256, 256
      %29 = vsyncadd [#allocation9], %s28
      %s30 = smul.addr %s26, 2
      %s31 = smul.addr %s30, 128
      %s32 = scalar_lea.hbm %s1, %s31
      %s34 = sshll.u32 [#allocation8], 4
      %s35 = int_to_ptr.vmem [resolvable:$true] %s34
      %37 = dma.hbm_to_vmem [thread:$0]  %s32, 256, %s35, [#allocation9]
    $region9: #{tpu_custom_call.1} parent=1 // pred_fallthru
      _
    // Predicated region
    $region10: #{tpu_custom_call.1} parent=1 // pred_check
      _
    $region11: #{tpu_custom_call.1} parent=1 // pred_check_branch
      %39 = sbr.rel (0) target = $region13
    $region12: #{tpu_custom_call.1} parent=1 // pred_region
      %40 = dma.done [#allocation6], 256
    $region13: #{tpu_custom_call.1} parent=1 // pred_fallthru
      _
    // Predicated region
    $region14: #{tpu_custom_call.1} parent=1 // pred_check
      _
    $region15: #{tpu_custom_call.1} parent=1 // pred_check_branch
      %42 = sbr.rel (0) target = $region17
    $region16: #{tpu_custom_call.1} parent=1 // pred_region
      %43 = dma.done [#allocation9], 256
    $region17: #{tpu_custom_call.1} parent=1 // pred_fallthru
      _
    %s44 = sadd.s32 0, 0
    %s45 = sadd.s32 0, 0
    %p46 = scmp.eq.s32.totalorder 0, 0
    // Predicated region
    $region18: #{tpu_custom_call.1} parent=1 // pred_check
      %p47 = pneg %p46
    $region19: #{tpu_custom_call.1} parent=1 // pred_check_branch
      %49 = sbr.rel (%p47) target = $region21
    $region20: #{tpu_custom_call.1} parent=1 // pred_region
      %vm50 = vcmask 7168
      %51 = vst.msk [vmem:[#allocation2] sm:$0xff] %vm50, 0.0
      %52 = vst.msk [vmem:[#allocation3] sm:$0xff] %vm50, 0.0
      %53 = vst.msk [vmem:[#allocation4] sm:$0xff] %vm50, 0.0
    $region21: #{tpu_custom_call.1} parent=1 // pred_fallthru
      _
    %v54 = vld [vmem:[#allocation5] sm:$0xff]
    %v55 = vld [vmem:[#allocation5 + $0x8] sm:$0xff]
    %v56 = vld [vmem:[#allocation8] sm:$0xff]
    %v57 = vld [vmem:[#allocation8 + $0x8] sm:$0xff]
    %58 = vmatprep.subr.mxu0 0.0
    %59 = vmatpush1.msra.mxu0 1.0
    %60 = vmatprep.subr.mxu0 0.0
    %61 = vmatpush1.msra.mxu0 1.0
    %62 = vmatprep.subr.mxu0 0.0
    %63 = vmatpush1.msra.mxu0 1.0
    %64 = vmatprep.subr.mxu0 0.0
    %65 = vmatpush1.msra.mxu0 1.0
    %66 = vmatprep.subr.mxu0 0.0
    %67 = vmatpush1.msra.mxu0 1.0
    %68 = vmatprep.subr.mxu0 0.0
    %69 = vmatpush1.msra.mxu0 1.0
    %70 = vmatprep.subr.mxu0 0.0
    %71 = vmatpush1.msra.mxu0 1.0
    %72 = vmatprep.subr.mxu0 0.0
    %73 = vmatpush1.msra.mxu0 1.0
    %74 = vmatprep.subr.mxu0 0.0
    %75 = vmatpush1.msra.mxu0 1.0
    %76 = vmatprep.subr.mxu0 0.0
    %77 = vmatpush1.msra.mxu0 1.0
    %78 = vmatprep.subr.mxu0 0.0
    %79 = vmatpush1.msra.mxu0 1.0
    %80 = vmatprep.subr.mxu0 0.0
    %81 = vmatpush1.msra.mxu0 1.0
    %82 = vmatprep.subr.mxu0 0.0
    %83 = vmatpush1.msra.mxu0 1.0
    %84 = vmatprep.subr.mxu0 0.0
    %85 = vmatpush1.msra.mxu0 1.0
    %86 = vmatprep.subr.mxu0 0.0
    %87 = vmatpush1.msra.mxu0 1.0
    %88 = vmatprep.subr.mxu0 0.0
    %89 = vmatpush1.msra.mxu0 1.0
    %90 = vmatprep.subr.mxu0 0.0
    %91 = vmatpush1.msra.mxu0 1.0
    %92 = vmatprep.subr.mxu0 0.0
    %93 = vmatpush1.msra.mxu0 1.0
    %94 = vmatprep.subr.mxu0 0.0
    %95 = vmatpush1.msra.mxu0 1.0
    %96 = vmatprep.subr.mxu0 0.0
    %97 = vmatpush1.msra.mxu0 1.0
    %98 = vmatprep.subr.mxu0 0.0
    %99 = vmatpush1.msra.mxu0 1.0
    %100 = vmatprep.subr.mxu0 0.0
    %101 = vmatpush1.msra.mxu0 1.0
    %102 = vmatprep.subr.mxu0 0.0
    %103 = vmatpush1.msra.mxu0 1.0
    %104 = vmatprep.subr.mxu0 0.0
    %105 = vmatpush1.msra.mxu0 1.0
    %106 = vmatprep.subr.mxu0 0.0
    %107 = vmatpush1.msra.mxu0 1.0
    %108 = vmatprep.subr.mxu0 0.0
    %109 = vmatpush1.msra.mxu0 1.0
    %110 = vmatprep.subr.mxu0 0.0
    %111 = vmatpush1.msra.mxu0 1.0
    %112 = vmatprep.subr.mxu0 0.0
    %113 = vmatpush1.msra.mxu0 1.0
    %114 = vmatprep.subr.mxu0 0.0
    %115 = vmatpush1.msra.mxu0 1.0
    %116 = vmatprep.subr.mxu0 0.0
    %117 = vmatpush1.msra.mxu0 1.0
    %118 = vmatprep.subr.mxu0 0.0
    %119 = vmatpush1.msra.mxu0 1.0
    %120 = vmatprep.subr.mxu0 0.0
    %121 = vmatpush1.msra.mxu0 1.0
    %v122 = vand.u32 %v57, 4294901760
    %v123 = vsub.f32 %v57, %v122
    %v124 = vand.u32 %v123, 4294901760
    %v125 = vsub.f32 %v123, %v124
    %v126 = vand.u32 %v125, 4294901760
    %127 = vmatprep.mubr.f32.mxu0 %v126
    %v128 = vand.u32 %v56, 4294901760
    %v129 = vsub.f32 %v56, %v128
    %v130 = vand.u32 %v129, 4294901760
    %v131 = vsub.f32 %v129, %v130
    %v132 = vand.u32 %v131, 4294901760
    %133 = vmatmul.mubr.f32.gmra.mrb[0].mxu0 %v132
    %v134 = vpop.f32.mrb[0].mxu0
    %v135 = vadd.f32 0.0, %v134
    %v136 = vpop.f32.mrb[0].mxu0
    %137 = vdwg.mxu0
    %138 = vmatprep.subr.mxu0 0.0
    %139 = vmatpush1.msra.mxu0 0.0
    %140 = vmatprep.subr.mxu0 0.0
    %141 = vmatpush1.msra.mxu0 0.0
    %142 = vmatprep.subr.mxu0 0.0
    %143 = vmatpush1.msra.mxu0 0.0
    %144 = vmatprep.subr.mxu0 0.0
    %145 = vmatpush1.msra.mxu0 0.0
    %146 = vmatprep.subr.mxu0 0.0
    %147 = vmatpush1.msra.mxu0 0.0
    %148 = vmatprep.subr.mxu0 0.0
    %149 = vmatpush1.msra.mxu0 0.0
    %150 = vmatprep.subr.mxu0 0.0
    %151 = vmatpush1.msra.mxu0 0.0
    %152 = vmatprep.subr.mxu0 0.0
    %153 = vmatpush1.msra.mxu0 0.0
    %154 = vmatprep.subr.mxu0 0.0
    %155 = vmatpush1.msra.mxu0 0.0
    %156 = vmatprep.subr.mxu0 0.0
    %157 = vmatpush1.msra.mxu0 0.0
    %158 = vmatprep.subr.mxu0 0.0
    %159 = vmatpush1.msra.mxu0 0.0
    %160 = vmatprep.subr.mxu0 0.0
    %161 = vmatpush1.msra.mxu0 0.0
    %162 = vmatprep.subr.mxu0 0.0
    %163 = vmatpush1.msra.mxu0 0.0
    %164 = vmatprep.subr.mxu0 0.0
    %165 = vmatpush1.msra.mxu0 0.0
    %166 = vmatprep.subr.mxu0 0.0
    %167 = vmatpush1.msra.mxu0 0.0
    %168 = vmatprep.subr.mxu0 0.0
    %169 = vmatpush1.msra.mxu0 0.0
    %170 = vmatprep.subr.mxu0 0.0
    %171 = vmatpush1.msra.mxu0 0.0
    %172 = vmatprep.subr.mxu0 0.0
    %173 = vmatpush1.msra.mxu0 0.0
    %174 = vmatprep.subr.mxu0 0.0
    %175 = vmatpush1.msra.mxu0 0.0
    %176 = vmatprep.subr.mxu0 0.0
    %177 = vmatpush1.msra.mxu0 0.0
    %178 = vmatprep.subr.mxu0 0.0
    %179 = vmatpush1.msra.mxu0 0.0
    %180 = vmatprep.subr.mxu0 0.0
    %181 = vmatpush1.msra.mxu0 0.0
    %182 = vmatprep.subr.mxu0 0.0
    %183 = vmatpush1.msra.mxu0 0.0
    %184 = vmatprep.subr.mxu0 0.0
    %185 = vmatpush1.msra.mxu0 0.0
    %186 = vmatprep.subr.mxu0 0.0
    %187 = vmatpush1.msra.mxu0 0.0
    %188 = vmatprep.subr.mxu0 0.0
    %189 = vmatpush1.msra.mxu0 0.0
    %190 = vmatprep.subr.mxu0 0.0
    %191 = vmatpush1.msra.mxu0 0.0
    %192 = vmatprep.subr.mxu0 0.0
    %193 = vmatpush1.msra.mxu0 0.0
    %194 = vmatprep.subr.mxu0 0.0
    %195 = vmatpush1.msra.mxu0 0.0
    %196 = vmatprep.subr.mxu0 0.0
    %197 = vmatpush1.msra.mxu0 0.0
    %198 = vmatprep.subr.mxu0 0.0
    %199 = vmatpush1.msra.mxu0 0.0
    %200 = vmatprep.subr.mxu0 0.0
    %201 = vmatpush1.msra.mxu0 0.0
    %v202 = vand.u32 %v57, 4294901760
    %203 = vmatprep.mubr.f32.mxu0 %v202
    %v204 = vand.u32 %v56, 4294901760
    %205 = vmatmul.mubr.f32.gmra.mrb[0].mxu0 %v204
    %v206 = vpop.f32.mrb[0].mxu0
    %v207 = vadd.f32 %v135, %v206
    %v208 = vpop.f32.mrb[0].mxu0
    %209 = vdwg.mxu0
    %210 = vmatprep.subr.mxu0 0.0
    %211 = vmatpush1.msra.mxu0 0.0
    %212 = vmatprep.subr.mxu0 0.0
    %213 = vmatpush1.msra.mxu0 0.0
    %214 = vmatprep.subr.mxu0 0.0
    %215 = vmatpush1.msra.mxu0 0.0
    %216 = vmatprep.subr.mxu0 0.0
    %217 = vmatpush1.msra.mxu0 0.0
    %218 = vmatprep.subr.mxu0 0.0
    %219 = vmatpush1.msra.mxu0 0.0
    %220 = vmatprep.subr.mxu0 0.0
    %221 = vmatpush1.msra.mxu0 0.0
    %222 = vmatprep.subr.mxu0 0.0
    %223 = vmatpush1.msra.mxu0 0.0
    %224 = vmatprep.subr.mxu0 0.0
    %225 = vmatpush1.msra.mxu0 0.0
    %226 = vmatprep.subr.mxu0 0.0
    %227 = vmatpush1.msra.mxu0 0.0
    %228 = vmatprep.subr.mxu0 0.0
    %229 = vmatpush1.msra.mxu0 0.0
    %230 = vmatprep.subr.mxu0 0.0
    %231 = vmatpush1.msra.mxu0 0.0
    %232 = vmatprep.subr.mxu0 0.0
    %233 = vmatpush1.msra.mxu0 0.0
    %234 = vmatprep.subr.mxu0 0.0
    %235 = vmatpush1.msra.mxu0 0.0
    %236 = vmatprep.subr.mxu0 0.0
    %237 = vmatpush1.msra.mxu0 0.0
    %238 = vmatprep.subr.mxu0 0.0
    %239 = vmatpush1.msra.mxu0 0.0
    %240 = vmatprep.subr.mxu0 0.0
    %241 = vmatpush1.msra.mxu0 0.0
    %242 = vmatprep.subr.mxu0 0.0
    %243 = vmatpush1.msra.mxu0 0.0
    %244 = vmatprep.subr.mxu0 0.0
    %245 = vmatpush1.msra.mxu0 0.0
    %246 = vmatprep.subr.mxu0 0.0
    %247 = vmatpush1.msra.mxu0 0.0
    %248 = vmatprep.subr.mxu0 0.0
    %249 = vmatpush1.msra.mxu0 0.0
    %250 = vmatprep.subr.mxu0 0.0
    %251 = vmatpush1.msra.mxu0 0.0
    %252 = vmatprep.subr.mxu0 0.0
    %253 = vmatpush1.msra.mxu0 0.0
    %254 = vmatprep.subr.mxu0 0.0
    %255 = vmatpush1.msra.mxu0 0.0
    %256 = vmatprep.subr.mxu0 0.0
    %257 = vmatpush1.msra.mxu0 0.0
    %258 = vmatprep.subr.mxu0 0.0
    %259 = vmatpush1.msra.mxu0 0.0
    %260 = vmatprep.subr.mxu0 0.0
    %261 = vmatpush1.msra.mxu0 0.0
    %262 = vmatprep.subr.mxu0 0.0
    %263 = vmatpush1.msra.mxu0 0.0
    %264 = vmatprep.subr.mxu0 0.0
    %265 = vmatpush1.msra.mxu0 0.0
    %266 = vmatprep.subr.mxu0 0.0
    %267 = vmatpush1.msra.mxu0 0.0
    %268 = vmatprep.subr.mxu0 0.0
    %269 = vmatpush1.msra.mxu0 0.0
    %270 = vmatprep.subr.mxu0 0.0
    %271 = vmatpush1.msra.mxu0 0.0
    %272 = vmatprep.subr.mxu0 0.0
    %273 = vmatpush1.msra.mxu0 0.0
    %v274 = vand.u32 %v57, 4294901760
    %v275 = vsub.f32 %v57, %v274
    %276 = vmatprep.mubr.f32.mxu0 %v275
    %v277 = vand.u32 %v56, 4294901760
    %v278 = vsub.f32 %v56, %v277
    %279 = vmatmul.mubr.f32.gmra.mrb[0].mxu0 %v278
    %v280 = vpop.f32.mrb[0].mxu0
    %v281 = vadd.f32 %v207, %v280
    %v282 = vpop.f32.mrb[0].mxu0
    %283 = vdwg.mxu0
    %284 = vmatprep.subr.mxu0 0.0
    %285 = vmatpush1.msra.mxu0 1.0
    %286 = vmatprep.subr.mxu0 0.0
    %287 = vmatpush1.msra.mxu0 1.0
    %288 = vmatprep.subr.mxu0 0.0
    %289 = vmatpush1.msra.mxu0 1.0
    %290 = vmatprep.subr.mxu0 0.0
    %291 = vmatpush1.msra.mxu0 1.0
    %292 = vmatprep.subr.mxu0 0.0
    %293 = vmatpush1.msra.mxu0 1.0
    %294 = vmatprep.subr.mxu0 0.0
    %295 = vmatpush1.msra.mxu0 1.0
    %296 = vmatprep.subr.mxu0 0.0
    %297 = vmatpush1.msra.mxu0 1.0
    %298 = vmatprep.subr.mxu0 0.0
    %299 = vmatpush1.msra.mxu0 1.0
    %300 = vmatprep.subr.mxu0 0.0
    %301 = vmatpush1.msra.mxu0 1.0
    %302 = vmatprep.subr.mxu0 0.0
    %303 = vmatpush1.msra.mxu0 1.0
    %304 = vmatprep.subr.mxu0 0.0
    %305 = vmatpush1.msra.mxu0 1.0
    %306 = vmatprep.subr.mxu0 0.0
    %307 = vmatpush1.msra.mxu0 1.0
    %308 = vmatprep.subr.mxu0 0.0
    %309 = vmatpush1.msra.mxu0 1.0
    %310 = vmatprep.subr.mxu0 0.0
    %311 = vmatpush1.msra.mxu0 1.0
    %312 = vmatprep.subr.mxu0 0.0
    %313 = vmatpush1.msra.mxu0 1.0
    %314 = vmatprep.subr.mxu0 0.0
    %315 = vmatpush1.msra.mxu0 1.0
    %316 = vmatprep.subr.mxu0 0.0
    %317 = vmatpush1.msra.mxu0 1.0
    %318 = vmatprep.subr.mxu0 0.0
    %319 = vmatpush1.msra.mxu0 1.0
    %320 = vmatprep.subr.mxu0 0.0
    %321 = vmatpush1.msra.mxu0 1.0
    %322 = vmatprep.subr.mxu0 0.0
    %323 = vmatpush1.msra.mxu0 1.0
    %324 = vmatprep.subr.mxu0 0.0
    %325 = vmatpush1.msra.mxu0 1.0
    %326 = vmatprep.subr.mxu0 0.0
    %327 = vmatpush1.msra.mxu0 1.0
    %328 = vmatprep.subr.mxu0 0.0
    %329 = vmatpush1.msra.mxu0 1.0
    %330 = vmatprep.subr.mxu0 0.0
    %331 = vmatpush1.msra.mxu0 1.0
    %332 = vmatprep.subr.mxu0 0.0
    %333 = vmatpush1.msra.mxu0 1.0
    %334 = vmatprep.subr.mxu0 0.0
    %335 = vmatpush1.msra.mxu0 1.0
    %336 = vmatprep.subr.mxu0 0.0
    %337 = vmatpush1.msra.mxu0 1.0
    %338 = vmatprep.subr.mxu0 0.0
    %339 = vmatpush1.msra.mxu0 1.0
    %340 = vmatprep.subr.mxu0 0.0
    %341 = vmatpush1.msra.mxu0 1.0
    %342 = vmatprep.subr.mxu0 0.0
    %343 = vmatpush1.msra.mxu0 1.0
    %344 = vmatprep.subr.mxu0 0.0
    %345 = vmatpush1.msra.mxu0 1.0
    %346 = vmatprep.subr.mxu0 0.0
    %347 = vmatpush1.msra.mxu0 1.0
    %v348 = vand.u32 %v57, 4294901760
    %v349 = vsub.f32 %v57, %v348
    %v350 = vand.u32 %v349, 4294901760
    %351 = vmatprep.mubr.f32.mxu0 %v350
    %v352 = vand.u32 %v56, 4294901760
    %v353 = vsub.f32 %v56, %v352
    %v354 = vand.u32 %v353, 4294901760
    %355 = vmatmul.mubr.f32.gmra.mrb[0].mxu0 %v354
    %v356 = vpop.f32.mrb[0].mxu0
    %v357 = vadd.f32 %v281, %v356
    %v358 = vpop.f32.mrb[0].mxu0
    %359 = vdwg.mxu0
    %360 = vmatprep.subr.mxu0 0.0
    %361 = vmatpush1.msra.mxu0 0.0
    %362 = vmatprep.subr.mxu0 0.0
    %363 = vmatpush1.msra.mxu0 0.0
    %364 = vmatprep.subr.mxu0 0.0
    %365 = vmatpush1.msra.mxu0 0.0
    %366 = vmatprep.subr.mxu0 0.0
    %367 = vmatpush1.msra.mxu0 0.0
    %368 = vmatprep.subr.mxu0 0.0
    %369 = vmatpush1.msra.mxu0 0.0
    %370 = vmatprep.subr.mxu0 0.0
    %371 = vmatpush1.msra.mxu0 0.0
    %372 = vmatprep.subr.mxu0 0.0
    %373 = vmatpush1.msra.mxu0 0.0
    %374 = vmatprep.subr.mxu0 0.0
    %375 = vmatpush1.msra.mxu0 0.0
    %376 = vmatprep.subr.mxu0 0.0
    %377 = vmatpush1.msra.mxu0 0.0
    %378 = vmatprep.subr.mxu0 0.0
    %379 = vmatpush1.msra.mxu0 0.0
    %380 = vmatprep.subr.mxu0 0.0
    %381 = vmatpush1.msra.mxu0 0.0
    %382 = vmatprep.subr.mxu0 0.0
    %383 = vmatpush1.msra.mxu0 0.0
    %384 = vmatprep.subr.mxu0 0.0
    %385 = vmatpush1.msra.mxu0 0.0
    %386 = vmatprep.subr.mxu0 0.0
    %387 = vmatpush1.msra.mxu0 0.0
    %388 = vmatprep.subr.mxu0 0.0
    %389 = vmatpush1.msra.mxu0 0.0
    %390 = vmatprep.subr.mxu0 0.0
    %391 = vmatpush1.msra.mxu0 0.0
    %392 = vmatprep.subr.mxu0 0.0
    %393 = vmatpush1.msra.mxu0 0.0
    %394 = vmatprep.subr.mxu0 0.0
    %395 = vmatpush1.msra.mxu0 0.0
    %396 = vmatprep.subr.mxu0 0.0
    %397 = vmatpush1.msra.mxu0 0.0
    %398 = vmatprep.subr.mxu0 0.0
    %399 = vmatpush1.msra.mxu0 0.0
    %400 = vmatprep.subr.mxu0 0.0
    %401 = vmatpush1.msra.mxu0 0.0
    %402 = vmatprep.subr.mxu0 0.0
    %403 = vmatpush1.msra.mxu0 0.0
    %404 = vmatprep.subr.mxu0 0.0
    %405 = vmatpush1.msra.mxu0 0.0
    %406 = vmatprep.subr.mxu0 0.0
    %407 = vmatpush1.msra.mxu0 0.0
    %408 = vmatprep.subr.mxu0 0.0
    %409 = vmatpush1.msra.mxu0 0.0
    %410 = vmatprep.subr.mxu0 0.0
    %411 = vmatpush1.msra.mxu0 0.0
    %412 = vmatprep.subr.mxu0 0.0
    %413 = vmatpush1.msra.mxu0 0.0
    %414 = vmatprep.subr.mxu0 0.0
    %415 = vmatpush1.msra.mxu0 0.0
    %416 = vmatprep.subr.mxu0 0.0
    %417 = vmatpush1.msra.mxu0 0.0
    %418 = vmatprep.subr.mxu0 0.0
    %419 = vmatpush1.msra.mxu0 0.0
    %420 = vmatprep.subr.mxu0 0.0
    %421 = vmatpush1.msra.mxu0 0.0
    %422 = vmatprep.subr.mxu0 0.0
    %423 = vmatpush1.msra.mxu0 0.0
    %v424 = vand.u32 %v57, 4294901760
    %425 = vmatprep.mubr.f32.mxu0 %v424
    %v426 = vand.u32 %v56, 4294901760
    %427 = vmatmul.mubr.f32.gmra.mrb[0].mxu0 %v426
    %v428 = vpop.f32.mrb[0].mxu0
    %v429 = vadd.f32 %v357, %v428
    %v430 = vpop.f32.mrb[0].mxu0
    %431 = vdwg.mxu0
    %432 = vmatprep.subr.mxu0 0.0
    %433 = vmatpush1.msra.mxu0 1.0
    %434 = vmatprep.subr.mxu0 0.0
    %435 = vmatpush1.msra.mxu0 1.0
    %436 = vmatprep.subr.mxu0 0.0
    %437 = vmatpush1.msra.mxu0 1.0
    %438 = vmatprep.subr.mxu0 0.0
    %439 = vmatpush1.msra.mxu0 1.0
    %440 = vmatprep.subr.mxu0 0.0
    %441 = vmatpush1.msra.mxu0 1.0
    %442 = vmatprep.subr.mxu0 0.0
    %443 = vmatpush1.msra.mxu0 1.0
    %444 = vmatprep.subr.mxu0 0.0
    %445 = vmatpush1.msra.mxu0 1.0
    %446 = vmatprep.subr.mxu0 0.0
    %447 = vmatpush1.msra.mxu0 1.0
    %448 = vmatprep.subr.mxu0 0.0
    %449 = vmatpush1.msra.mxu0 1.0
    %450 = vmatprep.subr.mxu0 0.0
    %451 = vmatpush1.msra.mxu0 1.0
    %452 = vmatprep.subr.mxu0 0.0
    %453 = vmatpush1.msra.mxu0 1.0
    %454 = vmatprep.subr.mxu0 0.0
    %455 = vmatpush1.msra.mxu0 1.0
    %456 = vmatprep.subr.mxu0 0.0
    %457 = vmatpush1.msra.mxu0 1.0
    %458 = vmatprep.subr.mxu0 0.0
    %459 = vmatpush1.msra.mxu0 1.0
    %460 = vmatprep.subr.mxu0 0.0
    %461 = vmatpush1.msra.mxu0 1.0
    %462 = vmatprep.subr.mxu0 0.0
    %463 = vmatpush1.msra.mxu0 1.0
    %464 = vmatprep.subr.mxu0 0.0
    %465 = vmatpush1.msra.mxu0 1.0
    %466 = vmatprep.subr.mxu0 0.0
    %467 = vmatpush1.msra.mxu0 1.0
    %468 = vmatprep.subr.mxu0 0.0
    %469 = vmatpush1.msra.mxu0 1.0
    %470 = vmatprep.subr.mxu0 0.0
    %471 = vmatpush1.msra.mxu0 1.0
    %472 = vmatprep.subr.mxu0 0.0
    %473 = vmatpush1.msra.mxu0 1.0
    %474 = vmatprep.subr.mxu0 0.0
    %475 = vmatpush1.msra.mxu0 1.0
    %476 = vmatprep.subr.mxu0 0.0
    %477 = vmatpush1.msra.mxu0 1.0
    %478 = vmatprep.subr.mxu0 0.0
    %479 = vmatpush1.msra.mxu0 1.0
    %480 = vmatprep.subr.mxu0 0.0
    %481 = vmatpush1.msra.mxu0 1.0
    %482 = vmatprep.subr.mxu0 0.0
    %483 = vmatpush1.msra.mxu0 1.0
    %484 = vmatprep.subr.mxu0 0.0
    %485 = vmatpush1.msra.mxu0 1.0
    %486 = vmatprep.subr.mxu0 0.0
    %487 = vmatpush1.msra.mxu0 1.0
    %488 = vmatprep.subr.mxu0 0.0
    %489 = vmatpush1.msra.mxu0 1.0
    %490 = vmatprep.subr.mxu0 0.0
    %491 = vmatpush1.msra.mxu0 1.0
    %492 = vmatprep.subr.mxu0 0.0
    %493 = vmatpush1.msra.mxu0 1.0
    %494 = vmatprep.subr.mxu0 0.0
    %495 = vmatpush1.msra.mxu0 1.0
    %v496 = vand.u32 %v57, 4294901760
    %497 = vmatprep.mubr.f32.mxu0 %v496
    %v498 = vand.u32 %v56, 4294901760
    %499 = vmatmul.mubr.f32.gmra.mrb[0].mxu0 %v498
    %v500 = vpop.f32.mrb[0].mxu0
    %v501 = vadd.f32 %v429, %v500
    %v502 = vpop.f32.mrb[0].mxu0
    %503 = vdwg.mxu0
    %v504 = vmul.f32 %v501, 0.00390625
    %505 = vmatprep.subr.mxu0 0.0
    %506 = vmatpush1.msra.mxu0 1.0
    %507 = vmatprep.subr.mxu0 0.0
    %508 = vmatpush1.msra.mxu0 1.0
    %509 = vmatprep.subr.mxu0 0.0
    %510 = vmatpush1.msra.mxu0 1.0
    %511 = vmatprep.subr.mxu0 0.0
    %512 = vmatpush1.msra.mxu0 1.0
    %513 = vmatprep.subr.mxu0 0.0
    %514 = vmatpush1.msra.mxu0 1.0
    %515 = vmatprep.subr.mxu0 0.0
    %516 = vmatpush1.msra.mxu0 1.0
    %517 = vmatprep.subr.mxu0 0.0
    %518 = vmatpush1.msra.mxu0 1.0
    %519 = vmatprep.subr.mxu0 0.0
    %520 = vmatpush1.msra.mxu0 1.0
    %521 = vmatprep.subr.mxu0 0.0
    %522 = vmatpush1.msra.mxu0 1.0
    %523 = vmatprep.subr.mxu0 0.0
    %524 = vmatpush1.msra.mxu0 1.0
    %525 = vmatprep.subr.mxu0 0.0
    %526 = vmatpush1.msra.mxu0 1.0
    %527 = vmatprep.subr.mxu0 0.0
    %528 = vmatpush1.msra.mxu0 1.0
    %529 = vmatprep.subr.mxu0 0.0
    %530 = vmatpush1.msra.mxu0 1.0
    %531 = vmatprep.subr.mxu0 0.0
    %532 = vmatpush1.msra.mxu0 1.0
    %533 = vmatprep.subr.mxu0 0.0
    %534 = vmatpush1.msra.mxu0 1.0
    %535 = vmatprep.subr.mxu0 0.0
    %536 = vmatpush1.msra.mxu0 1.0
    %537 = vmatprep.subr.mxu0 0.0
    %538 = vmatpush1.msra.mxu0 1.0
    %539 = vmatprep.subr.mxu0 0.0
    %540 = vmatpush1.msra.mxu0 1.0
    %541 = vmatprep.subr.mxu0 0.0
    %542 = vmatpush1.msra.mxu0 1.0
    %543 = vmatprep.subr.mxu0 0.0
    %544 = vmatpush1.msra.mxu0 1.0
    %545 = vmatprep.subr.mxu0 0.0
    %546 = vmatpush1.msra.mxu0 1.0
    %547 = vmatprep.subr.mxu0 0.0
    %548 = vmatpush1.msra.mxu0 1.0
    %549 = vmatprep.subr.mxu0 0.0
    %550 = vmatpush1.msra.mxu0 1.0
    %551 = vmatprep.subr.mxu0 0.0
    %552 = vmatpush1.msra.mxu0 1.0
    %553 = vmatprep.subr.mxu0 0.0
    %554 = vmatpush1.msra.mxu0 1.0
    %555 = vmatprep.subr.mxu0 0.0
    %556 = vmatpush1.msra.mxu0 1.0
    %557 = vmatprep.subr.mxu0 0.0
    %558 = vmatpush1.msra.mxu0 1.0
    %559 = vmatprep.subr.mxu0 0.0
    %560 = vmatpush1.msra.mxu0 1.0
    %561 = vmatprep.subr.mxu0 0.0
    %562 = vmatpush1.msra.mxu0 1.0
    %563 = vmatprep.subr.mxu0 0.0
    %564 = vmatpush1.msra.mxu0 1.0
    %565 = vmatprep.subr.mxu0 0.0
    %566 = vmatpush1.msra.mxu0 1.0
    %567 = vmatprep.subr.mxu0 0.0
    %568 = vmatpush1.msra.mxu0 1.0
    %v569 = vand.u32 %v55, 4294901760
    %v570 = vsub.f32 %v55, %v569
    %v571 = vand.u32 %v570, 4294901760
    %v572 = vsub.f32 %v570, %v571
    %v573 = vand.u32 %v572, 4294901760
    %574 = vmatprep.mubr.f32.mxu0 %v573
    %v575 = vand.u32 %v54, 4294901760
    %v576 = vsub.f32 %v54, %v575
    %v577 = vand.u32 %v576, 4294901760
    %v578 = vsub.f32 %v576, %v577
    %v579 = vand.u32 %v578, 4294901760
    %580 = vmatmul.mubr.f32.gmra.mrb[0].mxu0 %v579
    %v581 = vpop.f32.mrb[0].mxu0
    %v582 = vadd.f32 0.0, %v581
    %v583 = vpop.f32.mrb[0].mxu0
    %584 = vdwg.mxu0
    %585 = vmatprep.subr.mxu0 0.0
    %586 = vmatpush1.msra.mxu0 0.0
    %587 = vmatprep.subr.mxu0 0.0
    %588 = vmatpush1.msra.mxu0 0.0
    %589 = vmatprep.subr.mxu0 0.0
    %590 = vmatpush1.msra.mxu0 0.0
    %591 = vmatprep.subr.mxu0 0.0
    %592 = vmatpush1.msra.mxu0 0.0
    %593 = vmatprep.subr.mxu0 0.0
    %594 = vmatpush1.msra.mxu0 0.0
    %595 = vmatprep.subr.mxu0 0.0
    %596 = vmatpush1.msra.mxu0 0.0
    %597 = vmatprep.subr.mxu0 0.0
    %598 = vmatpush1.msra.mxu0 0.0
    %599 = vmatprep.subr.mxu0 0.0
    %600 = vmatpush1.msra.mxu0 0.0
    %601 = vmatprep.subr.mxu0 0.0
    %602 = vmatpush1.msra.mxu0 0.0
    %603 = vmatprep.subr.mxu0 0.0
    %604 = vmatpush1.msra.mxu0 0.0
    %605 = vmatprep.subr.mxu0 0.0
    %606 = vmatpush1.msra.mxu0 0.0
    %607 = vmatprep.subr.mxu0 0.0
    %608 = vmatpush1.msra.mxu0 0.0
    %609 = vmatprep.subr.mxu0 0.0
    %610 = vmatpush1.msra.mxu0 0.0
    %611 = vmatprep.subr.mxu0 0.0
    %612 = vmatpush1.msra.mxu0 0.0
    %613 = vmatprep.subr.mxu0 0.0
    %614 = vmatpush1.msra.mxu0 0.0
    %615 = vmatprep.subr.mxu0 0.0
    %616 = vmatpush1.msra.mxu0 0.0
    %617 = vmatprep.subr.mxu0 0.0
    %618 = vmatpush1.msra.mxu0 0.0
    %619 = vmatprep.subr.mxu0 0.0
    %620 = vmatpush1.msra.mxu0 0.0
    %621 = vmatprep.subr.mxu0 0.0
    %622 = vmatpush1.msra.mxu0 0.0
    %623 = vmatprep.subr.mxu0 0.0
    %624 = vmatpush1.msra.mxu0 0.0
    %625 = vmatprep.subr.mxu0 0.0
    %626 = vmatpush1.msra.mxu0 0.0
    %627 = vmatprep.subr.mxu0 0.0
    %628 = vmatpush1.msra.mxu0 0.0
    %629 = vmatprep.subr.mxu0 0.0
    %630 = vmatpush1.msra.mxu0 0.0
    %631 = vmatprep.subr.mxu0 0.0
    %632 = vmatpush1.msra.mxu0 0.0
    %633 = vmatprep.subr.mxu0 0.0
    %634 = vmatpush1.msra.mxu0 0.0
    %635 = vmatprep.subr.mxu0 0.0
    %636 = vmatpush1.msra.mxu0 0.0
    %637 = vmatprep.subr.mxu0 0.0
    %638 = vmatpush1.msra.mxu0 0.0
    %639 = vmatprep.subr.mxu0 0.0
    %640 = vmatpush1.msra.mxu0 0.0
    %641 = vmatprep.subr.mxu0 0.0
    %642 = vmatpush1.msra.mxu0 0.0
    %643 = vmatprep.subr.mxu0 0.0
    %644 = vmatpush1.msra.mxu0 0.0
    %645 = vmatprep.subr.mxu0 0.0
    %646 = vmatpush1.msra.mxu0 0.0
    %647 = vmatprep.subr.mxu0 0.0
    %648 = vmatpush1.msra.mxu0 0.0
    %v649 = vand.u32 %v55, 4294901760
    %650 = vmatprep.mubr.f32.mxu0 %v649
    %v651 = vand.u32 %v54, 4294901760
    %652 = vmatmul.mubr.f32.gmra.mrb[0].mxu0 %v651
    %v653 = vpop.f32.mrb[0].mxu0
    %v654 = vadd.f32 %v582, %v653
    %v655 = vpop.f32.mrb[0].mxu0
    %656 = vdwg.mxu0
    %657 = vmatprep.subr.mxu0 0.0
    %658 = vmatpush1.msra.mxu0 0.0
    %659 = vmatprep.subr.mxu0 0.0
    %660 = vmatpush1.msra.mxu0 0.0
    %661 = vmatprep.subr.mxu0 0.0
    %662 = vmatpush1.msra.mxu0 0.0
    %663 = vmatprep.subr.mxu0 0.0
    %664 = vmatpush1.msra.mxu0 0.0
    %665 = vmatprep.subr.mxu0 0.0
    %666 = vmatpush1.msra.mxu0 0.0
    %667 = vmatprep.subr.mxu0 0.0
    %668 = vmatpush1.msra.mxu0 0.0
    %669 = vmatprep.subr.mxu0 0.0
    %670 = vmatpush1.msra.mxu0 0.0
    %671 = vmatprep.subr.mxu0 0.0
    %672 = vmatpush1.msra.mxu0 0.0
    %673 = vmatprep.subr.mxu0 0.0
    %674 = vmatpush1.msra.mxu0 0.0
    %675 = vmatprep.subr.mxu0 0.0
    %676 = vmatpush1.msra.mxu0 0.0
    %677 = vmatprep.subr.mxu0 0.0
    %678 = vmatpush1.msra.mxu0 0.0
    %679 = vmatprep.subr.mxu0 0.0
    %680 = vmatpush1.msra.mxu0 0.0
    %681 = vmatprep.subr.mxu0 0.0
    %682 = vmatpush1.msra.mxu0 0.0
    %683 = vmatprep.subr.mxu0 0.0
    %684 = vmatpush1.msra.mxu0 0.0
    %685 = vmatprep.subr.mxu0 0.0
    %686 = vmatpush1.msra.mxu0 0.0
    %687 = vmatprep.subr.mxu0 0.0
    %688 = vmatpush1.msra.mxu0 0.0
    %689 = vmatprep.subr.mxu0 0.0
    %690 = vmatpush1.msra.mxu0 0.0
    %691 = vmatprep.subr.mxu0 0.0
    %692 = vmatpush1.msra.mxu0 0.0
    %693 = vmatprep.subr.mxu0 0.0
    %694 = vmatpush1.msra.mxu0 0.0
    %695 = vmatprep.subr.mxu0 0.0
    %696 = vmatpush1.msra.mxu0 0.0
    %697 = vmatprep.subr.mxu0 0.0
    %698 = vmatpush1.msra.mxu0 0.0
    %699 = vmatprep.subr.mxu0 0.0
    %700 = vmatpush1.msra.mxu0 0.0
    %701 = vmatprep.subr.mxu0 0.0
    %702 = vmatpush1.msra.mxu0 0.0
    %703 = vmatprep.subr.mxu0 0.0
    %704 = vmatpush1.msra.mxu0 0.0
    %705 = vmatprep.subr.mxu0 0.0
    %706 = vmatpush1.msra.mxu0 0.0
    %707 = vmatprep.subr.mxu0 0.0
    %708 = vmatpush1.msra.mxu0 0.0
    %709 = vmatprep.subr.mxu0 0.0
    %710 = vmatpush1.msra.mxu0 0.0
    %711 = vmatprep.subr.mxu0 0.0
    %712 = vmatpush1.msra.mxu0 0.0
    %713 = vmatprep.subr.mxu0 0.0
    %714 = vmatpush1.msra.mxu0 0.0
    %715 = vmatprep.subr.mxu0 0.0
    %716 = vmatpush1.msra.mxu0 0.0
    %717 = vmatprep.subr.mxu0 0.0
    %718 = vmatpush1.msra.mxu0 0.0
    %719 = vmatprep.subr.mxu0 0.0
    %720 = vmatpush1.msra.mxu0 0.0
    %v721 = vand.u32 %v55, 4294901760
    %v722 = vsub.f32 %v55, %v721
    %723 = vmatprep.mubr.f32.mxu0 %v722
    %v724 = vand.u32 %v54, 4294901760
    %v725 = vsub.f32 %v54, %v724
    %726 = vmatmul.mubr.f32.gmra.mrb[0].mxu0 %v725
    %v727 = vpop.f32.mrb[0].mxu0
    %v728 = vadd.f32 %v654, %v727
    %v729 = vpop.f32.mrb[0].mxu0
    %730 = vdwg.mxu0
    %731 = vmatprep.subr.mxu0 0.0
    %732 = vmatpush1.msra.mxu0 1.0
    %733 = vmatprep.subr.mxu0 0.0
    %734 = vmatpush1.msra.mxu0 1.0
    %735 = vmatprep.subr.mxu0 0.0
    %736 = vmatpush1.msra.mxu0 1.0
    %737 = vmatprep.subr.mxu0 0.0
    %738 = vmatpush1.msra.mxu0 1.0
    %739 = vmatprep.subr.mxu0 0.0
    %740 = vmatpush1.msra.mxu0 1.0
    %741 = vmatprep.subr.mxu0 0.0
    %742 = vmatpush1.msra.mxu0 1.0
    %743 = vmatprep.subr.mxu0 0.0
    %744 = vmatpush1.msra.mxu0 1.0
    %745 = vmatprep.subr.mxu0 0.0
    %746 = vmatpush1.msra.mxu0 1.0
    %747 = vmatprep.subr.mxu0 0.0
    %748 = vmatpush1.msra.mxu0 1.0
    %749 = vmatprep.subr.mxu0 0.0
    %750 = vmatpush1.msra.mxu0 1.0
    %751 = vmatprep.subr.mxu0 0.0
    %752 = vmatpush1.msra.mxu0 1.0
    %753 = vmatprep.subr.mxu0 0.0
    %754 = vmatpush1.msra.mxu0 1.0
    %755 = vmatprep.subr.mxu0 0.0
    %756 = vmatpush1.msra.mxu0 1.0
    %757 = vmatprep.subr.mxu0 0.0
    %758 = vmatpush1.msra.mxu0 1.0
    %759 = vmatprep.subr.mxu0 0.0
    %760 = vmatpush1.msra.mxu0 1.0
    %761 = vmatprep.subr.mxu0 0.0
    %762 = vmatpush1.msra.mxu0 1.0
    %763 = vmatprep.subr.mxu0 0.0
    %764 = vmatpush1.msra.mxu0 1.0
    %765 = vmatprep.subr.mxu0 0.0
    %766 = vmatpush1.msra.mxu0 1.0
    %767 = vmatprep.subr.mxu0 0.0
    %768 = vmatpush1.msra.mxu0 1.0
    %769 = vmatprep.subr.mxu0 0.0
    %770 = vmatpush1.msra.mxu0 1.0
    %771 = vmatprep.subr.mxu0 0.0
    %772 = vmatpush1.msra.mxu0 1.0
    %773 = vmatprep.subr.mxu0 0.0
    %774 = vmatpush1.msra.mxu0 1.0
    %775 = vmatprep.subr.mxu0 0.0
    %776 = vmatpush1.msra.mxu0 1.0
    %777 = vmatprep.subr.mxu0 0.0
    %778 = vmatpush1.msra.mxu0 1.0
    %779 = vmatprep.subr.mxu0 0.0
    %780 = vmatpush1.msra.mxu0 1.0
    %781 = vmatprep.subr.mxu0 0.0
    %782 = vmatpush1.msra.mxu0 1.0
    %783 = vmatprep.subr.mxu0 0.0
    %784 = vmatpush1.msra.mxu0 1.0
    %785 = vmatprep.subr.mxu0 0.0
    %786 = vmatpush1.msra.mxu0 1.0
    %787 = vmatprep.subr.mxu0 0.0
    %788 = vmatpush1.msra.mxu0 1.0
    %789 = vmatprep.subr.mxu0 0.0
    %790 = vmatpush1.msra.mxu0 1.0
    %791 = vmatprep.subr.mxu0 0.0
    %792 = vmatpush1.msra.mxu0 1.0
    %793 = vmatprep.subr.mxu0 0.0
    %794 = vmatpush1.msra.mxu0 1.0
    %v795 = vand.u32 %v55, 4294901760
    %v796 = vsub.f32 %v55, %v795
    %v797 = vand.u32 %v796, 4294901760
    %798 = vmatprep.mubr.f32.mxu0 %v797
    %v799 = vand.u32 %v54, 4294901760
    %v800 = vsub.f32 %v54, %v799
    %v801 = vand.u32 %v800, 4294901760
    %802 = vmatmul.mubr.f32.gmra.mrb[0].mxu0 %v801
    %v803 = vpop.f32.mrb[0].mxu0
    %v804 = vadd.f32 %v728, %v803
    %v805 = vpop.f32.mrb[0].mxu0
    %806 = vdwg.mxu0
    %807 = vmatprep.subr.mxu0 0.0
    %808 = vmatpush1.msra.mxu0 0.0
    %809 = vmatprep.subr.mxu0 0.0
    %810 = vmatpush1.msra.mxu0 0.0
    %811 = vmatprep.subr.mxu0 0.0
    %812 = vmatpush1.msra.mxu0 0.0
    %813 = vmatprep.subr.mxu0 0.0
    %814 = vmatpush1.msra.mxu0 0.0
    %815 = vmatprep.subr.mxu0 0.0
    %816 = vmatpush1.msra.mxu0 0.0
    %817 = vmatprep.subr.mxu0 0.0
    %818 = vmatpush1.msra.mxu0 0.0
    %819 = vmatprep.subr.mxu0 0.0
    %820 = vmatpush1.msra.mxu0 0.0
    %821 = vmatprep.subr.mxu0 0.0
    %822 = vmatpush1.msra.mxu0 0.0
    %823 = vmatprep.subr.mxu0 0.0
    %824 = vmatpush1.msra.mxu0 0.0
    %825 = vmatprep.subr.mxu0 0.0
    %826 = vmatpush1.msra.mxu0 0.0
    %827 = vmatprep.subr.mxu0 0.0
    %828 = vmatpush1.msra.mxu0 0.0
    %829 = vmatprep.subr.mxu0 0.0
    %830 = vmatpush1.msra.mxu0 0.0
    %831 = vmatprep.subr.mxu0 0.0
    %832 = vmatpush1.msra.mxu0 0.0
    %833 = vmatprep.subr.mxu0 0.0
    %834 = vmatpush1.msra.mxu0 0.0
    %835 = vmatprep.subr.mxu0 0.0
    %836 = vmatpush1.msra.mxu0 0.0
    %837 = vmatprep.subr.mxu0 0.0
    %838 = vmatpush1.msra.mxu0 0.0
    %839 = vmatprep.subr.mxu0 0.0
    %840 = vmatpush1.msra.mxu0 0.0
    %841 = vmatprep.subr.mxu0 0.0
    %842 = vmatpush1.msra.mxu0 0.0
    %843 = vmatprep.subr.mxu0 0.0
    %844 = vmatpush1.msra.mxu0 0.0
    %845 = vmatprep.subr.mxu0 0.0
    %846 = vmatpush1.msra.mxu0 0.0
    %847 = vmatprep.subr.mxu0 0.0
    %848 = vmatpush1.msra.mxu0 0.0
    %849 = vmatprep.subr.mxu0 0.0
    %850 = vmatpush1.msra.mxu0 0.0
    %851 = vmatprep.subr.mxu0 0.0
    %852 = vmatpush1.msra.mxu0 0.0
    %853 = vmatprep.subr.mxu0 0.0
    %854 = vmatpush1.msra.mxu0 0.0
    %855 = vmatprep.subr.mxu0 0.0
    %856 = vmatpush1.msra.mxu0 0.0
    %857 = vmatprep.subr.mxu0 0.0
    %858 = vmatpush1.msra.mxu0 0.0
    %859 = vmatprep.subr.mxu0 0.0
    %860 = vmatpush1.msra.mxu0 0.0
    %861 = vmatprep.subr.mxu0 0.0
    %862 = vmatpush1.msra.mxu0 0.0
    %863 = vmatprep.subr.mxu0 0.0
    %864 = vmatpush1.msra.mxu0 0.0
    %865 = vmatprep.subr.mxu0 0.0
    %866 = vmatpush1.msra.mxu0 0.0
    %867 = vmatprep.subr.mxu0 0.0
    %868 = vmatpush1.msra.mxu0 0.0
    %869 = vmatprep.subr.mxu0 0.0
    %870 = vmatpush1.msra.mxu0 0.0
    %v871 = vand.u32 %v55, 4294901760
    %872 = vmatprep.mubr.f32.mxu0 %v871
    %v873 = vand.u32 %v54, 4294901760
    %874 = vmatmul.mubr.f32.gmra.mrb[0].mxu0 %v873
    %v875 = vpop.f32.mrb[0].mxu0
    %v876 = vadd.f32 %v804, %v875
    %v877 = vpop.f32.mrb[0].mxu0
    %878 = vdwg.mxu0
    %879 = vmatprep.subr.mxu0 0.0
    %880 = vmatpush1.msra.mxu0 1.0
    %881 = vmatprep.subr.mxu0 0.0
    %882 = vmatpush1.msra.mxu0 1.0
    %883 = vmatprep.subr.mxu0 0.0
    %884 = vmatpush1.msra.mxu0 1.0
    %885 = vmatprep.subr.mxu0 0.0
    %886 = vmatpush1.msra.mxu0 1.0
    %887 = vmatprep.subr.mxu0 0.0
    %888 = vmatpush1.msra.mxu0 1.0
    %889 = vmatprep.subr.mxu0 0.0
    %890 = vmatpush1.msra.mxu0 1.0
    %891 = vmatprep.subr.mxu0 0.0
    %892 = vmatpush1.msra.mxu0 1.0
    %893 = vmatprep.subr.mxu0 0.0
    %894 = vmatpush1.msra.mxu0 1.0
    %895 = vmatprep.subr.mxu0 0.0
    %896 = vmatpush1.msra.mxu0 1.0
    %897 = vmatprep.subr.mxu0 0.0
    %898 = vmatpush1.msra.mxu0 1.0
    %899 = vmatprep.subr.mxu0 0.0
    %900 = vmatpush1.msra.mxu0 1.0
    %901 = vmatprep.subr.mxu0 0.0
    %902 = vmatpush1.msra.mxu0 1.0
    %903 = vmatprep.subr.mxu0 0.0
    %904 = vmatpush1.msra.mxu0 1.0
    %905 = vmatprep.subr.mxu0 0.0
    %906 = vmatpush1.msra.mxu0 1.0
    %907 = vmatprep.subr.mxu0 0.0
    %908 = vmatpush1.msra.mxu0 1.0
    %909 = vmatprep.subr.mxu0 0.0
    %910 = vmatpush1.msra.mxu0 1.0
    %911 = vmatprep.subr.mxu0 0.0
    %912 = vmatpush1.msra.mxu0 1.0
    %913 = vmatprep.subr.mxu0 0.0
    %914 = vmatpush1.msra.mxu0 1.0
    %915 = vmatprep.subr.mxu0 0.0
    %916 = vmatpush1.msra.mxu0 1.0
    %917 = vmatprep.subr.mxu0 0.0
    %918 = vmatpush1.msra.mxu0 1.0
    %919 = vmatprep.subr.mxu0 0.0
    %920 = vmatpush1.msra.mxu0 1.0
    %921 = vmatprep.subr.mxu0 0.0
    %922 = vmatpush1.msra.mxu0 1.0
    %923 = vmatprep.subr.mxu0 0.0
    %924 = vmatpush1.msra.mxu0 1.0
    %925 = vmatprep.subr.mxu0 0.0
    %926 = vmatpush1.msra.mxu0 1.0
    %927 = vmatprep.subr.mxu0 0.0
    %928 = vmatpush1.msra.mxu0 1.0
    %929 = vmatprep.subr.mxu0 0.0
    %930 = vmatpush1.msra.mxu0 1.0
    %931 = vmatprep.subr.mxu0 0.0
    %932 = vmatpush1.msra.mxu0 1.0
    %933 = vmatprep.subr.mxu0 0.0
    %934 = vmatpush1.msra.mxu0 1.0
    %935 = vmatprep.subr.mxu0 0.0
    %936 = vmatpush1.msra.mxu0 1.0
    %937 = vmatprep.subr.mxu0 0.0
    %938 = vmatpush1.msra.mxu0 1.0
    %939 = vmatprep.subr.mxu0 0.0
    %940 = vmatpush1.msra.mxu0 1.0
    %941 = vmatprep.subr.mxu0 0.0
    %942 = vmatpush1.msra.mxu0 1.0
    %v943 = vand.u32 %v55, 4294901760
    %944 = vmatprep.mubr.f32.mxu0 %v943
    %v945 = vand.u32 %v54, 4294901760
    %946 = vmatmul.mubr.f32.gmra.mrb[0].mxu0 %v945
    %v947 = vpop.f32.mrb[0].mxu0
    %v948 = vadd.f32 %v876, %v947
    %v949 = vpop.f32.mrb[0].mxu0
    %950 = vdwg.mxu0
    %v951 = vmul.f32 %v948, 0.00390625
    %v952 = vld [vmem:[#allocation2] sm:$0xff]
    %v953 = vlog2.pop %v54
    %v954 = vmul.f32 %v953, 0.6931472
    %v955 = vlog2.pop %v55
    %v956 = vmul.f32 %v955, 0.6931472
    %v957 = vmul.f32 %v56, %v954
    %v958 = vmul.f32 %v57, %v956
    %959 = vmatprep.subr.mxu0 0.0
    %960 = vmatpush1.msra.mxu0 1.0
    %961 = vmatprep.subr.mxu0 0.0
    %962 = vmatpush1.msra.mxu0 1.0
    %963 = vmatprep.subr.mxu0 0.0
    %964 = vmatpush1.msra.mxu0 1.0
    %965 = vmatprep.subr.mxu0 0.0
    %966 = vmatpush1.msra.mxu0 1.0
    %967 = vmatprep.subr.mxu0 0.0
    %968 = vmatpush1.msra.mxu0 1.0
    %969 = vmatprep.subr.mxu0 0.0
    %970 = vmatpush1.msra.mxu0 1.0
    %971 = vmatprep.subr.mxu0 0.0
    %972 = vmatpush1.msra.mxu0 1.0
    %973 = vmatprep.subr.mxu0 0.0
    %974 = vmatpush1.msra.mxu0 1.0
    %975 = vmatprep.subr.mxu0 0.0
    %976 = vmatpush1.msra.mxu0 1.0
    %977 = vmatprep.subr.mxu0 0.0
    %978 = vmatpush1.msra.mxu0 1.0
    %979 = vmatprep.subr.mxu0 0.0
    %980 = vmatpush1.msra.mxu0 1.0
    %981 = vmatprep.subr.mxu0 0.0
    %982 = vmatpush1.msra.mxu0 1.0
    %983 = vmatprep.subr.mxu0 0.0
    %984 = vmatpush1.msra.mxu0 1.0
    %985 = vmatprep.subr.mxu0 0.0
    %986 = vmatpush1.msra.mxu0 1.0
    %987 = vmatprep.subr.mxu0 0.0
    %988 = vmatpush1.msra.mxu0 1.0
    %989 = vmatprep.subr.mxu0 0.0
    %990 = vmatpush1.msra.mxu0 1.0
    %991 = vmatprep.subr.mxu0 0.0
    %992 = vmatpush1.msra.mxu0 1.0
    %993 = vmatprep.subr.mxu0 0.0
    %994 = vmatpush1.msra.mxu0 1.0
    %995 = vmatprep.subr.mxu0 0.0
    %996 = vmatpush1.msra.mxu0 1.0
    %997 = vmatprep.subr.mxu0 0.0
    %998 = vmatpush1.msra.mxu0 1.0
    %999 = vmatprep.subr.mxu0 0.0
    %1000 = vmatpush1.msra.mxu0 1.0
    %1001 = vmatprep.subr.mxu0 0.0
    %1002 = vmatpush1.msra.mxu0 1.0
    %1003 = vmatprep.subr.mxu0 0.0
    %1004 = vmatpush1.msra.mxu0 1.0
    %1005 = vmatprep.subr.mxu0 0.0
    %1006 = vmatpush1.msra.mxu0 1.0
    %1007 = vmatprep.subr.mxu0 0.0
    %1008 = vmatpush1.msra.mxu0 1.0
    %1009 = vmatprep.subr.mxu0 0.0
    %1010 = vmatpush1.msra.mxu0 1.0
    %1011 = vmatprep.subr.mxu0 0.0
    %1012 = vmatpush1.msra.mxu0 1.0
    %1013 = vmatprep.subr.mxu0 0.0
    %1014 = vmatpush1.msra.mxu0 1.0
    %1015 = vmatprep.subr.mxu0 0.0
    %1016 = vmatpush1.msra.mxu0 1.0
    %1017 = vmatprep.subr.mxu0 0.0
    %1018 = vmatpush1.msra.mxu0 1.0
    %1019 = vmatprep.subr.mxu0 0.0
    %1020 = vmatpush1.msra.mxu0 1.0
    %1021 = vmatprep.subr.mxu0 0.0
    %1022 = vmatpush1.msra.mxu0 1.0
    %v1023 = vand.u32 %v958, 4294901760
    %v1024 = vsub.f32 %v958, %v1023
    %v1025 = vand.u32 %v1024, 4294901760
    %v1026 = vsub.f32 %v1024, %v1025
    %v1027 = vand.u32 %v1026, 4294901760
    %1028 = vmatprep.mubr.f32.mxu0 %v1027
    %v1029 = vand.u32 %v957, 4294901760
    %v1030 = vsub.f32 %v957, %v1029
    %v1031 = vand.u32 %v1030, 4294901760
    %v1032 = vsub.f32 %v1030, %v1031
    %v1033 = vand.u32 %v1032, 4294901760
    %1034 = vmatmul.mubr.f32.gmra.mrb[0].mxu0 %v1033
    %v1035 = vpop.f32.mrb[0].mxu0
    %v1036 = vadd.f32 0.0, %v1035
    %v1037 = vpop.f32.mrb[0].mxu0
    %1038 = vdwg.mxu0
    %1039 = vmatprep.subr.mxu0 0.0
    %1040 = vmatpush1.msra.mxu0 0.0
    %1041 = vmatprep.subr.mxu0 0.0
    %1042 = vmatpush1.msra.mxu0 0.0
    %1043 = vmatprep.subr.mxu0 0.0
    %1044 = vmatpush1.msra.mxu0 0.0
    %1045 = vmatprep.subr.mxu0 0.0
    %1046 = vmatpush1.msra.mxu0 0.0
    %1047 = vmatprep.subr.mxu0 0.0
    %1048 = vmatpush1.msra.mxu0 0.0
    %1049 = vmatprep.subr.mxu0 0.0
    %1050 = vmatpush1.msra.mxu0 0.0
    %1051 = vmatprep.subr.mxu0 0.0
    %1052 = vmatpush1.msra.mxu0 0.0
    %1053 = vmatprep.subr.mxu0 0.0
    %1054 = vmatpush1.msra.mxu0 0.0
    %1055 = vmatprep.subr.mxu0 0.0
    %1056 = vmatpush1.msra.mxu0 0.0
    %1057 = vmatprep.subr.mxu0 0.0
    %1058 = vmatpush1.msra.mxu0 0.0
    %1059 = vmatprep.subr.mxu0 0.0
    %1060 = vmatpush1.msra.mxu0 0.0
    %1061 = vmatprep.subr.mxu0 0.0
    %1062 = vmatpush1.msra.mxu0 0.0
    %1063 = vmatprep.subr.mxu0 0.0
    %1064 = vmatpush1.msra.mxu0 0.0
    %1065 = vmatprep.subr.mxu0 0.0
    %1066 = vmatpush1.msra.mxu0 0.0
    %1067 = vmatprep.subr.mxu0 0.0
    %1068 = vmatpush1.msra.mxu0 0.0
    %1069 = vmatprep.subr.mxu0 0.0
    %1070 = vmatpush1.msra.mxu0 0.0
    %1071 = vmatprep.subr.mxu0 0.0
    %1072 = vmatpush1.msra.mxu0 0.0
    %1073 = vmatprep.subr.mxu0 0.0
    %1074 = vmatpush1.msra.mxu0 0.0
    %1075 = vmatprep.subr.mxu0 0.0
    %1076 = vmatpush1.msra.mxu0 0.0
    %1077 = vmatprep.subr.mxu0 0.0
    %1078 = vmatpush1.msra.mxu0 0.0
    %1079 = vmatprep.subr.mxu0 0.0
    %1080 = vmatpush1.msra.mxu0 0.0
    %1081 = vmatprep.subr.mxu0 0.0
    %1082 = vmatpush1.msra.mxu0 0.0
    %1083 = vmatprep.subr.mxu0 0.0
    %1084 = vmatpush1.msra.mxu0 0.0
    %1085 = vmatprep.subr.mxu0 0.0
    %1086 = vmatpush1.msra.mxu0 0.0
    %1087 = vmatprep.subr.mxu0 0.0
    %1088 = vmatpush1.msra.mxu0 0.0
    %1089 = vmatprep.subr.mxu0 0.0
    %1090 = vmatpush1.msra.mxu0 0.0
    %1091 = vmatprep.subr.mxu0 0.0
    %1092 = vmatpush1.msra.mxu0 0.0
    %1093 = vmatprep.subr.mxu0 0.0
    %1094 = vmatpush1.msra.mxu0 0.0
    %1095 = vmatprep.subr.mxu0 0.0
    %1096 = vmatpush1.msra.mxu0 0.0
    %1097 = vmatprep.subr.mxu0 0.0
    %1098 = vmatpush1.msra.mxu0 0.0
    %1099 = vmatprep.subr.mxu0 0.0
    %1100 = vmatpush1.msra.mxu0 0.0
    %1101 = vmatprep.subr.mxu0 0.0
    %1102 = vmatpush1.msra.mxu0 0.0
    %v1103 = vand.u32 %v958, 4294901760
    %1104 = vmatprep.mubr.f32.mxu0 %v1103
    %v1105 = vand.u32 %v957, 4294901760
    %1106 = vmatmul.mubr.f32.gmra.mrb[0].mxu0 %v1105
    %v1107 = vpop.f32.mrb[0].mxu0
    %v1108 = vadd.f32 %v1036, %v1107
    %v1109 = vpop.f32.mrb[0].mxu0
    %1110 = vdwg.mxu0
    %1111 = vmatprep.subr.mxu0 0.0
    %1112 = vmatpush1.msra.mxu0 0.0
    %1113 = vmatprep.subr.mxu0 0.0
    %1114 = vmatpush1.msra.mxu0 0.0
    %1115 = vmatprep.subr.mxu0 0.0
    %1116 = vmatpush1.msra.mxu0 0.0
    %1117 = vmatprep.subr.mxu0 0.0
    %1118 = vmatpush1.msra.mxu0 0.0
    %1119 = vmatprep.subr.mxu0 0.0
    %1120 = vmatpush1.msra.mxu0 0.0
    %1121 = vmatprep.subr.mxu0 0.0
    %1122 = vmatpush1.msra.mxu0 0.0
    %1123 = vmatprep.subr.mxu0 0.0
    %1124 = vmatpush1.msra.mxu0 0.0
    %1125 = vmatprep.subr.mxu0 0.0
    %1126 = vmatpush1.msra.mxu0 0.0
    %1127 = vmatprep.subr.mxu0 0.0
    %1128 = vmatpush1.msra.mxu0 0.0
    %1129 = vmatprep.subr.mxu0 0.0
    %1130 = vmatpush1.msra.mxu0 0.0
    %1131 = vmatprep.subr.mxu0 0.0
    %1132 = vmatpush1.msra.mxu0 0.0
    %1133 = vmatprep.subr.mxu0 0.0
    %1134 = vmatpush1.msra.mxu0 0.0
    %1135 = vmatprep.subr.mxu0 0.0
    %1136 = vmatpush1.msra.mxu0 0.0
    %1137 = vmatprep.subr.mxu0 0.0
    %1138 = vmatpush1.msra.mxu0 0.0
    %1139 = vmatprep.subr.mxu0 0.0
    %1140 = vmatpush1.msra.mxu0 0.0
    %1141 = vmatprep.subr.mxu0 0.0
    %1142 = vmatpush1.msra.mxu0 0.0
    %1143 = vmatprep.subr.mxu0 0.0
    %1144 = vmatpush1.msra.mxu0 0.0
    %1145 = vmatprep.subr.mxu0 0.0
    %1146 = vmatpush1.msra.mxu0 0.0
    %1147 = vmatprep.subr.mxu0 0.0
    %1148 = vmatpush1.msra.mxu0 0.0
    %1149 = vmatprep.subr.mxu0 0.0
    %1150 = vmatpush1.msra.mxu0 0.0
    %1151 = vmatprep.subr.mxu0 0.0
    %1152 = vmatpush1.msra.mxu0 0.0
    %1153 = vmatprep.subr.mxu0 0.0
    %1154 = vmatpush1.msra.mxu0 0.0
    %1155 = vmatprep.subr.mxu0 0.0
    %1156 = vmatpush1.msra.mxu0 0.0
    %1157 = vmatprep.subr.mxu0 0.0
    %1158 = vmatpush1.msra.mxu0 0.0
    %1159 = vmatprep.subr.mxu0 0.0
    %1160 = vmatpush1.msra.mxu0 0.0
    %1161 = vmatprep.subr.mxu0 0.0
    %1162 = vmatpush1.msra.mxu0 0.0
    %1163 = vmatprep.subr.mxu0 0.0
    %1164 = vmatpush1.msra.mxu0 0.0
    %1165 = vmatprep.subr.mxu0 0.0
    %1166 = vmatpush1.msra.mxu0 0.0
    %1167 = vmatprep.subr.mxu0 0.0
    %1168 = vmatpush1.msra.mxu0 0.0
    %1169 = vmatprep.subr.mxu0 0.0
    %1170 = vmatpush1.msra.mxu0 0.0
    %1171 = vmatprep.subr.mxu0 0.0
    %1172 = vmatpush1.msra.mxu0 0.0
    %1173 = vmatprep.subr.mxu0 0.0
    %1174 = vmatpush1.msra.mxu0 0.0
    %v1175 = vand.u32 %v958, 4294901760
    %v1176 = vsub.f32 %v958, %v1175
    %1177 = vmatprep.mubr.f32.mxu0 %v1176
    %v1178 = vand.u32 %v957, 4294901760
    %v1179 = vsub.f32 %v957, %v1178
    %1180 = vmatmul.mubr.f32.gmra.mrb[0].mxu0 %v1179
    %v1181 = vpop.f32.mrb[0].mxu0
    %v1182 = vadd.f32 %v1108, %v1181
    %v1183 = vpop.f32.mrb[0].mxu0
    %1184 = vdwg.mxu0
    %1185 = vmatprep.subr.mxu0 0.0
    %1186 = vmatpush1.msra.mxu0 1.0
    %1187 = vmatprep.subr.mxu0 0.0
    %1188 = vmatpush1.msra.mxu0 1.0
    %1189 = vmatprep.subr.mxu0 0.0
    %1190 = vmatpush1.msra.mxu0 1.0
    %1191 = vmatprep.subr.mxu0 0.0
    %1192 = vmatpush1.msra.mxu0 1.0
    %1193 = vmatprep.subr.mxu0 0.0
    %1194 = vmatpush1.msra.mxu0 1.0
    %1195 = vmatprep.subr.mxu0 0.0
    %1196 = vmatpush1.msra.mxu0 1.0
    %1197 = vmatprep.subr.mxu0 0.0
    %1198 = vmatpush1.msra.mxu0 1.0
    %1199 = vmatprep.subr.mxu0 0.0
    %1200 = vmatpush1.msra.mxu0 1.0
    %1201 = vmatprep.subr.mxu0 0.0
    %1202 = vmatpush1.msra.mxu0 1.0
    %1203 = vmatprep.subr.mxu0 0.0
    %1204 = vmatpush1.msra.mxu0 1.0
    %1205 = vmatprep.subr.mxu0 0.0
    %1206 = vmatpush1.msra.mxu0 1.0
    %1207 = vmatprep.subr.mxu0 0.0
    %1208 = vmatpush1.msra.mxu0 1.0
    %1209 = vmatprep.subr.mxu0 0.0
    %1210 = vmatpush1.msra.mxu0 1.0
    %1211 = vmatprep.subr.mxu0 0.0
    %1212 = vmatpush1.msra.mxu0 1.0
    %1213 = vmatprep.subr.mxu0 0.0
    %1214 = vmatpush1.msra.mxu0 1.0
    %1215 = vmatprep.subr.mxu0 0.0
    %1216 = vmatpush1.msra.mxu0 1.0
    %1217 = vmatprep.subr.mxu0 0.0
    %1218 = vmatpush1.msra.mxu0 1.0
    %1219 = vmatprep.subr.mxu0 0.0
    %1220 = vmatpush1.msra.mxu0 1.0
    %1221 = vmatprep.subr.mxu0 0.0
    %1222 = vmatpush1.msra.mxu0 1.0
    %1223 = vmatprep.subr.mxu0 0.0
    %1224 = vmatpush1.msra.mxu0 1.0
    %1225 = vmatprep.subr.mxu0 0.0
    %1226 = vmatpush1.msra.mxu0 1.0
    %1227 = vmatprep.subr.mxu0 0.0
    %1228 = vmatpush1.msra.mxu0 1.0
    %1229 = vmatprep.subr.mxu0 0.0
    %1230 = vmatpush1.msra.mxu0 1.0
    %1231 = vmatprep.subr.mxu0 0.0
    %1232 = vmatpush1.msra.mxu0 1.0
    %1233 = vmatprep.subr.mxu0 0.0
    %1234 = vmatpush1.msra.mxu0 1.0
    %1235 = vmatprep.subr.mxu0 0.0
    %1236 = vmatpush1.msra.mxu0 1.0
    %1237 = vmatprep.subr.mxu0 0.0
    %1238 = vmatpush1.msra.mxu0 1.0
    %1239 = vmatprep.subr.mxu0 0.0
    %1240 = vmatpush1.msra.mxu0 1.0
    %1241 = vmatprep.subr.mxu0 0.0
    %1242 = vmatpush1.msra.mxu0 1.0
    %1243 = vmatprep.subr.mxu0 0.0
    %1244 = vmatpush1.msra.mxu0 1.0
    %1245 = vmatprep.subr.mxu0 0.0
    %1246 = vmatpush1.msra.mxu0 1.0
    %1247 = vmatprep.subr.mxu0 0.0
    %1248 = vmatpush1.msra.mxu0 1.0
    %v1249 = vand.u32 %v958, 4294901760
    %v1250 = vsub.f32 %v958, %v1249
    %v1251 = vand.u32 %v1250, 4294901760
    %1252 = vmatprep.mubr.f32.mxu0 %v1251
    %v1253 = vand.u32 %v957, 4294901760
    %v1254 = vsub.f32 %v957, %v1253
    %v1255 = vand.u32 %v1254, 4294901760
    %1256 = vmatmul.mubr.f32.gmra.mrb[0].mxu0 %v1255
    %v1257 = vpop.f32.mrb[0].mxu0
    %v1258 = vadd.f32 %v1182, %v1257
    %v1259 = vpop.f32.mrb[0].mxu0
    %1260 = vdwg.mxu0
    %1261 = vmatprep.subr.mxu0 0.0
    %1262 = vmatpush1.msra.mxu0 0.0
    %1263 = vmatprep.subr.mxu0 0.0
    %1264 = vmatpush1.msra.mxu0 0.0
    %1265 = vmatprep.subr.mxu0 0.0
    %1266 = vmatpush1.msra.mxu0 0.0
    %1267 = vmatprep.subr.mxu0 0.0
    %1268 = vmatpush1.msra.mxu0 0.0
    %1269 = vmatprep.subr.mxu0 0.0
    %1270 = vmatpush1.msra.mxu0 0.0
    %1271 = vmatprep.subr.mxu0 0.0
    %1272 = vmatpush1.msra.mxu0 0.0
    %1273 = vmatprep.subr.mxu0 0.0
    %1274 = vmatpush1.msra.mxu0 0.0
    %1275 = vmatprep.subr.mxu0 0.0
    %1276 = vmatpush1.msra.mxu0 0.0
    %1277 = vmatprep.subr.mxu0 0.0
    %1278 = vmatpush1.msra.mxu0 0.0
    %1279 = vmatprep.subr.mxu0 0.0
    %1280 = vmatpush1.msra.mxu0 0.0
    %1281 = vmatprep.subr.mxu0 0.0
    %1282 = vmatpush1.msra.mxu0 0.0
    %1283 = vmatprep.subr.mxu0 0.0
    %1284 = vmatpush1.msra.mxu0 0.0
    %1285 = vmatprep.subr.mxu0 0.0
    %1286 = vmatpush1.msra.mxu0 0.0
    %1287 = vmatprep.subr.mxu0 0.0
    %1288 = vmatpush1.msra.mxu0 0.0
    %1289 = vmatprep.subr.mxu0 0.0
    %1290 = vmatpush1.msra.mxu0 0.0
    %1291 = vmatprep.subr.mxu0 0.0
    %1292 = vmatpush1.msra.mxu0 0.0
    %1293 = vmatprep.subr.mxu0 0.0
    %1294 = vmatpush1.msra.mxu0 0.0
    %1295 = vmatprep.subr.mxu0 0.0
    %1296 = vmatpush1.msra.mxu0 0.0
    %1297 = vmatprep.subr.mxu0 0.0
    %1298 = vmatpush1.msra.mxu0 0.0
    %1299 = vmatprep.subr.mxu0 0.0
    %1300 = vmatpush1.msra.mxu0 0.0
    %1301 = vmatprep.subr.mxu0 0.0
    %1302 = vmatpush1.msra.mxu0 0.0
    %1303 = vmatprep.subr.mxu0 0.0
    %1304 = vmatpush1.msra.mxu0 0.0
    %1305 = vmatprep.subr.mxu0 0.0
    %1306 = vmatpush1.msra.mxu0 0.0
    %1307 = vmatprep.subr.mxu0 0.0
    %1308 = vmatpush1.msra.mxu0 0.0
    %1309 = vmatprep.subr.mxu0 0.0
    %1310 = vmatpush1.msra.mxu0 0.0
    %1311 = vmatprep.subr.mxu0 0.0
    %1312 = vmatpush1.msra.mxu0 0.0
    %1313 = vmatprep.subr.mxu0 0.0
    %1314 = vmatpush1.msra.mxu0 0.0
    %1315 = vmatprep.subr.mxu0 0.0
    %1316 = vmatpush1.msra.mxu0 0.0
    %1317 = vmatprep.subr.mxu0 0.0
    %1318 = vmatpush1.msra.mxu0 0.0
    %1319 = vmatprep.subr.mxu0 0.0
    %1320 = vmatpush1.msra.mxu0 0.0
    %1321 = vmatprep.subr.mxu0 0.0
    %1322 = vmatpush1.msra.mxu0 0.0
    %1323 = vmatprep.subr.mxu0 0.0
    %1324 = vmatpush1.msra.mxu0 0.0
    %v1325 = vand.u32 %v958, 4294901760
    %1326 = vmatprep.mubr.f32.mxu0 %v1325
    %v1327 = vand.u32 %v957, 4294901760
    %1328 = vmatmul.mubr.f32.gmra.mrb[0].mxu0 %v1327
    %v1329 = vpop.f32.mrb[0].mxu0
    %v1330 = vadd.f32 %v1258, %v1329
    %v1331 = vpop.f32.mrb[0].mxu0
    %1332 = vdwg.mxu0
    %1333 = vmatprep.subr.mxu0 0.0
    %1334 = vmatpush1.msra.mxu0 1.0
    %1335 = vmatprep.subr.mxu0 0.0
    %1336 = vmatpush1.msra.mxu0 1.0
    %1337 = vmatprep.subr.mxu0 0.0
    %1338 = vmatpush1.msra.mxu0 1.0
    %1339 = vmatprep.subr.mxu0 0.0
    %1340 = vmatpush1.msra.mxu0 1.0
    %1341 = vmatprep.subr.mxu0 0.0
    %1342 = vmatpush1.msra.mxu0 1.0
    %1343 = vmatprep.subr.mxu0 0.0
    %1344 = vmatpush1.msra.mxu0 1.0
    %1345 = vmatprep.subr.mxu0 0.0
    %1346 = vmatpush1.msra.mxu0 1.0
    %1347 = vmatprep.subr.mxu0 0.0
    %1348 = vmatpush1.msra.mxu0 1.0
    %1349 = vmatprep.subr.mxu0 0.0
    %1350 = vmatpush1.msra.mxu0 1.0
    %1351 = vmatprep.subr.mxu0 0.0
    %1352 = vmatpush1.msra.mxu0 1.0
    %1353 = vmatprep.subr.mxu0 0.0
    %1354 = vmatpush1.msra.mxu0 1.0
    %1355 = vmatprep.subr.mxu0 0.0
    %1356 = vmatpush1.msra.mxu0 1.0
    %1357 = vmatprep.subr.mxu0 0.0
    %1358 = vmatpush1.msra.mxu0 1.0
    %1359 = vmatprep.subr.mxu0 0.0
    %1360 = vmatpush1.msra.mxu0 1.0
    %1361 = vmatprep.subr.mxu0 0.0
    %1362 = vmatpush1.msra.mxu0 1.0
    %1363 = vmatprep.subr.mxu0 0.0
    %1364 = vmatpush1.msra.mxu0 1.0
    %1365 = vmatprep.subr.mxu0 0.0
    %1366 = vmatpush1.msra.mxu0 1.0
    %1367 = vmatprep.subr.mxu0 0.0
    %1368 = vmatpush1.msra.mxu0 1.0
    %1369 = vmatprep.subr.mxu0 0.0
    %1370 = vmatpush1.msra.mxu0 1.0
    %1371 = vmatprep.subr.mxu0 0.0
    %1372 = vmatpush1.msra.mxu0 1.0
    %1373 = vmatprep.subr.mxu0 0.0
    %1374 = vmatpush1.msra.mxu0 1.0
    %1375 = vmatprep.subr.mxu0 0.0
    %1376 = vmatpush1.msra.mxu0 1.0
    %1377 = vmatprep.subr.mxu0 0.0
    %1378 = vmatpush1.msra.mxu0 1.0
    %1379 = vmatprep.subr.mxu0 0.0
    %1380 = vmatpush1.msra.mxu0 1.0
    %1381 = vmatprep.subr.mxu0 0.0
    %1382 = vmatpush1.msra.mxu0 1.0
    %1383 = vmatprep.subr.mxu0 0.0
    %1384 = vmatpush1.msra.mxu0 1.0
    %1385 = vmatprep.subr.mxu0 0.0
    %1386 = vmatpush1.msra.mxu0 1.0
    %1387 = vmatprep.subr.mxu0 0.0
    %1388 = vmatpush1.msra.mxu0 1.0
    %1389 = vmatprep.subr.mxu0 0.0
    %1390 = vmatpush1.msra.mxu0 1.0
    %1391 = vmatprep.subr.mxu0 0.0
    %1392 = vmatpush1.msra.mxu0 1.0
    %1393 = vmatprep.subr.mxu0 0.0
    %1394 = vmatpush1.msra.mxu0 1.0
    %1395 = vmatprep.subr.mxu0 0.0
    %1396 = vmatpush1.msra.mxu0 1.0
    %v1397 = vand.u32 %v958, 4294901760
    %1398 = vmatprep.mubr.f32.mxu0 %v1397
    %v1399 = vand.u32 %v957, 4294901760
    %1400 = vmatmul.mubr.f32.gmra.mrb[0].mxu0 %v1399
    %v1401 = vpop.f32.mrb[0].mxu0
    %v1402 = vadd.f32 %v1330, %v1401
    %v1403 = vpop.f32.mrb[0].mxu0
    %1404 = vdwg.mxu0
    %v1405 = vadd.f32 %v952, %v1402
    %vm1406 = vcmask 7168
    %1407 = vst.msk [vmem:[#allocation2] sm:$0xff] %vm1406, %v1405
    %1409 = vset.pattern.permute.xlu0 0
    %1410 = vperm.xlu0 %1409, %v504
    %v1411 = vpop.permute.xlu0 %1410
    %v1413 = vsub.f32 %v56, %v1411
    %v1414 = vsub.f32 %v57, %v1411
    %v1415 = vmul.f32 %v1413, %v1413
    %v1416 = vmul.f32 %v1414, %v1414
    %1417 = vmatprep.subr.mxu0 0.0
    %1418 = vmatpush1.msra.mxu0 1.0
    %1419 = vmatprep.subr.mxu0 0.0
    %1420 = vmatpush1.msra.mxu0 1.0
    %1421 = vmatprep.subr.mxu0 0.0
    %1422 = vmatpush1.msra.mxu0 1.0
    %1423 = vmatprep.subr.mxu0 0.0
    %1424 = vmatpush1.msra.mxu0 1.0
    %1425 = vmatprep.subr.mxu0 0.0
    %1426 = vmatpush1.msra.mxu0 1.0
    %1427 = vmatprep.subr.mxu0 0.0
    %1428 = vmatpush1.msra.mxu0 1.0
    %1429 = vmatprep.subr.mxu0 0.0
    %1430 = vmatpush1.msra.mxu0 1.0
    %1431 = vmatprep.subr.mxu0 0.0
    %1432 = vmatpush1.msra.mxu0 1.0
    %1433 = vmatprep.subr.mxu0 0.0
    %1434 = vmatpush1.msra.mxu0 1.0
    %1435 = vmatprep.subr.mxu0 0.0
    %1436 = vmatpush1.msra.mxu0 1.0
    %1437 = vmatprep.subr.mxu0 0.0
    %1438 = vmatpush1.msra.mxu0 1.0
    %1439 = vmatprep.subr.mxu0 0.0
    %1440 = vmatpush1.msra.mxu0 1.0
    %1441 = vmatprep.subr.mxu0 0.0
    %1442 = vmatpush1.msra.mxu0 1.0
    %1443 = vmatprep.subr.mxu0 0.0
    %1444 = vmatpush1.msra.mxu0 1.0
    %1445 = vmatprep.subr.mxu0 0.0
    %1446 = vmatpush1.msra.mxu0 1.0
    %1447 = vmatprep.subr.mxu0 0.0
    %1448 = vmatpush1.msra.mxu0 1.0
    %1449 = vmatprep.subr.mxu0 0.0
    %1450 = vmatpush1.msra.mxu0 1.0
    %1451 = vmatprep.subr.mxu0 0.0
    %1452 = vmatpush1.msra.mxu0 1.0
    %1453 = vmatprep.subr.mxu0 0.0
    %1454 = vmatpush1.msra.mxu0 1.0
    %1455 = vmatprep.subr.mxu0 0.0
    %1456 = vmatpush1.msra.mxu0 1.0
    %1457 = vmatprep.subr.mxu0 0.0
    %1458 = vmatpush1.msra.mxu0 1.0
    %1459 = vmatprep.subr.mxu0 0.0
    %1460 = vmatpush1.msra.mxu0 1.0
    %1461 = vmatprep.subr.mxu0 0.0
    %1462 = vmatpush1.msra.mxu0 1.0
    %1463 = vmatprep.subr.mxu0 0.0
    %1464 = vmatpush1.msra.mxu0 1.0
    %1465 = vmatprep.subr.mxu0 0.0
    %1466 = vmatpush1.msra.mxu0 1.0
    %1467 = vmatprep.subr.mxu0 0.0
    %1468 = vmatpush1.msra.mxu0 1.0
    %1469 = vmatprep.subr.mxu0 0.0
    %1470 = vmatpush1.msra.mxu0 1.0
    %1471 = vmatprep.subr.mxu0 0.0
    %1472 = vmatpush1.msra.mxu0 1.0
    %1473 = vmatprep.subr.mxu0 0.0
    %1474 = vmatpush1.msra.mxu0 1.0
    %1475 = vmatprep.subr.mxu0 0.0
    %1476 = vmatpush1.msra.mxu0 1.0
    %1477 = vmatprep.subr.mxu0 0.0
    %1478 = vmatpush1.msra.mxu0 1.0
    %1479 = vmatprep.subr.mxu0 0.0
    %1480 = vmatpush1.msra.mxu0 1.0
    %v1481 = vand.u32 %v1416, 4294901760
    %v1482 = vsub.f32 %v1416, %v1481
    %v1483 = vand.u32 %v1482, 4294901760
    %v1484 = vsub.f32 %v1482, %v1483
    %v1485 = vand.u32 %v1484, 4294901760
    %1486 = vmatprep.mubr.f32.mxu0 %v1485
    %v1487 = vand.u32 %v1415, 4294901760
    %v1488 = vsub.f32 %v1415, %v1487
    %v1489 = vand.u32 %v1488, 4294901760
    %v1490 = vsub.f32 %v1488, %v1489
    %v1491 = vand.u32 %v1490, 4294901760
    %1492 = vmatmul.mubr.f32.gmra.mrb[0].mxu0 %v1491
    %v1493 = vpop.f32.mrb[0].mxu0
    %v1494 = vadd.f32 0.0, %v1493
    %v1495 = vpop.f32.mrb[0].mxu0
    %1496 = vdwg.mxu0
    %1497 = vmatprep.subr.mxu0 0.0
    %1498 = vmatpush1.msra.mxu0 0.0
    %1499 = vmatprep.subr.mxu0 0.0
    %1500 = vmatpush1.msra.mxu0 0.0
    %1501 = vmatprep.subr.mxu0 0.0
    %1502 = vmatpush1.msra.mxu0 0.0
    %1503 = vmatprep.subr.mxu0 0.0
    %1504 = vmatpush1.msra.mxu0 0.0
    %1505 = vmatprep.subr.mxu0 0.0
    %1506 = vmatpush1.msra.mxu0 0.0
    %1507 = vmatprep.subr.mxu0 0.0
    %1508 = vmatpush1.msra.mxu0 0.0
    %1509 = vmatprep.subr.mxu0 0.0
    %1510 = vmatpush1.msra.mxu0 0.0
    %1511 = vmatprep.subr.mxu0 0.0
    %1512 = vmatpush1.msra.mxu0 0.0
    %1513 = vmatprep.subr.mxu0 0.0
    %1514 = vmatpush1.msra.mxu0 0.0
    %1515 = vmatprep.subr.mxu0 0.0
    %1516 = vmatpush1.msra.mxu0 0.0
    %1517 = vmatprep.subr.mxu0 0.0
    %1518 = vmatpush1.msra.mxu0 0.0
    %1519 = vmatprep.subr.mxu0 0.0
    %1520 = vmatpush1.msra.mxu0 0.0
    %1521 = vmatprep.subr.mxu0 0.0
    %1522 = vmatpush1.msra.mxu0 0.0
    %1523 = vmatprep.subr.mxu0 0.0
    %1524 = vmatpush1.msra.mxu0 0.0
    %1525 = vmatprep.subr.mxu0 0.0
    %1526 = vmatpush1.msra.mxu0 0.0
    %1527 = vmatprep.subr.mxu0 0.0
    %1528 = vmatpush1.msra.mxu0 0.0
    %1529 = vmatprep.subr.mxu0 0.0
    %1530 = vmatpush1.msra.mxu0 0.0
    %1531 = vmatprep.subr.mxu0 0.0
    %1532 = vmatpush1.msra.mxu0 0.0
    %1533 = vmatprep.subr.mxu0 0.0
    %1534 = vmatpush1.msra.mxu0 0.0
    %1535 = vmatprep.subr.mxu0 0.0
    %1536 = vmatpush1.msra.mxu0 0.0
    %1537 = vmatprep.subr.mxu0 0.0
    %1538 = vmatpush1.msra.mxu0 0.0
    %1539 = vmatprep.subr.mxu0 0.0
    %1540 = vmatpush1.msra.mxu0 0.0
    %1541 = vmatprep.subr.mxu0 0.0
    %1542 = vmatpush1.msra.mxu0 0.0
    %1543 = vmatprep.subr.mxu0 0.0
    %1544 = vmatpush1.msra.mxu0 0.0
    %1545 = vmatprep.subr.mxu0 0.0
    %1546 = vmatpush1.msra.mxu0 0.0
    %1547 = vmatprep.subr.mxu0 0.0
    %1548 = vmatpush1.msra.mxu0 0.0
    %1549 = vmatprep.subr.mxu0 0.0
    %1550 = vmatpush1.msra.mxu0 0.0
    %1551 = vmatprep.subr.mxu0 0.0
    %1552 = vmatpush1.msra.mxu0 0.0
    %1553 = vmatprep.subr.mxu0 0.0
    %1554 = vmatpush1.msra.mxu0 0.0
    %1555 = vmatprep.subr.mxu0 0.0
    %1556 = vmatpush1.msra.mxu0 0.0
    %1557 = vmatprep.subr.mxu0 0.0
    %1558 = vmatpush1.msra.mxu0 0.0
    %1559 = vmatprep.subr.mxu0 0.0
    %1560 = vmatpush1.msra.mxu0 0.0
    %v1561 = vand.u32 %v1416, 4294901760
    %1562 = vmatprep.mubr.f32.mxu0 %v1561
    %v1563 = vand.u32 %v1415, 4294901760
    %1564 = vmatmul.mubr.f32.gmra.mrb[0].mxu0 %v1563
    %v1565 = vpop.f32.mrb[0].mxu0
    %v1566 = vadd.f32 %v1494, %v1565
    %v1567 = vpop.f32.mrb[0].mxu0
    %1568 = vdwg.mxu0
    %1569 = vmatprep.subr.mxu0 0.0
    %1570 = vmatpush1.msra.mxu0 0.0
    %1571 = vmatprep.subr.mxu0 0.0
    %1572 = vmatpush1.msra.mxu0 0.0
    %1573 = vmatprep.subr.mxu0 0.0
    %1574 = vmatpush1.msra.mxu0 0.0
    %1575 = vmatprep.subr.mxu0 0.0
    %1576 = vmatpush1.msra.mxu0 0.0
    %1577 = vmatprep.subr.mxu0 0.0
    %1578 = vmatpush1.msra.mxu0 0.0
    %1579 = vmatprep.subr.mxu0 0.0
    %1580 = vmatpush1.msra.mxu0 0.0
    %1581 = vmatprep.subr.mxu0 0.0
    %1582 = vmatpush1.msra.mxu0 0.0
    %1583 = vmatprep.subr.mxu0 0.0
    %1584 = vmatpush1.msra.mxu0 0.0
    %1585 = vmatprep.subr.mxu0 0.0
    %1586 = vmatpush1.msra.mxu0 0.0
    %1587 = vmatprep.subr.mxu0 0.0
    %1588 = vmatpush1.msra.mxu0 0.0
    %1589 = vmatprep.subr.mxu0 0.0
    %1590 = vmatpush1.msra.mxu0 0.0
    %1591 = vmatprep.subr.mxu0 0.0
    %1592 = vmatpush1.msra.mxu0 0.0
    %1593 = vmatprep.subr.mxu0 0.0
    %1594 = vmatpush1.msra.mxu0 0.0
    %1595 = vmatprep.subr.mxu0 0.0
    %1596 = vmatpush1.msra.mxu0 0.0
    %1597 = vmatprep.subr.mxu0 0.0
    %1598 = vmatpush1.msra.mxu0 0.0
    %1599 = vmatprep.subr.mxu0 0.0
    %1600 = vmatpush1.msra.mxu0 0.0
    %1601 = vmatprep.subr.mxu0 0.0
    %1602 = vmatpush1.msra.mxu0 0.0
    %1603 = vmatprep.subr.mxu0 0.0
    %1604 = vmatpush1.msra.mxu0 0.0
    %1605 = vmatprep.subr.mxu0 0.0
    %1606 = vmatpush1.msra.mxu0 0.0
    %1607 = vmatprep.subr.mxu0 0.0
    %1608 = vmatpush1.msra.mxu0 0.0
    %1609 = vmatprep.subr.mxu0 0.0
    %1610 = vmatpush1.msra.mxu0 0.0
    %1611 = vmatprep.subr.mxu0 0.0
    %1612 = vmatpush1.msra.mxu0 0.0
    %1613 = vmatprep.subr.mxu0 0.0
    %1614 = vmatpush1.msra.mxu0 0.0
    %1615 = vmatprep.subr.mxu0 0.0
    %1616 = vmatpush1.msra.mxu0 0.0
    %1617 = vmatprep.subr.mxu0 0.0
    %1618 = vmatpush1.msra.mxu0 0.0
    %1619 = vmatprep.subr.mxu0 0.0
    %1620 = vmatpush1.msra.mxu0 0.0
    %1621 = vmatprep.subr.mxu0 0.0
    %1622 = vmatpush1.msra.mxu0 0.0
    %1623 = vmatprep.subr.mxu0 0.0
    %1624 = vmatpush1.msra.mxu0 0.0
    %1625 = vmatprep.subr.mxu0 0.0
    %1626 = vmatpush1.msra.mxu0 0.0
    %1627 = vmatprep.subr.mxu0 0.0
    %1628 = vmatpush1.msra.mxu0 0.0
    %1629 = vmatprep.subr.mxu0 0.0
    %1630 = vmatpush1.msra.mxu0 0.0
    %1631 = vmatprep.subr.mxu0 0.0
    %1632 = vmatpush1.msra.mxu0 0.0
    %v1633 = vand.u32 %v1416, 4294901760
    %v1634 = vsub.f32 %v1416, %v1633
    %1635 = vmatprep.mubr.f32.mxu0 %v1634
    %v1636 = vand.u32 %v1415, 4294901760
    %v1637 = vsub.f32 %v1415, %v1636
    %1638 = vmatmul.mubr.f32.gmra.mrb[0].mxu0 %v1637
    %v1639 = vpop.f32.mrb[0].mxu0
    %v1640 = vadd.f32 %v1566, %v1639
    %v1641 = vpop.f32.mrb[0].mxu0
    %1642 = vdwg.mxu0
    %1643 = vmatprep.subr.mxu0 0.0
    %1644 = vmatpush1.msra.mxu0 1.0
    %1645 = vmatprep.subr.mxu0 0.0
    %1646 = vmatpush1.msra.mxu0 1.0
    %1647 = vmatprep.subr.mxu0 0.0
    %1648 = vmatpush1.msra.mxu0 1.0
    %1649 = vmatprep.subr.mxu0 0.0
    %1650 = vmatpush1.msra.mxu0 1.0
    %1651 = vmatprep.subr.mxu0 0.0
    %1652 = vmatpush1.msra.mxu0 1.0
    %1653 = vmatprep.subr.mxu0 0.0
    %1654 = vmatpush1.msra.mxu0 1.0
    %1655 = vmatprep.subr.mxu0 0.0
    %1656 = vmatpush1.msra.mxu0 1.0
    %1657 = vmatprep.subr.mxu0 0.0
    %1658 = vmatpush1.msra.mxu0 1.0
    %1659 = vmatprep.subr.mxu0 0.0
    %1660 = vmatpush1.msra.mxu0 1.0
    %1661 = vmatprep.subr.mxu0 0.0
    %1662 = vmatpush1.msra.mxu0 1.0
    %1663 = vmatprep.subr.mxu0 0.0
    %1664 = vmatpush1.msra.mxu0 1.0
    %1665 = vmatprep.subr.mxu0 0.0
    %1666 = vmatpush1.msra.mxu0 1.0
    %1667 = vmatprep.subr.mxu0 0.0
    %1668 = vmatpush1.msra.mxu0 1.0
    %1669 = vmatprep.subr.mxu0 0.0
    %1670 = vmatpush1.msra.mxu0 1.0
    %1671 = vmatprep.subr.mxu0 0.0
    %1672 = vmatpush1.msra.mxu0 1.0
    %1673 = vmatprep.subr.mxu0 0.0
    %1674 = vmatpush1.msra.mxu0 1.0
    %1675 = vmatprep.subr.mxu0 0.0
    %1676 = vmatpush1.msra.mxu0 1.0
    %1677 = vmatprep.subr.mxu0 0.0
    %1678 = vmatpush1.msra.mxu0 1.0
    %1679 = vmatprep.subr.mxu0 0.0
    %1680 = vmatpush1.msra.mxu0 1.0
    %1681 = vmatprep.subr.mxu0 0.0
    %1682 = vmatpush1.msra.mxu0 1.0
    %1683 = vmatprep.subr.mxu0 0.0
    %1684 = vmatpush1.msra.mxu0 1.0
    %1685 = vmatprep.subr.mxu0 0.0
    %1686 = vmatpush1.msra.mxu0 1.0
    %1687 = vmatprep.subr.mxu0 0.0
    %1688 = vmatpush1.msra.mxu0 1.0
    %1689 = vmatprep.subr.mxu0 0.0
    %1690 = vmatpush1.msra.mxu0 1.0
    %1691 = vmatprep.subr.mxu0 0.0
    %1692 = vmatpush1.msra.mxu0 1.0
    %1693 = vmatprep.subr.mxu0 0.0
    %1694 = vmatpush1.msra.mxu0 1.0
    %1695 = vmatprep.subr.mxu0 0.0
    %1696 = vmatpush1.msra.mxu0 1.0
    %1697 = vmatprep.subr.mxu0 0.0
    %1698 = vmatpush1.msra.mxu0 1.0
    %1699 = vmatprep.subr.mxu0 0.0
    %1700 = vmatpush1.msra.mxu0 1.0
    %1701 = vmatprep.subr.mxu0 0.0
    %1702 = vmatpush1.msra.mxu0 1.0
    %1703 = vmatprep.subr.mxu0 0.0
    %1704 = vmatpush1.msra.mxu0 1.0
    %1705 = vmatprep.subr.mxu0 0.0
    %1706 = vmatpush1.msra.mxu0 1.0
    %v1707 = vand.u32 %v1416, 4294901760
    %v1708 = vsub.f32 %v1416, %v1707
    %v1709 = vand.u32 %v1708, 4294901760
    %1710 = vmatprep.mubr.f32.mxu0 %v1709
    %v1711 = vand.u32 %v1415, 4294901760
    %v1712 = vsub.f32 %v1415, %v1711
    %v1713 = vand.u32 %v1712, 4294901760
    %1714 = vmatmul.mubr.f32.gmra.mrb[0].mxu0 %v1713
    %v1715 = vpop.f32.mrb[0].mxu0
    %v1716 = vadd.f32 %v1640, %v1715
    %v1717 = vpop.f32.mrb[0].mxu0
    %1718 = vdwg.mxu0
    %1719 = vmatprep.subr.mxu0 0.0
    %1720 = vmatpush1.msra.mxu0 0.0
    %1721 = vmatprep.subr.mxu0 0.0
    %1722 = vmatpush1.msra.mxu0 0.0
    %1723 = vmatprep.subr.mxu0 0.0
    %1724 = vmatpush1.msra.mxu0 0.0
    %1725 = vmatprep.subr.mxu0 0.0
    %1726 = vmatpush1.msra.mxu0 0.0
    %1727 = vmatprep.subr.mxu0 0.0
    %1728 = vmatpush1.msra.mxu0 0.0
    %1729 = vmatprep.subr.mxu0 0.0
    %1730 = vmatpush1.msra.mxu0 0.0
    %1731 = vmatprep.subr.mxu0 0.0
    %1732 = vmatpush1.msra.mxu0 0.0
    %1733 = vmatprep.subr.mxu0 0.0
    %1734 = vmatpush1.msra.mxu0 0.0
    %1735 = vmatprep.subr.mxu0 0.0
    %1736 = vmatpush1.msra.mxu0 0.0
    %1737 = vmatprep.subr.mxu0 0.0
    %1738 = vmatpush1.msra.mxu0 0.0
    %1739 = vmatprep.subr.mxu0 0.0
    %1740 = vmatpush1.msra.mxu0 0.0
    %1741 = vmatprep.subr.mxu0 0.0
    %1742 = vmatpush1.msra.mxu0 0.0
    %1743 = vmatprep.subr.mxu0 0.0
    %1744 = vmatpush1.msra.mxu0 0.0
    %1745 = vmatprep.subr.mxu0 0.0
    %1746 = vmatpush1.msra.mxu0 0.0
    %1747 = vmatprep.subr.mxu0 0.0
    %1748 = vmatpush1.msra.mxu0 0.0
    %1749 = vmatprep.subr.mxu0 0.0
    %1750 = vmatpush1.msra.mxu0 0.0
    %1751 = vmatprep.subr.mxu0 0.0
    %1752 = vmatpush1.msra.mxu0 0.0
    %1753 = vmatprep.subr.mxu0 0.0
    %1754 = vmatpush1.msra.mxu0 0.0
    %1755 = vmatprep.subr.mxu0 0.0
    %1756 = vmatpush1.msra.mxu0 0.0
    %1757 = vmatprep.subr.mxu0 0.0
    %1758 = vmatpush1.msra.mxu0 0.0
    %1759 = vmatprep.subr.mxu0 0.0
    %1760 = vmatpush1.msra.mxu0 0.0
    %1761 = vmatprep.subr.mxu0 0.0
    %1762 = vmatpush1.msra.mxu0 0.0
    %1763 = vmatprep.subr.mxu0 0.0
    %1764 = vmatpush1.msra.mxu0 0.0
    %1765 = vmatprep.subr.mxu0 0.0
    %1766 = vmatpush1.msra.mxu0 0.0
    %1767 = vmatprep.subr.mxu0 0.0
    %1768 = vmatpush1.msra.mxu0 0.0
    %1769 = vmatprep.subr.mxu0 0.0
    %1770 = vmatpush1.msra.mxu0 0.0
    %1771 = vmatprep.subr.mxu0 0.0
    %1772 = vmatpush1.msra.mxu0 0.0
    %1773 = vmatprep.subr.mxu0 0.0
    %1774 = vmatpush1.msra.mxu0 0.0
    %1775 = vmatprep.subr.mxu0 0.0
    %1776 = vmatpush1.msra.mxu0 0.0
    %1777 = vmatprep.subr.mxu0 0.0
    %1778 = vmatpush1.msra.mxu0 0.0
    %1779 = vmatprep.subr.mxu0 0.0
    %1780 = vmatpush1.msra.mxu0 0.0
    %1781 = vmatprep.subr.mxu0 0.0
    %1782 = vmatpush1.msra.mxu0 0.0
    %v1783 = vand.u32 %v1416, 4294901760
    %1784 = vmatprep.mubr.f32.mxu0 %v1783
    %v1785 = vand.u32 %v1415, 4294901760
    %1786 = vmatmul.mubr.f32.gmra.mrb[0].mxu0 %v1785
    %v1787 = vpop.f32.mrb[0].mxu0
    %v1788 = vadd.f32 %v1716, %v1787
    %v1789 = vpop.f32.mrb[0].mxu0
    %1790 = vdwg.mxu0
    %1791 = vmatprep.subr.mxu0 0.0
    %1792 = vmatpush1.msra.mxu0 1.0
    %1793 = vmatprep.subr.mxu0 0.0
    %1794 = vmatpush1.msra.mxu0 1.0
    %1795 = vmatprep.subr.mxu0 0.0
    %1796 = vmatpush1.msra.mxu0 1.0
    %1797 = vmatprep.subr.mxu0 0.0
    %1798 = vmatpush1.msra.mxu0 1.0
    %1799 = vmatprep.subr.mxu0 0.0
    %1800 = vmatpush1.msra.mxu0 1.0
    %1801 = vmatprep.subr.mxu0 0.0
    %1802 = vmatpush1.msra.mxu0 1.0
    %1803 = vmatprep.subr.mxu0 0.0
    %1804 = vmatpush1.msra.mxu0 1.0
    %1805 = vmatprep.subr.mxu0 0.0
    %1806 = vmatpush1.msra.mxu0 1.0
    %1807 = vmatprep.subr.mxu0 0.0
    %1808 = vmatpush1.msra.mxu0 1.0
    %1809 = vmatprep.subr.mxu0 0.0
    %1810 = vmatpush1.msra.mxu0 1.0
    %1811 = vmatprep.subr.mxu0 0.0
    %1812 = vmatpush1.msra.mxu0 1.0
    %1813 = vmatprep.subr.mxu0 0.0
    %1814 = vmatpush1.msra.mxu0 1.0
    %1815 = vmatprep.subr.mxu0 0.0
    %1816 = vmatpush1.msra.mxu0 1.0
    %1817 = vmatprep.subr.mxu0 0.0
    %1818 = vmatpush1.msra.mxu0 1.0
    %1819 = vmatprep.subr.mxu0 0.0
    %1820 = vmatpush1.msra.mxu0 1.0
    %1821 = vmatprep.subr.mxu0 0.0
    %1822 = vmatpush1.msra.mxu0 1.0
    %1823 = vmatprep.subr.mxu0 0.0
    %1824 = vmatpush1.msra.mxu0 1.0
    %1825 = vmatprep.subr.mxu0 0.0
    %1826 = vmatpush1.msra.mxu0 1.0
    %1827 = vmatprep.subr.mxu0 0.0
    %1828 = vmatpush1.msra.mxu0 1.0
    %1829 = vmatprep.subr.mxu0 0.0
    %1830 = vmatpush1.msra.mxu0 1.0
    %1831 = vmatprep.subr.mxu0 0.0
    %1832 = vmatpush1.msra.mxu0 1.0
    %1833 = vmatprep.subr.mxu0 0.0
    %1834 = vmatpush1.msra.mxu0 1.0
    %1835 = vmatprep.subr.mxu0 0.0
    %1836 = vmatpush1.msra.mxu0 1.0
    %1837 = vmatprep.subr.mxu0 0.0
    %1838 = vmatpush1.msra.mxu0 1.0
    %1839 = vmatprep.subr.mxu0 0.0
    %1840 = vmatpush1.msra.mxu0 1.0
    %1841 = vmatprep.subr.mxu0 0.0
    %1842 = vmatpush1.msra.mxu0 1.0
    %1843 = vmatprep.subr.mxu0 0.0
    %1844 = vmatpush1.msra.mxu0 1.0
    %1845 = vmatprep.subr.mxu0 0.0
    %1846 = vmatpush1.msra.mxu0 1.0
    %1847 = vmatprep.subr.mxu0 0.0
    %1848 = vmatpush1.msra.mxu0 1.0
    %1849 = vmatprep.subr.mxu0 0.0
    %1850 = vmatpush1.msra.mxu0 1.0
    %1851 = vmatprep.subr.mxu0 0.0
    %1852 = vmatpush1.msra.mxu0 1.0
    %1853 = vmatprep.subr.mxu0 0.0
    %1854 = vmatpush1.msra.mxu0 1.0
    %v1855 = vand.u32 %v1416, 4294901760
    %1856 = vmatprep.mubr.f32.mxu0 %v1855
    %v1857 = vand.u32 %v1415, 4294901760
    %1858 = vmatmul.mubr.f32.gmra.mrb[0].mxu0 %v1857
    %v1859 = vpop.f32.mrb[0].mxu0
    %v1860 = vadd.f32 %v1788, %v1859
    %v1861 = vpop.f32.mrb[0].mxu0
    %1862 = vdwg.mxu0
    %v1863 = vmul.f32 %v1860, 0.003921569
    %v1864 = vrsqrt.pop %v1863
    %v1865 = vmul.f32 %v1863, %v1864
    %vm1866 = vcmp.eq.f32.partialorder %v1863, inf
    %v1867 = vsel %vm1866, %v1863, %v1865
    %vm1868 = vcmp.eq.f32.partialorder %v1863, 0.0
    %v1869 = vand.u32 %v1863, 2147483648
    %v1870 = vsel %vm1868, %v1869, %v1867
    %1872 = vset.pattern.permute.xlu0 0
    %1873 = vperm.xlu0 %1872, %v951
    %v1874 = vpop.permute.xlu0 %1873
    %v1876 = vsub.f32 %v54, %v1874
    %v1877 = vsub.f32 %v55, %v1874
    %v1878 = vmul.f32 %v1876, %v1876
    %v1879 = vmul.f32 %v1877, %v1877
    %1880 = vmatprep.subr.mxu0 0.0
    %1881 = vmatpush1.msra.mxu0 1.0
    %1882 = vmatprep.subr.mxu0 0.0
    %1883 = vmatpush1.msra.mxu0 1.0
    %1884 = vmatprep.subr.mxu0 0.0
    %1885 = vmatpush1.msra.mxu0 1.0
    %1886 = vmatprep.subr.mxu0 0.0
    %1887 = vmatpush1.msra.mxu0 1.0
    %1888 = vmatprep.subr.mxu0 0.0
    %1889 = vmatpush1.msra.mxu0 1.0
    %1890 = vmatprep.subr.mxu0 0.0
    %1891 = vmatpush1.msra.mxu0 1.0
    %1892 = vmatprep.subr.mxu0 0.0
    %1893 = vmatpush1.msra.mxu0 1.0
    %1894 = vmatprep.subr.mxu0 0.0
    %1895 = vmatpush1.msra.mxu0 1.0
    %1896 = vmatprep.subr.mxu0 0.0
    %1897 = vmatpush1.msra.mxu0 1.0
    %1898 = vmatprep.subr.mxu0 0.0
    %1899 = vmatpush1.msra.mxu0 1.0
    %1900 = vmatprep.subr.mxu0 0.0
    %1901 = vmatpush1.msra.mxu0 1.0
    %1902 = vmatprep.subr.mxu0 0.0
    %1903 = vmatpush1.msra.mxu0 1.0
    %1904 = vmatprep.subr.mxu0 0.0
    %1905 = vmatpush1.msra.mxu0 1.0
    %1906 = vmatprep.subr.mxu0 0.0
    %1907 = vmatpush1.msra.mxu0 1.0
    %1908 = vmatprep.subr.mxu0 0.0
    %1909 = vmatpush1.msra.mxu0 1.0
    %1910 = vmatprep.subr.mxu0 0.0
    %1911 = vmatpush1.msra.mxu0 1.0
    %1912 = vmatprep.subr.mxu0 0.0
    %1913 = vmatpush1.msra.mxu0 1.0
    %1914 = vmatprep.subr.mxu0 0.0
    %1915 = vmatpush1.msra.mxu0 1.0
    %1916 = vmatprep.subr.mxu0 0.0
    %1917 = vmatpush1.msra.mxu0 1.0
    %1918 = vmatprep.subr.mxu0 0.0
    %1919 = vmatpush1.msra.mxu0 1.0
    %1920 = vmatprep.subr.mxu0 0.0
    %1921 = vmatpush1.msra.mxu0 1.0
    %1922 = vmatprep.subr.mxu0 0.0
    %1923 = vmatpush1.msra.mxu0 1.0
    %1924 = vmatprep.subr.mxu0 0.0
    %1925 = vmatpush1.msra.mxu0 1.0
    %1926 = vmatprep.subr.mxu0 0.0
    %1927 = vmatpush1.msra.mxu0 1.0
    %1928 = vmatprep.subr.mxu0 0.0
    %1929 = vmatpush1.msra.mxu0 1.0
    %1930 = vmatprep.subr.mxu0 0.0
    %1931 = vmatpush1.msra.mxu0 1.0
    %1932 = vmatprep.subr.mxu0 0.0
    %1933 = vmatpush1.msra.mxu0 1.0
    %1934 = vmatprep.subr.mxu0 0.0
    %1935 = vmatpush1.msra.mxu0 1.0
    %1936 = vmatprep.subr.mxu0 0.0
    %1937 = vmatpush1.msra.mxu0 1.0
    %1938 = vmatprep.subr.mxu0 0.0
    %1939 = vmatpush1.msra.mxu0 1.0
    %1940 = vmatprep.subr.mxu0 0.0
    %1941 = vmatpush1.msra.mxu0 1.0
    %1942 = vmatprep.subr.mxu0 0.0
    %1943 = vmatpush1.msra.mxu0 1.0
    %v1944 = vand.u32 %v1879, 4294901760
    %v1945 = vsub.f32 %v1879, %v1944
    %v1946 = vand.u32 %v1945, 4294901760
    %v1947 = vsub.f32 %v1945, %v1946
    %v1948 = vand.u32 %v1947, 4294901760
    %1949 = vmatprep.mubr.f32.mxu0 %v1948
    %v1950 = vand.u32 %v1878, 4294901760
    %v1951 = vsub.f32 %v1878, %v1950
    %v1952 = vand.u32 %v1951, 4294901760
    %v1953 = vsub.f32 %v1951, %v1952
    %v1954 = vand.u32 %v1953, 4294901760
    %1955 = vmatmul.mubr.f32.gmra.mrb[0].mxu0 %v1954
    %v1956 = vpop.f32.mrb[0].mxu0
    %v1957 = vadd.f32 0.0, %v1956
    %v1958 = vpop.f32.mrb[0].mxu0
    %1959 = vdwg.mxu0
    %1960 = vmatprep.subr.mxu0 0.0
    %1961 = vmatpush1.msra.mxu0 0.0
    %1962 = vmatprep.subr.mxu0 0.0
    %1963 = vmatpush1.msra.mxu0 0.0
    %1964 = vmatprep.subr.mxu0 0.0
    %1965 = vmatpush1.msra.mxu0 0.0
    %1966 = vmatprep.subr.mxu0 0.0
    %1967 = vmatpush1.msra.mxu0 0.0
    %1968 = vmatprep.subr.mxu0 0.0
    %1969 = vmatpush1.msra.mxu0 0.0
    %1970 = vmatprep.subr.mxu0 0.0
    %1971 = vmatpush1.msra.mxu0 0.0
    %1972 = vmatprep.subr.mxu0 0.0
    %1973 = vmatpush1.msra.mxu0 0.0
    %1974 = vmatprep.subr.mxu0 0.0
    %1975 = vmatpush1.msra.mxu0 0.0
    %1976 = vmatprep.subr.mxu0 0.0
    %1977 = vmatpush1.msra.mxu0 0.0
    %1978 = vmatprep.subr.mxu0 0.0
    %1979 = vmatpush1.msra.mxu0 0.0
    %1980 = vmatprep.subr.mxu0 0.0
    %1981 = vmatpush1.msra.mxu0 0.0
    %1982 = vmatprep.subr.mxu0 0.0
    %1983 = vmatpush1.msra.mxu0 0.0
    %1984 = vmatprep.subr.mxu0 0.0
    %1985 = vmatpush1.msra.mxu0 0.0
    %1986 = vmatprep.subr.mxu0 0.0
    %1987 = vmatpush1.msra.mxu0 0.0
    %1988 = vmatprep.subr.mxu0 0.0
    %1989 = vmatpush1.msra.mxu0 0.0
    %1990 = vmatprep.subr.mxu0 0.0
    %1991 = vmatpush1.msra.mxu0 0.0
    %1992 = vmatprep.subr.mxu0 0.0
    %1993 = vmatpush1.msra.mxu0 0.0
    %1994 = vmatprep.subr.mxu0 0.0
    %1995 = vmatpush1.msra.mxu0 0.0
    %1996 = vmatprep.subr.mxu0 0.0
    %1997 = vmatpush1.msra.mxu0 0.0
    %1998 = vmatprep.subr.mxu0 0.0
    %1999 = vmatpush1.msra.mxu0 0.0
    %2000 = vmatprep.subr.mxu0 0.0
    %2001 = vmatpush1.msra.mxu0 0.0
    %2002 = vmatprep.subr.mxu0 0.0
    %2003 = vmatpush1.msra.mxu0 0.0
    %2004 = vmatprep.subr.mxu0 0.0
    %2005 = vmatpush1.msra.mxu0 0.0
    %2006 = vmatprep.subr.mxu0 0.0
    %2007 = vmatpush1.msra.mxu0 0.0
    %2008 = vmatprep.subr.mxu0 0.0
    %2009 = vmatpush1.msra.mxu0 0.0
    %2010 = vmatprep.subr.mxu0 0.0
    %2011 = vmatpush1.msra.mxu0 0.0
    %2012 = vmatprep.subr.mxu0 0.0
    %2013 = vmatpush1.msra.mxu0 0.0
    %2014 = vmatprep.subr.mxu0 0.0
    %2015 = vmatpush1.msra.mxu0 0.0
    %2016 = vmatprep.subr.mxu0 0.0
    %2017 = vmatpush1.msra.mxu0 0.0
    %2018 = vmatprep.subr.mxu0 0.0
    %2019 = vmatpush1.msra.mxu0 0.0
    %2020 = vmatprep.subr.mxu0 0.0
    %2021 = vmatpush1.msra.mxu0 0.0
    %2022 = vmatprep.subr.mxu0 0.0
    %2023 = vmatpush1.msra.mxu0 0.0
    %v2024 = vand.u32 %v1879, 4294901760
    %2025 = vmatprep.mubr.f32.mxu0 %v2024
    %v2026 = vand.u32 %v1878, 4294901760
    %2027 = vmatmul.mubr.f32.gmra.mrb[0].mxu0 %v2026
    %v2028 = vpop.f32.mrb[0].mxu0
    %v2029 = vadd.f32 %v1957, %v2028
    %v2030 = vpop.f32.mrb[0].mxu0
    %2031 = vdwg.mxu0
    %2032 = vmatprep.subr.mxu0 0.0
    %2033 = vmatpush1.msra.mxu0 0.0
    %2034 = vmatprep.subr.mxu0 0.0
    %2035 = vmatpush1.msra.mxu0 0.0
    %2036 = vmatprep.subr.mxu0 0.0
    %2037 = vmatpush1.msra.mxu0 0.0
    %2038 = vmatprep.subr.mxu0 0.0
    %2039 = vmatpush1.msra.mxu0 0.0
    %2040 = vmatprep.subr.mxu0 0.0
    %2041 = vmatpush1.msra.mxu0 0.0
    %2042 = vmatprep.subr.mxu0 0.0
    %2043 = vmatpush1.msra.mxu0 0.0
    %2044 = vmatprep.subr.mxu0 0.0
    %2045 = vmatpush1.msra.mxu0 0.0
    %2046 = vmatprep.subr.mxu0 0.0
    %2047 = vmatpush1.msra.mxu0 0.0
    %2048 = vmatprep.subr.mxu0 0.0
    %2049 = vmatpush1.msra.mxu0 0.0
    %2050 = vmatprep.subr.mxu0 0.0
    %2051 = vmatpush1.msra.mxu0 0.0
    %2052 = vmatprep.subr.mxu0 0.0
    %2053 = vmatpush1.msra.mxu0 0.0
    %2054 = vmatprep.subr.mxu0 0.0
    %2055 = vmatpush1.msra.mxu0 0.0
    %2056 = vmatprep.subr.mxu0 0.0
    %2057 = vmatpush1.msra.mxu0 0.0
    %2058 = vmatprep.subr.mxu0 0.0
    %2059 = vmatpush1.msra.mxu0 0.0
    %2060 = vmatprep.subr.mxu0 0.0
    %2061 = vmatpush1.msra.mxu0 0.0
    %2062 = vmatprep.subr.mxu0 0.0
    %2063 = vmatpush1.msra.mxu0 0.0
    %2064 = vmatprep.subr.mxu0 0.0
    %2065 = vmatpush1.msra.mxu0 0.0
    %2066 = vmatprep.subr.mxu0 0.0
    %2067 = vmatpush1.msra.mxu0 0.0
    %2068 = vmatprep.subr.mxu0 0.0
    %2069 = vmatpush1.msra.mxu0 0.0
    %2070 = vmatprep.subr.mxu0 0.0
    %2071 = vmatpush1.msra.mxu0 0.0
    %2072 = vmatprep.subr.mxu0 0.0
    %2073 = vmatpush1.msra.mxu0 0.0
    %2074 = vmatprep.subr.mxu0 0.0
    %2075 = vmatpush1.msra.mxu0 0.0
    %2076 = vmatprep.subr.mxu0 0.0
    %2077 = vmatpush1.msra.mxu0 0.0
    %2078 = vmatprep.subr.mxu0 0.0
    %2079 = vmatpush1.msra.mxu0 0.0
    %2080 = vmatprep.subr.mxu0 0.0
    %2081 = vmatpush1.msra.mxu0 0.0
    %2082 = vmatprep.subr.mxu0 0.0
    %2083 = vmatpush1.msra.mxu0 0.0
    %2084 = vmatprep.subr.mxu0 0.0
    %2085 = vmatpush1.msra.mxu0 0.0
    %2086 = vmatprep.subr.mxu0 0.0
    %2087 = vmatpush1.msra.mxu0 0.0
    %2088 = vmatprep.subr.mxu0 0.0
    %2089 = vmatpush1.msra.mxu0 0.0
    %2090 = vmatprep.subr.mxu0 0.0
    %2091 = vmatpush1.msra.mxu0 0.0
    %2092 = vmatprep.subr.mxu0 0.0
    %2093 = vmatpush1.msra.mxu0 0.0
    %2094 = vmatprep.subr.mxu0 0.0
    %2095 = vmatpush1.msra.mxu0 0.0
    %v2096 = vand.u32 %v1879, 4294901760
    %v2097 = vsub.f32 %v1879, %v2096
    %2098 = vmatprep.mubr.f32.mxu0 %v2097
    %v2099 = vand.u32 %v1878, 4294901760
    %v2100 = vsub.f32 %v1878, %v2099
    %2101 = vmatmul.mubr.f32.gmra.mrb[0].mxu0 %v2100
    %v2102 = vpop.f32.mrb[0].mxu0
    %v2103 = vadd.f32 %v2029, %v2102
    %v2104 = vpop.f32.mrb[0].mxu0
    %2105 = vdwg.mxu0
    %2106 = vmatprep.subr.mxu0 0.0
    %2107 = vmatpush1.msra.mxu0 1.0
    %2108 = vmatprep.subr.mxu0 0.0
    %2109 = vmatpush1.msra.mxu0 1.0
    %2110 = vmatprep.subr.mxu0 0.0
    %2111 = vmatpush1.msra.mxu0 1.0
    %2112 = vmatprep.subr.mxu0 0.0
    %2113 = vmatpush1.msra.mxu0 1.0
    %2114 = vmatprep.subr.mxu0 0.0
    %2115 = vmatpush1.msra.mxu0 1.0
    %2116 = vmatprep.subr.mxu0 0.0
    %2117 = vmatpush1.msra.mxu0 1.0
    %2118 = vmatprep.subr.mxu0 0.0
    %2119 = vmatpush1.msra.mxu0 1.0
    %2120 = vmatprep.subr.mxu0 0.0
    %2121 = vmatpush1.msra.mxu0 1.0
    %2122 = vmatprep.subr.mxu0 0.0
    %2123 = vmatpush1.msra.mxu0 1.0
    %2124 = vmatprep.subr.mxu0 0.0
    %2125 = vmatpush1.msra.mxu0 1.0
    %2126 = vmatprep.subr.mxu0 0.0
    %2127 = vmatpush1.msra.mxu0 1.0
    %2128 = vmatprep.subr.mxu0 0.0
    %2129 = vmatpush1.msra.mxu0 1.0
    %2130 = vmatprep.subr.mxu0 0.0
    %2131 = vmatpush1.msra.mxu0 1.0
    %2132 = vmatprep.subr.mxu0 0.0
    %2133 = vmatpush1.msra.mxu0 1.0
    %2134 = vmatprep.subr.mxu0 0.0
    %2135 = vmatpush1.msra.mxu0 1.0
    %2136 = vmatprep.subr.mxu0 0.0
    %2137 = vmatpush1.msra.mxu0 1.0
    %2138 = vmatprep.subr.mxu0 0.0
    %2139 = vmatpush1.msra.mxu0 1.0
    %2140 = vmatprep.subr.mxu0 0.0
    %2141 = vmatpush1.msra.mxu0 1.0
    %2142 = vmatprep.subr.mxu0 0.0
    %2143 = vmatpush1.msra.mxu0 1.0
    %2144 = vmatprep.subr.mxu0 0.0
    %2145 = vmatpush1.msra.mxu0 1.0
    %2146 = vmatprep.subr.mxu0 0.0
    %2147 = vmatpush1.msra.mxu0 1.0
    %2148 = vmatprep.subr.mxu0 0.0
    %2149 = vmatpush1.msra.mxu0 1.0
    %2150 = vmatprep.subr.mxu0 0.0
    %2151 = vmatpush1.msra.mxu0 1.0
    %2152 = vmatprep.subr.mxu0 0.0
    %2153 = vmatpush1.msra.mxu0 1.0
    %2154 = vmatprep.subr.mxu0 0.0
    %2155 = vmatpush1.msra.mxu0 1.0
    %2156 = vmatprep.subr.mxu0 0.0
    %2157 = vmatpush1.msra.mxu0 1.0
    %2158 = vmatprep.subr.mxu0 0.0
    %2159 = vmatpush1.msra.mxu0 1.0
    %2160 = vmatprep.subr.mxu0 0.0
    %2161 = vmatpush1.msra.mxu0 1.0
    %2162 = vmatprep.subr.mxu0 0.0
    %2163 = vmatpush1.msra.mxu0 1.0
    %2164 = vmatprep.subr.mxu0 0.0
    %2165 = vmatpush1.msra.mxu0 1.0
    %2166 = vmatprep.subr.mxu0 0.0
    %2167 = vmatpush1.msra.mxu0 1.0
    %2168 = vmatprep.subr.mxu0 0.0
    %2169 = vmatpush1.msra.mxu0 1.0
    %v2170 = vand.u32 %v1879, 4294901760
    %v2171 = vsub.f32 %v1879, %v2170
    %v2172 = vand.u32 %v2171, 4294901760
    %2173 = vmatprep.mubr.f32.mxu0 %v2172
    %v2174 = vand.u32 %v1878, 4294901760
    %v2175 = vsub.f32 %v1878, %v2174
    %v2176 = vand.u32 %v2175, 4294901760
    %2177 = vmatmul.mubr.f32.gmra.mrb[0].mxu0 %v2176
    %v2178 = vpop.f32.mrb[0].mxu0
    %v2179 = vadd.f32 %v2103, %v2178
    %v2180 = vpop.f32.mrb[0].mxu0
    %2181 = vdwg.mxu0
    %2182 = vmatprep.subr.mxu0 0.0
    %2183 = vmatpush1.msra.mxu0 0.0
    %2184 = vmatprep.subr.mxu0 0.0
    %2185 = vmatpush1.msra.mxu0 0.0
    %2186 = vmatprep.subr.mxu0 0.0
    %2187 = vmatpush1.msra.mxu0 0.0
    %2188 = vmatprep.subr.mxu0 0.0
    %2189 = vmatpush1.msra.mxu0 0.0
    %2190 = vmatprep.subr.mxu0 0.0
    %2191 = vmatpush1.msra.mxu0 0.0
    %2192 = vmatprep.subr.mxu0 0.0
    %2193 = vmatpush1.msra.mxu0 0.0
    %2194 = vmatprep.subr.mxu0 0.0
    %2195 = vmatpush1.msra.mxu0 0.0
    %2196 = vmatprep.subr.mxu0 0.0
    %2197 = vmatpush1.msra.mxu0 0.0
    %2198 = vmatprep.subr.mxu0 0.0
    %2199 = vmatpush1.msra.mxu0 0.0
    %2200 = vmatprep.subr.mxu0 0.0
    %2201 = vmatpush1.msra.mxu0 0.0
    %2202 = vmatprep.subr.mxu0 0.0
    %2203 = vmatpush1.msra.mxu0 0.0
    %2204 = vmatprep.subr.mxu0 0.0
    %2205 = vmatpush1.msra.mxu0 0.0
    %2206 = vmatprep.subr.mxu0 0.0
    %2207 = vmatpush1.msra.mxu0 0.0
    %2208 = vmatprep.subr.mxu0 0.0
    %2209 = vmatpush1.msra.mxu0 0.0
    %2210 = vmatprep.subr.mxu0 0.0
    %2211 = vmatpush1.msra.mxu0 0.0
    %2212 = vmatprep.subr.mxu0 0.0
    %2213 = vmatpush1.msra.mxu0 0.0
    %2214 = vmatprep.subr.mxu0 0.0
    %2215 = vmatpush1.msra.mxu0 0.0
    %2216 = vmatprep.subr.mxu0 0.0
    %2217 = vmatpush1.msra.mxu0 0.0
    %2218 = vmatprep.subr.mxu0 0.0
    %2219 = vmatpush1.msra.mxu0 0.0
    %2220 = vmatprep.subr.mxu0 0.0
    %2221 = vmatpush1.msra.mxu0 0.0
    %2222 = vmatprep.subr.mxu0 0.0
    %2223 = vmatpush1.msra.mxu0 0.0
    %2224 = vmatprep.subr.mxu0 0.0
    %2225 = vmatpush1.msra.mxu0 0.0
    %2226 = vmatprep.subr.mxu0 0.0
    %2227 = vmatpush1.msra.mxu0 0.0
    %2228 = vmatprep.subr.mxu0 0.0
    %2229 = vmatpush1.msra.mxu0 0.0
    %2230 = vmatprep.subr.mxu0 0.0
    %2231 = vmatpush1.msra.mxu0 0.0
    %2232 = vmatprep.subr.mxu0 0.0
    %2233 = vmatpush1.msra.mxu0 0.0
    %2234 = vmatprep.subr.mxu0 0.0
    %2235 = vmatpush1.msra.mxu0 0.0
    %2236 = vmatprep.subr.mxu0 0.0
    %2237 = vmatpush1.msra.mxu0 0.0
    %2238 = vmatprep.subr.mxu0 0.0
    %2239 = vmatpush1.msra.mxu0 0.0
    %2240 = vmatprep.subr.mxu0 0.0
    %2241 = vmatpush1.msra.mxu0 0.0
    %2242 = vmatprep.subr.mxu0 0.0
    %2243 = vmatpush1.msra.mxu0 0.0
    %2244 = vmatprep.subr.mxu0 0.0
    %2245 = vmatpush1.msra.mxu0 0.0
    %v2246 = vand.u32 %v1879, 4294901760
    %2247 = vmatprep.mubr.f32.mxu0 %v2246
    %v2248 = vand.u32 %v1878, 4294901760
    %2249 = vmatmul.mubr.f32.gmra.mrb[0].mxu0 %v2248
    %v2250 = vpop.f32.mrb[0].mxu0
    %v2251 = vadd.f32 %v2179, %v2250
    %v2252 = vpop.f32.mrb[0].mxu0
    %2253 = vdwg.mxu0
    %2254 = vmatprep.subr.mxu0 0.0
    %2255 = vmatpush1.msra.mxu0 1.0
    %2256 = vmatprep.subr.mxu0 0.0
    %2257 = vmatpush1.msra.mxu0 1.0
    %2258 = vmatprep.subr.mxu0 0.0
    %2259 = vmatpush1.msra.mxu0 1.0
    %2260 = vmatprep.subr.mxu0 0.0
    %2261 = vmatpush1.msra.mxu0 1.0
    %2262 = vmatprep.subr.mxu0 0.0
    %2263 = vmatpush1.msra.mxu0 1.0
    %2264 = vmatprep.subr.mxu0 0.0
    %2265 = vmatpush1.msra.mxu0 1.0
    %2266 = vmatprep.subr.mxu0 0.0
    %2267 = vmatpush1.msra.mxu0 1.0
    %2268 = vmatprep.subr.mxu0 0.0
    %2269 = vmatpush1.msra.mxu0 1.0
    %2270 = vmatprep.subr.mxu0 0.0
    %2271 = vmatpush1.msra.mxu0 1.0
    %2272 = vmatprep.subr.mxu0 0.0
    %2273 = vmatpush1.msra.mxu0 1.0
    %2274 = vmatprep.subr.mxu0 0.0
    %2275 = vmatpush1.msra.mxu0 1.0
    %2276 = vmatprep.subr.mxu0 0.0
    %2277 = vmatpush1.msra.mxu0 1.0
    %2278 = vmatprep.subr.mxu0 0.0
    %2279 = vmatpush1.msra.mxu0 1.0
    %2280 = vmatprep.subr.mxu0 0.0
    %2281 = vmatpush1.msra.mxu0 1.0
    %2282 = vmatprep.subr.mxu0 0.0
    %2283 = vmatpush1.msra.mxu0 1.0
    %2284 = vmatprep.subr.mxu0 0.0
    %2285 = vmatpush1.msra.mxu0 1.0
    %2286 = vmatprep.subr.mxu0 0.0
    %2287 = vmatpush1.msra.mxu0 1.0
    %2288 = vmatprep.subr.mxu0 0.0
    %2289 = vmatpush1.msra.mxu0 1.0
    %2290 = vmatprep.subr.mxu0 0.0
    %2291 = vmatpush1.msra.mxu0 1.0
    %2292 = vmatprep.subr.mxu0 0.0
    %2293 = vmatpush1.msra.mxu0 1.0
    %2294 = vmatprep.subr.mxu0 0.0
    %2295 = vmatpush1.msra.mxu0 1.0
    %2296 = vmatprep.subr.mxu0 0.0
    %2297 = vmatpush1.msra.mxu0 1.0
    %2298 = vmatprep.subr.mxu0 0.0
    %2299 = vmatpush1.msra.mxu0 1.0
    %2300 = vmatprep.subr.mxu0 0.0
    %2301 = vmatpush1.msra.mxu0 1.0
    %2302 = vmatprep.subr.mxu0 0.0
    %2303 = vmatpush1.msra.mxu0 1.0
    %2304 = vmatprep.subr.mxu0 0.0
    %2305 = vmatpush1.msra.mxu0 1.0
    %2306 = vmatprep.subr.mxu0 0.0
    %2307 = vmatpush1.msra.mxu0 1.0
    %2308 = vmatprep.subr.mxu0 0.0
    %2309 = vmatpush1.msra.mxu0 1.0
    %2310 = vmatprep.subr.mxu0 0.0
    %2311 = vmatpush1.msra.mxu0 1.0
    %2312 = vmatprep.subr.mxu0 0.0
    %2313 = vmatpush1.msra.mxu0 1.0
    %2314 = vmatprep.subr.mxu0 0.0
    %2315 = vmatpush1.msra.mxu0 1.0
    %2316 = vmatprep.subr.mxu0 0.0
    %2317 = vmatpush1.msra.mxu0 1.0
    %v2318 = vand.u32 %v1879, 4294901760
    %2319 = vmatprep.mubr.f32.mxu0 %v2318
    %v2320 = vand.u32 %v1878, 4294901760
    %2321 = vmatmul.mubr.f32.gmra.mrb[0].mxu0 %v2320
    %v2322 = vpop.f32.mrb[0].mxu0
    %v2323 = vadd.f32 %v2251, %v2322
    %v2324 = vpop.f32.mrb[0].mxu0
    %2325 = vdwg.mxu0
    %v2326 = vmul.f32 %v2323, 0.003921569
    %v2327 = vrsqrt.pop %v2326
    %v2328 = vmul.f32 %v2326, %v2327
    %vm2329 = vcmp.eq.f32.partialorder %v2326, inf
    %v2330 = vsel %vm2329, %v2326, %v2328
    %vm2331 = vcmp.eq.f32.partialorder %v2326, 0.0
    %v2332 = vand.u32 %v2326, 2147483648
    %v2333 = vsel %vm2331, %v2332, %v2330
    %v2334 = vadd.f32 %v1870, 0.01
    %v2335 = vrcp.pop %v2334
    %v2336 = vmul.f32 1.0, %v2335
    %v2337 = vadd.f32 %v2333, 0.01
    %v2338 = vrcp.pop %v2337
    %v2339 = vmul.f32 1.0, %v2338
    %v2340 = vsub.f32 0.01, %v504
    %v2341 = vmul.f32 %v2340, %v2336
    %v2342 = vsub.f32 0.01, %v951
    %v2343 = vmul.f32 %v2342, %v2339
    %v2344 = vsub.f32 %v2341, %v2343
    %2346 = vset.pattern.permute.xlu0 0
    %2347 = vperm.xlu0 %2346, %v2336
    %v2348 = vpop.permute.xlu0 %2347
    %v2350 = vmul.f32 %v56, %v2348
    %v2351 = vmul.f32 %v57, %v2348
    %2353 = vset.pattern.permute.xlu0 0
    %2354 = vperm.xlu0 %2353, %v2339
    %v2355 = vpop.permute.xlu0 %2354
    %v2357 = vmul.f32 %v54, %v2355
    %v2358 = vmul.f32 %v55, %v2355
    %v2359 = vsub.f32 %v2350, %v2357
    %v2360 = vsub.f32 %v2351, %v2358
    %2362 = vset.pattern.permute.xlu0 0
    %2363 = vperm.xlu0 %2362, %v2344
    %v2364 = vpop.permute.xlu0 %2363
    %v2366 = vadd.f32 %v2359, %v2364
    %v2367 = vadd.f32 %v2360, %v2364
    %v2368 = vand.u32 2147483647, %v2366
    %v2369 = vand.u32 2147483647, %v2367
    %v2370 = vmax.f32 %v2368, %v2369
    %2371 = vmax.xlane.f32.xlu0 %v2370
    %v2372 = vpop.xlane.xlu0 %2371
    %v2373 = vmul.f32 %v2372, 0.1
    %vm2374 = vcmp.gt.f32.partialorder %v2368, %v2373
    %vm2375 = vcmp.gt.f32.partialorder %v2369, %v2373
    %v2376 = vld [vmem:[#allocation3] sm:$0xff]
    %v2377 = vsel %vm2374, %v2368, 0.0
    %v2378 = vsel %vm2375, %v2369, 0.0
    %2379 = vmatprep.subr.mxu0 0.0
    %2380 = vmatpush1.msra.mxu0 1.0
    %2381 = vmatprep.subr.mxu0 0.0
    %2382 = vmatpush1.msra.mxu0 1.0
    %2383 = vmatprep.subr.mxu0 0.0
    %2384 = vmatpush1.msra.mxu0 1.0
    %2385 = vmatprep.subr.mxu0 0.0
    %2386 = vmatpush1.msra.mxu0 1.0
    %2387 = vmatprep.subr.mxu0 0.0
    %2388 = vmatpush1.msra.mxu0 1.0
    %2389 = vmatprep.subr.mxu0 0.0
    %2390 = vmatpush1.msra.mxu0 1.0
    %2391 = vmatprep.subr.mxu0 0.0
    %2392 = vmatpush1.msra.mxu0 1.0
    %2393 = vmatprep.subr.mxu0 0.0
    %2394 = vmatpush1.msra.mxu0 1.0
    %2395 = vmatprep.subr.mxu0 0.0
    %2396 = vmatpush1.msra.mxu0 1.0
    %2397 = vmatprep.subr.mxu0 0.0
    %2398 = vmatpush1.msra.mxu0 1.0
    %2399 = vmatprep.subr.mxu0 0.0
    %2400 = vmatpush1.msra.mxu0 1.0
    %2401 = vmatprep.subr.mxu0 0.0
    %2402 = vmatpush1.msra.mxu0 1.0
    %2403 = vmatprep.subr.mxu0 0.0
    %2404 = vmatpush1.msra.mxu0 1.0
    %2405 = vmatprep.subr.mxu0 0.0
    %2406 = vmatpush1.msra.mxu0 1.0
    %2407 = vmatprep.subr.mxu0 0.0
    %2408 = vmatpush1.msra.mxu0 1.0
    %2409 = vmatprep.subr.mxu0 0.0
    %2410 = vmatpush1.msra.mxu0 1.0
    %2411 = vmatprep.subr.mxu0 0.0
    %2412 = vmatpush1.msra.mxu0 1.0
    %2413 = vmatprep.subr.mxu0 0.0
    %2414 = vmatpush1.msra.mxu0 1.0
    %2415 = vmatprep.subr.mxu0 0.0
    %2416 = vmatpush1.msra.mxu0 1.0
    %2417 = vmatprep.subr.mxu0 0.0
    %2418 = vmatpush1.msra.mxu0 1.0
    %2419 = vmatprep.subr.mxu0 0.0
    %2420 = vmatpush1.msra.mxu0 1.0
    %2421 = vmatprep.subr.mxu0 0.0
    %2422 = vmatpush1.msra.mxu0 1.0
    %2423 = vmatprep.subr.mxu0 0.0
    %2424 = vmatpush1.msra.mxu0 1.0
    %2425 = vmatprep.subr.mxu0 0.0
    %2426 = vmatpush1.msra.mxu0 1.0
    %2427 = vmatprep.subr.mxu0 0.0
    %2428 = vmatpush1.msra.mxu0 1.0
    %2429 = vmatprep.subr.mxu0 0.0
    %2430 = vmatpush1.msra.mxu0 1.0
    %2431 = vmatprep.subr.mxu0 0.0
    %2432 = vmatpush1.msra.mxu0 1.0
    %2433 = vmatprep.subr.mxu0 0.0
    %2434 = vmatpush1.msra.mxu0 1.0
    %2435 = vmatprep.subr.mxu0 0.0
    %2436 = vmatpush1.msra.mxu0 1.0
    %2437 = vmatprep.subr.mxu0 0.0
    %2438 = vmatpush1.msra.mxu0 1.0
    %2439 = vmatprep.subr.mxu0 0.0
    %2440 = vmatpush1.msra.mxu0 1.0
    %2441 = vmatprep.subr.mxu0 0.0
    %2442 = vmatpush1.msra.mxu0 1.0
    %v2443 = vand.u32 %v2378, 4294901760
    %v2444 = vsub.f32 %v2378, %v2443
    %v2445 = vand.u32 %v2444, 4294901760
    %v2446 = vsub.f32 %v2444, %v2445
    %v2447 = vand.u32 %v2446, 4294901760
    %2448 = vmatprep.mubr.f32.mxu0 %v2447
    %v2449 = vand.u32 %v2377, 4294901760
    %v2450 = vsub.f32 %v2377, %v2449
    %v2451 = vand.u32 %v2450, 4294901760
    %v2452 = vsub.f32 %v2450, %v2451
    %v2453 = vand.u32 %v2452, 4294901760
    %2454 = vmatmul.mubr.f32.gmra.mrb[0].mxu0 %v2453
    %v2455 = vpop.f32.mrb[0].mxu0
    %v2456 = vadd.f32 0.0, %v2455
    %v2457 = vpop.f32.mrb[0].mxu0
    %2458 = vdwg.mxu0
    %2459 = vmatprep.subr.mxu0 0.0
    %2460 = vmatpush1.msra.mxu0 0.0
    %2461 = vmatprep.subr.mxu0 0.0
    %2462 = vmatpush1.msra.mxu0 0.0
    %2463 = vmatprep.subr.mxu0 0.0
    %2464 = vmatpush1.msra.mxu0 0.0
    %2465 = vmatprep.subr.mxu0 0.0
    %2466 = vmatpush1.msra.mxu0 0.0
    %2467 = vmatprep.subr.mxu0 0.0
    %2468 = vmatpush1.msra.mxu0 0.0
    %2469 = vmatprep.subr.mxu0 0.0
    %2470 = vmatpush1.msra.mxu0 0.0
    %2471 = vmatprep.subr.mxu0 0.0
    %2472 = vmatpush1.msra.mxu0 0.0
    %2473 = vmatprep.subr.mxu0 0.0
    %2474 = vmatpush1.msra.mxu0 0.0
    %2475 = vmatprep.subr.mxu0 0.0
    %2476 = vmatpush1.msra.mxu0 0.0
    %2477 = vmatprep.subr.mxu0 0.0
    %2478 = vmatpush1.msra.mxu0 0.0
    %2479 = vmatprep.subr.mxu0 0.0
    %2480 = vmatpush1.msra.mxu0 0.0
    %2481 = vmatprep.subr.mxu0 0.0
    %2482 = vmatpush1.msra.mxu0 0.0
    %2483 = vmatprep.subr.mxu0 0.0
    %2484 = vmatpush1.msra.mxu0 0.0
    %2485 = vmatprep.subr.mxu0 0.0
    %2486 = vmatpush1.msra.mxu0 0.0
    %2487 = vmatprep.subr.mxu0 0.0
    %2488 = vmatpush1.msra.mxu0 0.0
    %2489 = vmatprep.subr.mxu0 0.0
    %2490 = vmatpush1.msra.mxu0 0.0
    %2491 = vmatprep.subr.mxu0 0.0
    %2492 = vmatpush1.msra.mxu0 0.0
    %2493 = vmatprep.subr.mxu0 0.0
    %2494 = vmatpush1.msra.mxu0 0.0
    %2495 = vmatprep.subr.mxu0 0.0
    %2496 = vmatpush1.msra.mxu0 0.0
    %2497 = vmatprep.subr.mxu0 0.0
    %2498 = vmatpush1.msra.mxu0 0.0
    %2499 = vmatprep.subr.mxu0 0.0
    %2500 = vmatpush1.msra.mxu0 0.0
    %2501 = vmatprep.subr.mxu0 0.0
    %2502 = vmatpush1.msra.mxu0 0.0
    %2503 = vmatprep.subr.mxu0 0.0
    %2504 = vmatpush1.msra.mxu0 0.0
    %2505 = vmatprep.subr.mxu0 0.0
    %2506 = vmatpush1.msra.mxu0 0.0
    %2507 = vmatprep.subr.mxu0 0.0
    %2508 = vmatpush1.msra.mxu0 0.0
    %2509 = vmatprep.subr.mxu0 0.0
    %2510 = vmatpush1.msra.mxu0 0.0
    %2511 = vmatprep.subr.mxu0 0.0
    %2512 = vmatpush1.msra.mxu0 0.0
    %2513 = vmatprep.subr.mxu0 0.0
    %2514 = vmatpush1.msra.mxu0 0.0
    %2515 = vmatprep.subr.mxu0 0.0
    %2516 = vmatpush1.msra.mxu0 0.0
    %2517 = vmatprep.subr.mxu0 0.0
    %2518 = vmatpush1.msra.mxu0 0.0
    %2519 = vmatprep.subr.mxu0 0.0
    %2520 = vmatpush1.msra.mxu0 0.0
    %2521 = vmatprep.subr.mxu0 0.0
    %2522 = vmatpush1.msra.mxu0 0.0
    %v2523 = vand.u32 %v2378, 4294901760
    %2524 = vmatprep.mubr.f32.mxu0 %v2523
    %v2525 = vand.u32 %v2377, 4294901760
    %2526 = vmatmul.mubr.f32.gmra.mrb[0].mxu0 %v2525
    %v2527 = vpop.f32.mrb[0].mxu0
    %v2528 = vadd.f32 %v2456, %v2527
    %v2529 = vpop.f32.mrb[0].mxu0
    %2530 = vdwg.mxu0
    %2531 = vmatprep.subr.mxu0 0.0
    %2532 = vmatpush1.msra.mxu0 0.0
    %2533 = vmatprep.subr.mxu0 0.0
    %2534 = vmatpush1.msra.mxu0 0.0
    %2535 = vmatprep.subr.mxu0 0.0
    %2536 = vmatpush1.msra.mxu0 0.0
    %2537 = vmatprep.subr.mxu0 0.0
    %2538 = vmatpush1.msra.mxu0 0.0
    %2539 = vmatprep.subr.mxu0 0.0
    %2540 = vmatpush1.msra.mxu0 0.0
    %2541 = vmatprep.subr.mxu0 0.0
    %2542 = vmatpush1.msra.mxu0 0.0
    %2543 = vmatprep.subr.mxu0 0.0
    %2544 = vmatpush1.msra.mxu0 0.0
    %2545 = vmatprep.subr.mxu0 0.0
    %2546 = vmatpush1.msra.mxu0 0.0
    %2547 = vmatprep.subr.mxu0 0.0
    %2548 = vmatpush1.msra.mxu0 0.0
    %2549 = vmatprep.subr.mxu0 0.0
    %2550 = vmatpush1.msra.mxu0 0.0
    %2551 = vmatprep.subr.mxu0 0.0
    %2552 = vmatpush1.msra.mxu0 0.0
    %2553 = vmatprep.subr.mxu0 0.0
    %2554 = vmatpush1.msra.mxu0 0.0
    %2555 = vmatprep.subr.mxu0 0.0
    %2556 = vmatpush1.msra.mxu0 0.0
    %2557 = vmatprep.subr.mxu0 0.0
    %2558 = vmatpush1.msra.mxu0 0.0
    %2559 = vmatprep.subr.mxu0 0.0
    %2560 = vmatpush1.msra.mxu0 0.0
    %2561 = vmatprep.subr.mxu0 0.0
    %2562 = vmatpush1.msra.mxu0 0.0
    %2563 = vmatprep.subr.mxu0 0.0
    %2564 = vmatpush1.msra.mxu0 0.0
    %2565 = vmatprep.subr.mxu0 0.0
    %2566 = vmatpush1.msra.mxu0 0.0
    %2567 = vmatprep.subr.mxu0 0.0
    %2568 = vmatpush1.msra.mxu0 0.0
    %2569 = vmatprep.subr.mxu0 0.0
    %2570 = vmatpush1.msra.mxu0 0.0
    %2571 = vmatprep.subr.mxu0 0.0
    %2572 = vmatpush1.msra.mxu0 0.0
    %2573 = vmatprep.subr.mxu0 0.0
    %2574 = vmatpush1.msra.mxu0 0.0
    %2575 = vmatprep.subr.mxu0 0.0
    %2576 = vmatpush1.msra.mxu0 0.0
    %2577 = vmatprep.subr.mxu0 0.0
    %2578 = vmatpush1.msra.mxu0 0.0
    %2579 = vmatprep.subr.mxu0 0.0
    %2580 = vmatpush1.msra.mxu0 0.0
    %2581 = vmatprep.subr.mxu0 0.0
    %2582 = vmatpush1.msra.mxu0 0.0
    %2583 = vmatprep.subr.mxu0 0.0
    %2584 = vmatpush1.msra.mxu0 0.0
    %2585 = vmatprep.subr.mxu0 0.0
    %2586 = vmatpush1.msra.mxu0 0.0
    %2587 = vmatprep.subr.mxu0 0.0
    %2588 = vmatpush1.msra.mxu0 0.0
    %2589 = vmatprep.subr.mxu0 0.0
    %2590 = vmatpush1.msra.mxu0 0.0
    %2591 = vmatprep.subr.mxu0 0.0
    %2592 = vmatpush1.msra.mxu0 0.0
    %2593 = vmatprep.subr.mxu0 0.0
    %2594 = vmatpush1.msra.mxu0 0.0
    %v2595 = vand.u32 %v2378, 4294901760
    %v2596 = vsub.f32 %v2378, %v2595
    %2597 = vmatprep.mubr.f32.mxu0 %v2596
    %v2598 = vand.u32 %v2377, 4294901760
    %v2599 = vsub.f32 %v2377, %v2598
    %2600 = vmatmul.mubr.f32.gmra.mrb[0].mxu0 %v2599
    %v2601 = vpop.f32.mrb[0].mxu0
    %v2602 = vadd.f32 %v2528, %v2601
    %v2603 = vpop.f32.mrb[0].mxu0
    %2604 = vdwg.mxu0
    %2605 = vmatprep.subr.mxu0 0.0
    %2606 = vmatpush1.msra.mxu0 1.0
    %2607 = vmatprep.subr.mxu0 0.0
    %2608 = vmatpush1.msra.mxu0 1.0
    %2609 = vmatprep.subr.mxu0 0.0
    %2610 = vmatpush1.msra.mxu0 1.0
    %2611 = vmatprep.subr.mxu0 0.0
    %2612 = vmatpush1.msra.mxu0 1.0
    %2613 = vmatprep.subr.mxu0 0.0
    %2614 = vmatpush1.msra.mxu0 1.0
    %2615 = vmatprep.subr.mxu0 0.0
    %2616 = vmatpush1.msra.mxu0 1.0
    %2617 = vmatprep.subr.mxu0 0.0
    %2618 = vmatpush1.msra.mxu0 1.0
    %2619 = vmatprep.subr.mxu0 0.0
    %2620 = vmatpush1.msra.mxu0 1.0
    %2621 = vmatprep.subr.mxu0 0.0
    %2622 = vmatpush1.msra.mxu0 1.0
    %2623 = vmatprep.subr.mxu0 0.0
    %2624 = vmatpush1.msra.mxu0 1.0
    %2625 = vmatprep.subr.mxu0 0.0
    %2626 = vmatpush1.msra.mxu0 1.0
    %2627 = vmatprep.subr.mxu0 0.0
    %2628 = vmatpush1.msra.mxu0 1.0
    %2629 = vmatprep.subr.mxu0 0.0
    %2630 = vmatpush1.msra.mxu0 1.0
    %2631 = vmatprep.subr.mxu0 0.0
    %2632 = vmatpush1.msra.mxu0 1.0
    %2633 = vmatprep.subr.mxu0 0.0
    %2634 = vmatpush1.msra.mxu0 1.0
    %2635 = vmatprep.subr.mxu0 0.0
    %2636 = vmatpush1.msra.mxu0 1.0
    %2637 = vmatprep.subr.mxu0 0.0
    %2638 = vmatpush1.msra.mxu0 1.0
    %2639 = vmatprep.subr.mxu0 0.0
    %2640 = vmatpush1.msra.mxu0 1.0
    %2641 = vmatprep.subr.mxu0 0.0
    %2642 = vmatpush1.msra.mxu0 1.0
    %2643 = vmatprep.subr.mxu0 0.0
    %2644 = vmatpush1.msra.mxu0 1.0
    %2645 = vmatprep.subr.mxu0 0.0
    %2646 = vmatpush1.msra.mxu0 1.0
    %2647 = vmatprep.subr.mxu0 0.0
    %2648 = vmatpush1.msra.mxu0 1.0
    %2649 = vmatprep.subr.mxu0 0.0
    %2650 = vmatpush1.msra.mxu0 1.0
    %2651 = vmatprep.subr.mxu0 0.0
    %2652 = vmatpush1.msra.mxu0 1.0
    %2653 = vmatprep.subr.mxu0 0.0
    %2654 = vmatpush1.msra.mxu0 1.0
    %2655 = vmatprep.subr.mxu0 0.0
    %2656 = vmatpush1.msra.mxu0 1.0
    %2657 = vmatprep.subr.mxu0 0.0
    %2658 = vmatpush1.msra.mxu0 1.0
    %2659 = vmatprep.subr.mxu0 0.0
    %2660 = vmatpush1.msra.mxu0 1.0
    %2661 = vmatprep.subr.mxu0 0.0
    %2662 = vmatpush1.msra.mxu0 1.0
    %2663 = vmatprep.subr.mxu0 0.0
    %2664 = vmatpush1.msra.mxu0 1.0
    %2665 = vmatprep.subr.mxu0 0.0
    %2666 = vmatpush1.msra.mxu0 1.0
    %2667 = vmatprep.subr.mxu0 0.0
    %2668 = vmatpush1.msra.mxu0 1.0
    %v2669 = vand.u32 %v2378, 4294901760
    %v2670 = vsub.f32 %v2378, %v2669
    %v2671 = vand.u32 %v2670, 4294901760
    %2672 = vmatprep.mubr.f32.mxu0 %v2671
    %v2673 = vand.u32 %v2377, 4294901760
    %v2674 = vsub.f32 %v2377, %v2673
    %v2675 = vand.u32 %v2674, 4294901760
    %2676 = vmatmul.mubr.f32.gmra.mrb[0].mxu0 %v2675
    %v2677 = vpop.f32.mrb[0].mxu0
    %v2678 = vadd.f32 %v2602, %v2677
    %v2679 = vpop.f32.mrb[0].mxu0
    %2680 = vdwg.mxu0
    %2681 = vmatprep.subr.mxu0 0.0
    %2682 = vmatpush1.msra.mxu0 0.0
    %2683 = vmatprep.subr.mxu0 0.0
    %2684 = vmatpush1.msra.mxu0 0.0
    %2685 = vmatprep.subr.mxu0 0.0
    %2686 = vmatpush1.msra.mxu0 0.0
    %2687 = vmatprep.subr.mxu0 0.0
    %2688 = vmatpush1.msra.mxu0 0.0
    %2689 = vmatprep.subr.mxu0 0.0
    %2690 = vmatpush1.msra.mxu0 0.0
    %2691 = vmatprep.subr.mxu0 0.0
    %2692 = vmatpush1.msra.mxu0 0.0
    %2693 = vmatprep.subr.mxu0 0.0
    %2694 = vmatpush1.msra.mxu0 0.0
    %2695 = vmatprep.subr.mxu0 0.0
    %2696 = vmatpush1.msra.mxu0 0.0
    %2697 = vmatprep.subr.mxu0 0.0
    %2698 = vmatpush1.msra.mxu0 0.0
    %2699 = vmatprep.subr.mxu0 0.0
    %2700 = vmatpush1.msra.mxu0 0.0
    %2701 = vmatprep.subr.mxu0 0.0
    %2702 = vmatpush1.msra.mxu0 0.0
    %2703 = vmatprep.subr.mxu0 0.0
    %2704 = vmatpush1.msra.mxu0 0.0
    %2705 = vmatprep.subr.mxu0 0.0
    %2706 = vmatpush1.msra.mxu0 0.0
    %2707 = vmatprep.subr.mxu0 0.0
    %2708 = vmatpush1.msra.mxu0 0.0
    %2709 = vmatprep.subr.mxu0 0.0
    %2710 = vmatpush1.msra.mxu0 0.0
    %2711 = vmatprep.subr.mxu0 0.0
    %2712 = vmatpush1.msra.mxu0 0.0
    %2713 = vmatprep.subr.mxu0 0.0
    %2714 = vmatpush1.msra.mxu0 0.0
    %2715 = vmatprep.subr.mxu0 0.0
    %2716 = vmatpush1.msra.mxu0 0.0
    %2717 = vmatprep.subr.mxu0 0.0
    %2718 = vmatpush1.msra.mxu0 0.0
    %2719 = vmatprep.subr.mxu0 0.0
    %2720 = vmatpush1.msra.mxu0 0.0
    %2721 = vmatprep.subr.mxu0 0.0
    %2722 = vmatpush1.msra.mxu0 0.0
    %2723 = vmatprep.subr.mxu0 0.0
    %2724 = vmatpush1.msra.mxu0 0.0
    %2725 = vmatprep.subr.mxu0 0.0
    %2726 = vmatpush1.msra.mxu0 0.0
    %2727 = vmatprep.subr.mxu0 0.0
    %2728 = vmatpush1.msra.mxu0 0.0
    %2729 = vmatprep.subr.mxu0 0.0
    %2730 = vmatpush1.msra.mxu0 0.0
    %2731 = vmatprep.subr.mxu0 0.0
    %2732 = vmatpush1.msra.mxu0 0.0
    %2733 = vmatprep.subr.mxu0 0.0
    %2734 = vmatpush1.msra.mxu0 0.0
    %2735 = vmatprep.subr.mxu0 0.0
    %2736 = vmatpush1.msra.mxu0 0.0
    %2737 = vmatprep.subr.mxu0 0.0
    %2738 = vmatpush1.msra.mxu0 0.0
    %2739 = vmatprep.subr.mxu0 0.0
    %2740 = vmatpush1.msra.mxu0 0.0
    %2741 = vmatprep.subr.mxu0 0.0
    %2742 = vmatpush1.msra.mxu0 0.0
    %2743 = vmatprep.subr.mxu0 0.0
    %2744 = vmatpush1.msra.mxu0 0.0
    %v2745 = vand.u32 %v2378, 4294901760
    %2746 = vmatprep.mubr.f32.mxu0 %v2745
    %v2747 = vand.u32 %v2377, 4294901760
    %2748 = vmatmul.mubr.f32.gmra.mrb[0].mxu0 %v2747
    %v2749 = vpop.f32.mrb[0].mxu0
    %v2750 = vadd.f32 %v2678, %v2749
    %v2751 = vpop.f32.mrb[0].mxu0
    %2752 = vdwg.mxu0
    %2753 = vmatprep.subr.mxu0 0.0
    %2754 = vmatpush1.msra.mxu0 1.0
    %2755 = vmatprep.subr.mxu0 0.0
    %2756 = vmatpush1.msra.mxu0 1.0
    %2757 = vmatprep.subr.mxu0 0.0
    %2758 = vmatpush1.msra.mxu0 1.0
    %2759 = vmatprep.subr.mxu0 0.0
    %2760 = vmatpush1.msra.mxu0 1.0
    %2761 = vmatprep.subr.mxu0 0.0
    %2762 = vmatpush1.msra.mxu0 1.0
    %2763 = vmatprep.subr.mxu0 0.0
    %2764 = vmatpush1.msra.mxu0 1.0
    %2765 = vmatprep.subr.mxu0 0.0
    %2766 = vmatpush1.msra.mxu0 1.0
    %2767 = vmatprep.subr.mxu0 0.0
    %2768 = vmatpush1.msra.mxu0 1.0
    %2769 = vmatprep.subr.mxu0 0.0
    %2770 = vmatpush1.msra.mxu0 1.0
    %2771 = vmatprep.subr.mxu0 0.0
    %2772 = vmatpush1.msra.mxu0 1.0
    %2773 = vmatprep.subr.mxu0 0.0
    %2774 = vmatpush1.msra.mxu0 1.0
    %2775 = vmatprep.subr.mxu0 0.0
    %2776 = vmatpush1.msra.mxu0 1.0
    %2777 = vmatprep.subr.mxu0 0.0
    %2778 = vmatpush1.msra.mxu0 1.0
    %2779 = vmatprep.subr.mxu0 0.0
    %2780 = vmatpush1.msra.mxu0 1.0
    %2781 = vmatprep.subr.mxu0 0.0
    %2782 = vmatpush1.msra.mxu0 1.0
    %2783 = vmatprep.subr.mxu0 0.0
    %2784 = vmatpush1.msra.mxu0 1.0
    %2785 = vmatprep.subr.mxu0 0.0
    %2786 = vmatpush1.msra.mxu0 1.0
    %2787 = vmatprep.subr.mxu0 0.0
    %2788 = vmatpush1.msra.mxu0 1.0
    %2789 = vmatprep.subr.mxu0 0.0
    %2790 = vmatpush1.msra.mxu0 1.0
    %2791 = vmatprep.subr.mxu0 0.0
    %2792 = vmatpush1.msra.mxu0 1.0
    %2793 = vmatprep.subr.mxu0 0.0
    %2794 = vmatpush1.msra.mxu0 1.0
    %2795 = vmatprep.subr.mxu0 0.0
    %2796 = vmatpush1.msra.mxu0 1.0
    %2797 = vmatprep.subr.mxu0 0.0
    %2798 = vmatpush1.msra.mxu0 1.0
    %2799 = vmatprep.subr.mxu0 0.0
    %2800 = vmatpush1.msra.mxu0 1.0
    %2801 = vmatprep.subr.mxu0 0.0
    %2802 = vmatpush1.msra.mxu0 1.0
    %2803 = vmatprep.subr.mxu0 0.0
    %2804 = vmatpush1.msra.mxu0 1.0
    %2805 = vmatprep.subr.mxu0 0.0
    %2806 = vmatpush1.msra.mxu0 1.0
    %2807 = vmatprep.subr.mxu0 0.0
    %2808 = vmatpush1.msra.mxu0 1.0
    %2809 = vmatprep.subr.mxu0 0.0
    %2810 = vmatpush1.msra.mxu0 1.0
    %2811 = vmatprep.subr.mxu0 0.0
    %2812 = vmatpush1.msra.mxu0 1.0
    %2813 = vmatprep.subr.mxu0 0.0
    %2814 = vmatpush1.msra.mxu0 1.0
    %2815 = vmatprep.subr.mxu0 0.0
    %2816 = vmatpush1.msra.mxu0 1.0
    %v2817 = vand.u32 %v2378, 4294901760
    %2818 = vmatprep.mubr.f32.mxu0 %v2817
    %v2819 = vand.u32 %v2377, 4294901760
    %2820 = vmatmul.mubr.f32.gmra.mrb[0].mxu0 %v2819
    %v2821 = vpop.f32.mrb[0].mxu0
    %v2822 = vadd.f32 %v2750, %v2821
    %v2823 = vpop.f32.mrb[0].mxu0
    %2824 = vdwg.mxu0
    %v2825 = vadd.f32 %v2376, %v2822
    %2826 = vst.msk [vmem:[#allocation3] sm:$0xff] %vm1406, %v2825
    %v2827 = vld [vmem:[#allocation4] sm:$0xff]
    %v2828 = vsel %vm2374, 1, 0
    %v2829 = vsel %vm2375, 1, 0
    %v2830 = vcvt.s32.f32 %v2828
    %v2831 = vcvt.s32.f32 %v2829
    %2832 = vmatprep.subr.mxu0 0.0
    %2833 = vmatpush1.msra.mxu0 1.0
    %2834 = vmatprep.subr.mxu0 0.0
    %2835 = vmatpush1.msra.mxu0 1.0
    %2836 = vmatprep.subr.mxu0 0.0
    %2837 = vmatpush1.msra.mxu0 1.0
    %2838 = vmatprep.subr.mxu0 0.0
    %2839 = vmatpush1.msra.mxu0 1.0
    %2840 = vmatprep.subr.mxu0 0.0
    %2841 = vmatpush1.msra.mxu0 1.0
    %2842 = vmatprep.subr.mxu0 0.0
    %2843 = vmatpush1.msra.mxu0 1.0
    %2844 = vmatprep.subr.mxu0 0.0
    %2845 = vmatpush1.msra.mxu0 1.0
    %2846 = vmatprep.subr.mxu0 0.0
    %2847 = vmatpush1.msra.mxu0 1.0
    %2848 = vmatprep.subr.mxu0 0.0
    %2849 = vmatpush1.msra.mxu0 1.0
    %2850 = vmatprep.subr.mxu0 0.0
    %2851 = vmatpush1.msra.mxu0 1.0
    %2852 = vmatprep.subr.mxu0 0.0
    %2853 = vmatpush1.msra.mxu0 1.0
    %2854 = vmatprep.subr.mxu0 0.0
    %2855 = vmatpush1.msra.mxu0 1.0
    %2856 = vmatprep.subr.mxu0 0.0
    %2857 = vmatpush1.msra.mxu0 1.0
    %2858 = vmatprep.subr.mxu0 0.0
    %2859 = vmatpush1.msra.mxu0 1.0
    %2860 = vmatprep.subr.mxu0 0.0
    %2861 = vmatpush1.msra.mxu0 1.0
    %2862 = vmatprep.subr.mxu0 0.0
    %2863 = vmatpush1.msra.mxu0 1.0
    %2864 = vmatprep.subr.mxu0 0.0
    %2865 = vmatpush1.msra.mxu0 1.0
    %2866 = vmatprep.subr.mxu0 0.0
    %2867 = vmatpush1.msra.mxu0 1.0
    %2868 = vmatprep.subr.mxu0 0.0
    %2869 = vmatpush1.msra.mxu0 1.0
    %2870 = vmatprep.subr.mxu0 0.0
    %2871 = vmatpush1.msra.mxu0 1.0
    %2872 = vmatprep.subr.mxu0 0.0
    %2873 = vmatpush1.msra.mxu0 1.0
    %2874 = vmatprep.subr.mxu0 0.0
    %2875 = vmatpush1.msra.mxu0 1.0
    %2876 = vmatprep.subr.mxu0 0.0
    %2877 = vmatpush1.msra.mxu0 1.0
    %2878 = vmatprep.subr.mxu0 0.0
    %2879 = vmatpush1.msra.mxu0 1.0
    %2880 = vmatprep.subr.mxu0 0.0
    %2881 = vmatpush1.msra.mxu0 1.0
    %2882 = vmatprep.subr.mxu0 0.0
    %2883 = vmatpush1.msra.mxu0 1.0
    %2884 = vmatprep.subr.mxu0 0.0
    %2885 = vmatpush1.msra.mxu0 1.0
    %2886 = vmatprep.subr.mxu0 0.0
    %2887 = vmatpush1.msra.mxu0 1.0
    %2888 = vmatprep.subr.mxu0 0.0
    %2889 = vmatpush1.msra.mxu0 1.0
    %2890 = vmatprep.subr.mxu0 0.0
    %2891 = vmatpush1.msra.mxu0 1.0
    %2892 = vmatprep.subr.mxu0 0.0
    %2893 = vmatpush1.msra.mxu0 1.0
    %2894 = vmatprep.subr.mxu0 0.0
    %2895 = vmatpush1.msra.mxu0 1.0
    %v2896 = vand.u32 %v2831, 4294901760
    %v2897 = vsub.f32 %v2831, %v2896
    %v2898 = vand.u32 %v2897, 4294901760
    %v2899 = vsub.f32 %v2897, %v2898
    %v2900 = vand.u32 %v2899, 4294901760
    %2901 = vmatprep.mubr.f32.mxu0 %v2900
    %v2902 = vand.u32 %v2830, 4294901760
    %v2903 = vsub.f32 %v2830, %v2902
    %v2904 = vand.u32 %v2903, 4294901760
    %v2905 = vsub.f32 %v2903, %v2904
    %v2906 = vand.u32 %v2905, 4294901760
    %2907 = vmatmul.mubr.f32.gmra.mrb[0].mxu0 %v2906
    %v2908 = vpop.f32.mrb[0].mxu0
    %v2909 = vadd.f32 0.0, %v2908
    %v2910 = vpop.f32.mrb[0].mxu0
    %2911 = vdwg.mxu0
    %2912 = vmatprep.subr.mxu0 0.0
    %2913 = vmatpush1.msra.mxu0 0.0
    %2914 = vmatprep.subr.mxu0 0.0
    %2915 = vmatpush1.msra.mxu0 0.0
    %2916 = vmatprep.subr.mxu0 0.0
    %2917 = vmatpush1.msra.mxu0 0.0
    %2918 = vmatprep.subr.mxu0 0.0
    %2919 = vmatpush1.msra.mxu0 0.0
    %2920 = vmatprep.subr.mxu0 0.0
    %2921 = vmatpush1.msra.mxu0 0.0
    %2922 = vmatprep.subr.mxu0 0.0
    %2923 = vmatpush1.msra.mxu0 0.0
    %2924 = vmatprep.subr.mxu0 0.0
    %2925 = vmatpush1.msra.mxu0 0.0
    %2926 = vmatprep.subr.mxu0 0.0
    %2927 = vmatpush1.msra.mxu0 0.0
    %2928 = vmatprep.subr.mxu0 0.0
    %2929 = vmatpush1.msra.mxu0 0.0
    %2930 = vmatprep.subr.mxu0 0.0
    %2931 = vmatpush1.msra.mxu0 0.0
    %2932 = vmatprep.subr.mxu0 0.0
    %2933 = vmatpush1.msra.mxu0 0.0
    %2934 = vmatprep.subr.mxu0 0.0
    %2935 = vmatpush1.msra.mxu0 0.0
    %2936 = vmatprep.subr.mxu0 0.0
    %2937 = vmatpush1.msra.mxu0 0.0
    %2938 = vmatprep.subr.mxu0 0.0
    %2939 = vmatpush1.msra.mxu0 0.0
    %2940 = vmatprep.subr.mxu0 0.0
    %2941 = vmatpush1.msra.mxu0 0.0
    %2942 = vmatprep.subr.mxu0 0.0
    %2943 = vmatpush1.msra.mxu0 0.0
    %2944 = vmatprep.subr.mxu0 0.0
    %2945 = vmatpush1.msra.mxu0 0.0
    %2946 = vmatprep.subr.mxu0 0.0
    %2947 = vmatpush1.msra.mxu0 0.0
    %2948 = vmatprep.subr.mxu0 0.0
    %2949 = vmatpush1.msra.mxu0 0.0
    %2950 = vmatprep.subr.mxu0 0.0
    %2951 = vmatpush1.msra.mxu0 0.0
    %2952 = vmatprep.subr.mxu0 0.0
    %2953 = vmatpush1.msra.mxu0 0.0
    %2954 = vmatprep.subr.mxu0 0.0
    %2955 = vmatpush1.msra.mxu0 0.0
    %2956 = vmatprep.subr.mxu0 0.0
    %2957 = vmatpush1.msra.mxu0 0.0
    %2958 = vmatprep.subr.mxu0 0.0
    %2959 = vmatpush1.msra.mxu0 0.0
    %2960 = vmatprep.subr.mxu0 0.0
    %2961 = vmatpush1.msra.mxu0 0.0
    %2962 = vmatprep.subr.mxu0 0.0
    %2963 = vmatpush1.msra.mxu0 0.0
    %2964 = vmatprep.subr.mxu0 0.0
    %2965 = vmatpush1.msra.mxu0 0.0
    %2966 = vmatprep.subr.mxu0 0.0
    %2967 = vmatpush1.msra.mxu0 0.0
    %2968 = vmatprep.subr.mxu0 0.0
    %2969 = vmatpush1.msra.mxu0 0.0
    %2970 = vmatprep.subr.mxu0 0.0
    %2971 = vmatpush1.msra.mxu0 0.0
    %2972 = vmatprep.subr.mxu0 0.0
    %2973 = vmatpush1.msra.mxu0 0.0
    %2974 = vmatprep.subr.mxu0 0.0
    %2975 = vmatpush1.msra.mxu0 0.0
    %v2976 = vand.u32 %v2831, 4294901760
    %2977 = vmatprep.mubr.f32.mxu0 %v2976
    %v2978 = vand.u32 %v2830, 4294901760
    %2979 = vmatmul.mubr.f32.gmra.mrb[0].mxu0 %v2978
    %v2980 = vpop.f32.mrb[0].mxu0
    %v2981 = vadd.f32 %v2909, %v2980
    %v2982 = vpop.f32.mrb[0].mxu0
    %2983 = vdwg.mxu0
    %2984 = vmatprep.subr.mxu0 0.0
    %2985 = vmatpush1.msra.mxu0 0.0
    %2986 = vmatprep.subr.mxu0 0.0
    %2987 = vmatpush1.msra.mxu0 0.0
    %2988 = vmatprep.subr.mxu0 0.0
    %2989 = vmatpush1.msra.mxu0 0.0
    %2990 = vmatprep.subr.mxu0 0.0
    %2991 = vmatpush1.msra.mxu0 0.0
    %2992 = vmatprep.subr.mxu0 0.0
    %2993 = vmatpush1.msra.mxu0 0.0
    %2994 = vmatprep.subr.mxu0 0.0
    %2995 = vmatpush1.msra.mxu0 0.0
    %2996 = vmatprep.subr.mxu0 0.0
    %2997 = vmatpush1.msra.mxu0 0.0
    %2998 = vmatprep.subr.mxu0 0.0
    %2999 = vmatpush1.msra.mxu0 0.0
    %3000 = vmatprep.subr.mxu0 0.0
    %3001 = vmatpush1.msra.mxu0 0.0
    %3002 = vmatprep.subr.mxu0 0.0
    %3003 = vmatpush1.msra.mxu0 0.0
    %3004 = vmatprep.subr.mxu0 0.0
    %3005 = vmatpush1.msra.mxu0 0.0
    %3006 = vmatprep.subr.mxu0 0.0
    %3007 = vmatpush1.msra.mxu0 0.0
    %3008 = vmatprep.subr.mxu0 0.0
    %3009 = vmatpush1.msra.mxu0 0.0
    %3010 = vmatprep.subr.mxu0 0.0
    %3011 = vmatpush1.msra.mxu0 0.0
    %3012 = vmatprep.subr.mxu0 0.0
    %3013 = vmatpush1.msra.mxu0 0.0
    %3014 = vmatprep.subr.mxu0 0.0
    %3015 = vmatpush1.msra.mxu0 0.0
    %3016 = vmatprep.subr.mxu0 0.0
    %3017 = vmatpush1.msra.mxu0 0.0
    %3018 = vmatprep.subr.mxu0 0.0
    %3019 = vmatpush1.msra.mxu0 0.0
    %3020 = vmatprep.subr.mxu0 0.0
    %3021 = vmatpush1.msra.mxu0 0.0
    %3022 = vmatprep.subr.mxu0 0.0
    %3023 = vmatpush1.msra.mxu0 0.0
    %3024 = vmatprep.subr.mxu0 0.0
    %3025 = vmatpush1.msra.mxu0 0.0
    %3026 = vmatprep.subr.mxu0 0.0
    %3027 = vmatpush1.msra.mxu0 0.0
    %3028 = vmatprep.subr.mxu0 0.0
    %3029 = vmatpush1.msra.mxu0 0.0
    %3030 = vmatprep.subr.mxu0 0.0
    %3031 = vmatpush1.msra.mxu0 0.0
    %3032 = vmatprep.subr.mxu0 0.0
    %3033 = vmatpush1.msra.mxu0 0.0
    %3034 = vmatprep.subr.mxu0 0.0
    %3035 = vmatpush1.msra.mxu0 0.0
    %3036 = vmatprep.subr.mxu0 0.0
    %3037 = vmatpush1.msra.mxu0 0.0
    %3038 = vmatprep.subr.mxu0 0.0
    %3039 = vmatpush1.msra.mxu0 0.0
    %3040 = vmatprep.subr.mxu0 0.0
    %3041 = vmatpush1.msra.mxu0 0.0
    %3042 = vmatprep.subr.mxu0 0.0
    %3043 = vmatpush1.msra.mxu0 0.0
    %3044 = vmatprep.subr.mxu0 0.0
    %3045 = vmatpush1.msra.mxu0 0.0
    %3046 = vmatprep.subr.mxu0 0.0
    %3047 = vmatpush1.msra.mxu0 0.0
    %v3048 = vand.u32 %v2831, 4294901760
    %v3049 = vsub.f32 %v2831, %v3048
    %3050 = vmatprep.mubr.f32.mxu0 %v3049
    %v3051 = vand.u32 %v2830, 4294901760
    %v3052 = vsub.f32 %v2830, %v3051
    %3053 = vmatmul.mubr.f32.gmra.mrb[0].mxu0 %v3052
    %v3054 = vpop.f32.mrb[0].mxu0
    %v3055 = vadd.f32 %v2981, %v3054
    %v3056 = vpop.f32.mrb[0].mxu0
    %3057 = vdwg.mxu0
    %3058 = vmatprep.subr.mxu0 0.0
    %3059 = vmatpush1.msra.mxu0 1.0
    %3060 = vmatprep.subr.mxu0 0.0
    %3061 = vmatpush1.msra.mxu0 1.0
    %3062 = vmatprep.subr.mxu0 0.0
    %3063 = vmatpush1.msra.mxu0 1.0
    %3064 = vmatprep.subr.mxu0 0.0
    %3065 = vmatpush1.msra.mxu0 1.0
    %3066 = vmatprep.subr.mxu0 0.0
    %3067 = vmatpush1.msra.mxu0 1.0
    %3068 = vmatprep.subr.mxu0 0.0
    %3069 = vmatpush1.msra.mxu0 1.0
    %3070 = vmatprep.subr.mxu0 0.0
    %3071 = vmatpush1.msra.mxu0 1.0
    %3072 = vmatprep.subr.mxu0 0.0
    %3073 = vmatpush1.msra.mxu0 1.0
    %3074 = vmatprep.subr.mxu0 0.0
    %3075 = vmatpush1.msra.mxu0 1.0
    %3076 = vmatprep.subr.mxu0 0.0
    %3077 = vmatpush1.msra.mxu0 1.0
    %3078 = vmatprep.subr.mxu0 0.0
    %3079 = vmatpush1.msra.mxu0 1.0
    %3080 = vmatprep.subr.mxu0 0.0
    %3081 = vmatpush1.msra.mxu0 1.0
    %3082 = vmatprep.subr.mxu0 0.0
    %3083 = vmatpush1.msra.mxu0 1.0
    %3084 = vmatprep.subr.mxu0 0.0
    %3085 = vmatpush1.msra.mxu0 1.0
    %3086 = vmatprep.subr.mxu0 0.0
    %3087 = vmatpush1.msra.mxu0 1.0
    %3088 = vmatprep.subr.mxu0 0.0
    %3089 = vmatpush1.msra.mxu0 1.0
    %3090 = vmatprep.subr.mxu0 0.0
    %3091 = vmatpush1.msra.mxu0 1.0
    %3092 = vmatprep.subr.mxu0 0.0
    %3093 = vmatpush1.msra.mxu0 1.0
    %3094 = vmatprep.subr.mxu0 0.0
    %3095 = vmatpush1.msra.mxu0 1.0
    %3096 = vmatprep.subr.mxu0 0.0
    %3097 = vmatpush1.msra.mxu0 1.0
    %3098 = vmatprep.subr.mxu0 0.0
    %3099 = vmatpush1.msra.mxu0 1.0
    %3100 = vmatprep.subr.mxu0 0.0
    %3101 = vmatpush1.msra.mxu0 1.0
    %3102 = vmatprep.subr.mxu0 0.0
    %3103 = vmatpush1.msra.mxu0 1.0
    %3104 = vmatprep.subr.mxu0 0.0
    %3105 = vmatpush1.msra.mxu0 1.0
    %3106 = vmatprep.subr.mxu0 0.0
    %3107 = vmatpush1.msra.mxu0 1.0
    %3108 = vmatprep.subr.mxu0 0.0
    %3109 = vmatpush1.msra.mxu0 1.0
    %3110 = vmatprep.subr.mxu0 0.0
    %3111 = vmatpush1.msra.mxu0 1.0
    %3112 = vmatprep.subr.mxu0 0.0
    %3113 = vmatpush1.msra.mxu0 1.0
    %3114 = vmatprep.subr.mxu0 0.0
    %3115 = vmatpush1.msra.mxu0 1.0
    %3116 = vmatprep.subr.mxu0 0.0
    %3117 = vmatpush1.msra.mxu0 1.0
    %3118 = vmatprep.subr.mxu0 0.0
    %3119 = vmatpush1.msra.mxu0 1.0
    %3120 = vmatprep.subr.mxu0 0.0
    %3121 = vmatpush1.msra.mxu0 1.0
    %v3122 = vand.u32 %v2831, 4294901760
    %v3123 = vsub.f32 %v2831, %v3122
    %v3124 = vand.u32 %v3123, 4294901760
    %3125 = vmatprep.mubr.f32.mxu0 %v3124
    %v3126 = vand.u32 %v2830, 4294901760
    %v3127 = vsub.f32 %v2830, %v3126
    %v3128 = vand.u32 %v3127, 4294901760
    %3129 = vmatmul.mubr.f32.gmra.mrb[0].mxu0 %v3128
    %v3130 = vpop.f32.mrb[0].mxu0
    %v3131 = vadd.f32 %v3055, %v3130
    %v3132 = vpop.f32.mrb[0].mxu0
    %3133 = vdwg.mxu0
    %3134 = vmatprep.subr.mxu0 0.0
    %3135 = vmatpush1.msra.mxu0 0.0
    %3136 = vmatprep.subr.mxu0 0.0
    %3137 = vmatpush1.msra.mxu0 0.0
    %3138 = vmatprep.subr.mxu0 0.0
    %3139 = vmatpush1.msra.mxu0 0.0
    %3140 = vmatprep.subr.mxu0 0.0
    %3141 = vmatpush1.msra.mxu0 0.0
    %3142 = vmatprep.subr.mxu0 0.0
    %3143 = vmatpush1.msra.mxu0 0.0
    %3144 = vmatprep.subr.mxu0 0.0
    %3145 = vmatpush1.msra.mxu0 0.0
    %3146 = vmatprep.subr.mxu0 0.0
    %3147 = vmatpush1.msra.mxu0 0.0
    %3148 = vmatprep.subr.mxu0 0.0
    %3149 = vmatpush1.msra.mxu0 0.0
    %3150 = vmatprep.subr.mxu0 0.0
    %3151 = vmatpush1.msra.mxu0 0.0
    %3152 = vmatprep.subr.mxu0 0.0
    %3153 = vmatpush1.msra.mxu0 0.0
    %3154 = vmatprep.subr.mxu0 0.0
    %3155 = vmatpush1.msra.mxu0 0.0
    %3156 = vmatprep.subr.mxu0 0.0
    %3157 = vmatpush1.msra.mxu0 0.0
    %3158 = vmatprep.subr.mxu0 0.0
    %3159 = vmatpush1.msra.mxu0 0.0
    %3160 = vmatprep.subr.mxu0 0.0
    %3161 = vmatpush1.msra.mxu0 0.0
    %3162 = vmatprep.subr.mxu0 0.0
    %3163 = vmatpush1.msra.mxu0 0.0
    %3164 = vmatprep.subr.mxu0 0.0
    %3165 = vmatpush1.msra.mxu0 0.0
    %3166 = vmatprep.subr.mxu0 0.0
    %3167 = vmatpush1.msra.mxu0 0.0
    %3168 = vmatprep.subr.mxu0 0.0
    %3169 = vmatpush1.msra.mxu0 0.0
    %3170 = vmatprep.subr.mxu0 0.0
    %3171 = vmatpush1.msra.mxu0 0.0
    %3172 = vmatprep.subr.mxu0 0.0
    %3173 = vmatpush1.msra.mxu0 0.0
    %3174 = vmatprep.subr.mxu0 0.0
    %3175 = vmatpush1.msra.mxu0 0.0
    %3176 = vmatprep.subr.mxu0 0.0
    %3177 = vmatpush1.msra.mxu0 0.0
    %3178 = vmatprep.subr.mxu0 0.0
    %3179 = vmatpush1.msra.mxu0 0.0
    %3180 = vmatprep.subr.mxu0 0.0
    %3181 = vmatpush1.msra.mxu0 0.0
    %3182 = vmatprep.subr.mxu0 0.0
    %3183 = vmatpush1.msra.mxu0 0.0
    %3184 = vmatprep.subr.mxu0 0.0
    %3185 = vmatpush1.msra.mxu0 0.0
    %3186 = vmatprep.subr.mxu0 0.0
    %3187 = vmatpush1.msra.mxu0 0.0
    %3188 = vmatprep.subr.mxu0 0.0
    %3189 = vmatpush1.msra.mxu0 0.0
    %3190 = vmatprep.subr.mxu0 0.0
    %3191 = vmatpush1.msra.mxu0 0.0
    %3192 = vmatprep.subr.mxu0 0.0
    %3193 = vmatpush1.msra.mxu0 0.0
    %3194 = vmatprep.subr.mxu0 0.0
    %3195 = vmatpush1.msra.mxu0 0.0
    %3196 = vmatprep.subr.mxu0 0.0
    %3197 = vmatpush1.msra.mxu0 0.0
    %v3198 = vand.u32 %v2831, 4294901760
    %3199 = vmatprep.mubr.f32.mxu0 %v3198
    %v3200 = vand.u32 %v2830, 4294901760
    %3201 = vmatmul.mubr.f32.gmra.mrb[0].mxu0 %v3200
    %v3202 = vpop.f32.mrb[0].mxu0
    %v3203 = vadd.f32 %v3131, %v3202
    %v3204 = vpop.f32.mrb[0].mxu0
    %3205 = vdwg.mxu0
    %3206 = vmatprep.subr.mxu0 0.0
    %3207 = vmatpush1.msra.mxu0 1.0
    %3208 = vmatprep.subr.mxu0 0.0
    %3209 = vmatpush1.msra.mxu0 1.0
    %3210 = vmatprep.subr.mxu0 0.0
    %3211 = vmatpush1.msra.mxu0 1.0
    %3212 = vmatprep.subr.mxu0 0.0
    %3213 = vmatpush1.msra.mxu0 1.0
    %3214 = vmatprep.subr.mxu0 0.0
    %3215 = vmatpush1.msra.mxu0 1.0
    %3216 = vmatprep.subr.mxu0 0.0
    %3217 = vmatpush1.msra.mxu0 1.0
    %3218 = vmatprep.subr.mxu0 0.0
    %3219 = vmatpush1.msra.mxu0 1.0
    %3220 = vmatprep.subr.mxu0 0.0
    %3221 = vmatpush1.msra.mxu0 1.0
    %3222 = vmatprep.subr.mxu0 0.0
    %3223 = vmatpush1.msra.mxu0 1.0
    %3224 = vmatprep.subr.mxu0 0.0
    %3225 = vmatpush1.msra.mxu0 1.0
    %3226 = vmatprep.subr.mxu0 0.0
    %3227 = vmatpush1.msra.mxu0 1.0
    %3228 = vmatprep.subr.mxu0 0.0
    %3229 = vmatpush1.msra.mxu0 1.0
    %3230 = vmatprep.subr.mxu0 0.0
    %3231 = vmatpush1.msra.mxu0 1.0
    %3232 = vmatprep.subr.mxu0 0.0
    %3233 = vmatpush1.msra.mxu0 1.0
    %3234 = vmatprep.subr.mxu0 0.0
    %3235 = vmatpush1.msra.mxu0 1.0
    %3236 = vmatprep.subr.mxu0 0.0
    %3237 = vmatpush1.msra.mxu0 1.0
    %3238 = vmatprep.subr.mxu0 0.0
    %3239 = vmatpush1.msra.mxu0 1.0
    %3240 = vmatprep.subr.mxu0 0.0
    %3241 = vmatpush1.msra.mxu0 1.0
    %3242 = vmatprep.subr.mxu0 0.0
    %3243 = vmatpush1.msra.mxu0 1.0
    %3244 = vmatprep.subr.mxu0 0.0
    %3245 = vmatpush1.msra.mxu0 1.0
    %3246 = vmatprep.subr.mxu0 0.0
    %3247 = vmatpush1.msra.mxu0 1.0
    %3248 = vmatprep.subr.mxu0 0.0
    %3249 = vmatpush1.msra.mxu0 1.0
    %3250 = vmatprep.subr.mxu0 0.0
    %3251 = vmatpush1.msra.mxu0 1.0
    %3252 = vmatprep.subr.mxu0 0.0
    %3253 = vmatpush1.msra.mxu0 1.0
    %3254 = vmatprep.subr.mxu0 0.0
    %3255 = vmatpush1.msra.mxu0 1.0
    %3256 = vmatprep.subr.mxu0 0.0
    %3257 = vmatpush1.msra.mxu0 1.0
    %3258 = vmatprep.subr.mxu0 0.0
    %3259 = vmatpush1.msra.mxu0 1.0
    %3260 = vmatprep.subr.mxu0 0.0
    %3261 = vmatpush1.msra.mxu0 1.0
    %3262 = vmatprep.subr.mxu0 0.0
    %3263 = vmatpush1.msra.mxu0 1.0
    %3264 = vmatprep.subr.mxu0 0.0
    %3265 = vmatpush1.msra.mxu0 1.0
    %3266 = vmatprep.subr.mxu0 0.0
    %3267 = vmatpush1.msra.mxu0 1.0
    %3268 = vmatprep.subr.mxu0 0.0
    %3269 = vmatpush1.msra.mxu0 1.0
    %v3270 = vand.u32 %v2831, 4294901760
    %3271 = vmatprep.mubr.f32.mxu0 %v3270
    %v3272 = vand.u32 %v2830, 4294901760
    %3273 = vmatmul.mubr.f32.gmra.mrb[0].mxu0 %v3272
    %v3274 = vpop.f32.mrb[0].mxu0
    %v3275 = vadd.f32 %v3203, %v3274
    %v3276 = vpop.f32.mrb[0].mxu0
    %3277 = vdwg.mxu0
    %v3278 = vadd.f32 %v2827, %v3275
    %3279 = vst.msk [vmem:[#allocation4] sm:$0xff] %vm1406, %v3278
    // Predicated region
    $region22: #{tpu_custom_call.1} parent=1 // pred_check
      %p3280 = pneg %p46
    $region23: #{tpu_custom_call.1} parent=1 // pred_check_branch
      %3282 = sbr.rel (%p3280) target = $region25
    $region24: #{tpu_custom_call.1} parent=1 // pred_region
      %v3283 = vld [vmem:[#allocation2] sm:$0xff]
      %v3284 = vsel %vm1406, %v3283, 0.0
      %3285 = vadd.xlane.f32.xlu0 %v3284
      %v3286 = vpop.xlane.xlu0 %3285
      %v3287 = vrot.slane %v3286, 4
      %v3288 = vadd.f32 %v3286, %v3287
      %v3289 = vrot.slane %v3288, 2
      %v3290 = vadd.f32 %v3288, %v3289
      %v3291 = vrot.slane %v3290, 1
      %v3292 = vadd.f32 %v3290, %v3291
      %s3293 = vtos %v3292
      %v3294 = vld [vmem:[#allocation3] sm:$0xff]
      %v3295 = vsel %vm1406, %v3294, 0.0
      %3296 = vadd.xlane.f32.xlu0 %v3295
      %v3297 = vpop.xlane.xlu0 %3296
      %v3298 = vrot.slane %v3297, 4
      %v3299 = vadd.f32 %v3297, %v3298
      %v3300 = vrot.slane %v3299, 2
      %v3301 = vadd.f32 %v3299, %v3300
      %v3302 = vrot.slane %v3301, 1
      %v3303 = vadd.f32 %v3301, %v3302
      %s3304 = vtos %v3303
      %v3305 = vld [vmem:[#allocation4] sm:$0xff]
      %v3306 = vsel %vm1406, %v3305, 0.0
      %3307 = vadd.xlane.f32.xlu0 %v3306
      %v3308 = vpop.xlane.xlu0 %3307
      %v3309 = vrot.slane %v3308, 4
      %v3310 = vadd.f32 %v3308, %v3309
      %v3311 = vrot.slane %v3310, 2
      %v3312 = vadd.f32 %v3310, %v3311
      %v3313 = vrot.slane %v3312, 1
      %v3314 = vadd.f32 %v3312, %v3313
      %s3315 = vtos %v3314
      %v3316 = vlaneseq
      %v3317 = vand.u32 %v3316, 127
      %vm3318 = vcmp.eq.s32.totalorder %v3317, 0
      %vm3319 = vcmp.eq.s32.totalorder %v3317, 1
      %vm3320 = vcmp.eq.s32.totalorder %v3317, 2
      %v3321 = vstv %s3315
      %v3322 = vsel %vm3320, %v3321, 0.0
      %v3323 = vstv %s3304
      %v3324 = vsel %vm3319, %v3323, %v3322
      %v3325 = vstv %s3293
      %v3326 = vsel %vm3318, %v3325, %v3324
      %3327 = vst [vmem:[#allocation10] sm:$0xff] %v3326
    $region25: #{tpu_custom_call.1} parent=1 // pred_fallthru
      _
    // Predicated region
    $region26: #{tpu_custom_call.1} parent=1 // pred_check
      _
    $region27: #{tpu_custom_call.1} parent=1 // pred_check_branch
      %3329 = sbr.rel (0) target = $region29
    $region28: #{tpu_custom_call.1} parent=1 // pred_region
      %s3331 = ssub.s32 128, 128
      %3332 = vsyncadd [#allocation7], %s3331
      %s3334 = sshll.u32 [#allocation10], 4
      %s3335 = int_to_ptr.vmem [resolvable:$true] %s3334
      %3337 = dma.vmem_to_hbm [thread:$0]  %s3335, 128, %s2, [#allocation7]
    $region29: #{tpu_custom_call.1} parent=1 // pred_fallthru
      _
    // Predicated region
    $region30: #{tpu_custom_call.1} parent=1 // pred_check
      _
    $region31: #{tpu_custom_call.1} parent=1 // pred_check_branch
      %3339 = sbr.rel (0) target = $region33
    $region32: #{tpu_custom_call.1} parent=1 // pred_region
      %3340 = dma.done [#allocation7], 128
    $region33: #{tpu_custom_call.1} parent=1 // pred_fallthru
      _
    %3341 = vsyncpa [#allocation6], 1
    %3342 = vsyncpa [#allocation9], 1
    %3343 = vsyncpa [#allocation7], 1

</llo_original>
